<compile_context>
chip_gen: v7x
topology: tpu7x:2x2x1
jax: 0.10.0
libtpu: 0.0.40
codegen_flags: <defaults>
</compile_context>

<pallas_src>
import functools

import jax
import jax.numpy as jnp
import numpy as np
from jax.experimental import pallas as pl
from jax.experimental.pallas import tpu as pltpu


# --------------------------------------------------------------------------- roll probe
@functools.lru_cache(maxsize=None)
def _xlu_roll_config():
    """Return (use_xlu_roll, sign) such that pltpu.roll(x, sign*s % n, 0) == jnp.roll(x, s, 0).

    One tiny (8,128) probe kernel determines the hardware rotate direction; if the sublane
    roll is unavailable we fall back to jnp.roll (slice + concat) inside the main kernel.
    """
    try:
        def probe(o_ref):
            o_ref[...] = pltpu.roll(
                jax.lax.broadcasted_iota(jnp.float32, (8, 128), 0), 1, 0)

        r = pl.pallas_call(
            probe, out_shape=jax.ShapeDtypeStruct((8, 128), jnp.float32))()
        v = int(np.asarray(jax.block_until_ready(r))[0, 0])
        if v == 7:      # out[0] == in[-1]  ->  same convention as jnp.roll
            return True, 1
        if v == 1:      # out[0] == in[+1]  ->  opposite convention
            return True, -1
    except Exception:
        pass
    return False, 1


# --------------------------------------------------------------------------- kernel
def _trans_block_kernel(x_ref,
                        wqkv_ref, bqkv_ref,
                        wp_ref, pb_ref,
                        w1_ref, b1_ref,
                        wd_ref, bd_ref,
                        w2_ref, b2_ref,
                        out_ref,
                        *, num_heads, key_dim, d, W, use_xlu_roll, roll_sign):
    """Fused trans_Block forward for one image (N = H*W flattened tokens)."""
    N = x_ref.shape[1]
    hidden = w1_ref.shape[1]
    nh_kd = num_heads * key_dim
    f32, bf16 = jnp.float32, jnp.bfloat16

    def roll0(a, s):
        """jnp.roll(a, s, axis=0) semantics, preferring the XLU roll."""
        s = s % a.shape[0]
        if s == 0:
            return a
        if use_xlu_roll:
            return pltpu.roll(a, (roll_sign * s) % a.shape[0], 0)
        return jnp.roll(a, s, axis=0)

    xf = x_ref[0].astype(f32)                           # (N, C) residual path stays f32
    xb = xf.astype(bf16)

    # ----- Attention: fused q|k|v 1x1 conv (BN folded), single lane-dense matmul -------
    qkv = jnp.dot(xb, wqkv_ref[...], preferred_element_type=f32) + bqkv_ref[...]
    qkv_b = qkv.astype(bf16)

    # NOTE: no 1/sqrt(key_dim) logit scaling — matches TopFormer's Attention.forward.
    heads = []
    for h in range(num_heads):                          # static unroll (num_heads is small)
        qh = qkv_b[:, h * key_dim:(h + 1) * key_dim]
        kh = qkv_b[:, nh_kd + h * key_dim: nh_kd + (h + 1) * key_dim]
        vh = qkv_b[:, 2 * nh_kd + h * d: 2 * nh_kd + (h + 1) * d]
        s = jax.lax.dot_general(qh, kh, (((1,), (1,)), ((), ())),
                                preferred_element_type=f32)          # (N, N) f32
        s = s - jnp.max(s, axis=-1, keepdims=True)
        e = jnp.exp(s)
        p = e * pl.reciprocal(jnp.sum(e, axis=-1, keepdims=True), approx=True)
        oh = jnp.dot(p.astype(bf16), vh, preferred_element_type=f32)  # (N, d)
        heads.append(jnp.maximum(oh, 0.0))              # ReLU before proj (as in TopFormer)
    ohall = jnp.concatenate(heads, axis=1).astype(bf16)               # (N, dh)
    attn_out = jnp.dot(ohall, wp_ref[...], preferred_element_type=f32) + pb_ref[...]

    x1 = xf + attn_out                                   # residual 1 (DropPath = identity)

    # ----- Mlp.fc1 (1x1 conv + folded BN) -----------------------------------------------
    y = jnp.dot(x1.astype(bf16), w1_ref[...], preferred_element_type=f32) + b1_ref[...]

    # ----- 3x3 depthwise conv (SAME, zero pad) on the flattened (N, hidden) map ---------
    # Neighbour taps via XLU rolls of the flattened spatial axis; image borders (where a
    # SAME conv would read zero padding) are masked out with iota-derived (N,1) masks.
    idx = jax.lax.broadcasted_iota(jnp.int32, (N, 1), 0)
    col = idx % W
    ml = jnp.where(col >= 1, 1.0, 0.0)                  # left neighbour is inside the row
    mr = jnp.where(col <= W - 2, 1.0, 0.0)              # right neighbour is inside the row
    mt = jnp.where(idx >= W, 1.0, 0.0)                  # row above exists
    mb = jnp.where(idx < N - W, 1.0, 0.0)               # row below exists
    wd = wd_ref[...]                                    # (9, hidden) f32

    acc = jnp.zeros((N, hidden), f32)
    for dy in range(3):
        base = roll0(y, (1 - dy) * W)                   # vertical tap (dy-1 rows away)
        if dy == 0:
            base = base * mt
        elif dy == 2:
            base = base * mb
        acc = acc + base * wd[dy * 3 + 1: dy * 3 + 2, :]
        acc = acc + roll0(base, 1) * ml * wd[dy * 3 + 0: dy * 3 + 1, :]
        acc = acc + roll0(base, -1) * mr * wd[dy * 3 + 2: dy * 3 + 3, :]
    act = jnp.maximum(acc + bd_ref[...], 0.0)           # conv bias + ReLU

    # ----- Mlp.fc2 (1x1 conv + folded BN) + residual 2 ----------------------------------
    z = jnp.dot(act.astype(bf16), w2_ref[...], preferred_element_type=f32) + b2_ref[...]
    out_ref[0] = (x1 + z).astype(out_ref.dtype)


# --------------------------------------------------------------------------- wrapper
def trans_block_forward(x, p, *, num_heads, key_dim, attn_ratio=2.0, mlp_ratio=4.0):
    B, H, W, C = x.shape
    N = H * W
    d = int(attn_ratio * key_dim)
    dh = d * num_heads
    nh_kd = key_dim * num_heads
    qkv_w = 2 * nh_kd + dh
    hidden = int(C * mlp_ratio)

    # Fold the inference-mode BN scales into the conv weights once and pre-cast the MXU
    # operands to bf16 (single-pass MXU; f32 accumulation happens inside the kernel).
    wqkv = jnp.concatenate(
        [p["wq"] * p["qs"], p["wk"] * p["ks"], p["wv"] * p["vs"]], axis=1
    ).astype(jnp.bfloat16)                                          # (C, qkv_w)
    bqkv = jnp.concatenate([p["qb"], p["kb"], p["vb"]], axis=1)     # (1, qkv_w) f32
    wp = (p["wp"] * p["ps"]).astype(jnp.bfloat16)                   # (dh, C)
    w1 = (p["w1"] * p["s1"]).astype(jnp.bfloat16)                   # (C, hidden)
    w2 = (p["w2"] * p["s2"]).astype(jnp.bfloat16)                   # (hidden, C)

    use_xlu_roll, roll_sign = _xlu_roll_config()

    xr = x.reshape(B, N, C)                                         # free HBM-side reshape

    full = lambda shape: pl.BlockSpec(shape, lambda b, _s=shape: (0,) * len(_s))
    per_b = lambda shape: pl.BlockSpec(shape, lambda b: (b, 0, 0))

    # TODO(synk): for production resolutions (large N) tile the (N,N) attention over KV
    # blocks (online softmax) so the fused design stays within v7x's 64 MiB VMEM.
    out = pl.pallas_call(
        functools.partial(_trans_block_kernel, num_heads=num_heads, key_dim=key_dim,
                          d=d, W=W, use_xlu_roll=use_xlu_roll, roll_sign=roll_sign),
        out_shape=jax.ShapeDtypeStruct((B, N, C), jnp.float32),
        grid=(B,),
        in_specs=[
            per_b((1, N, C)),
            full((C, qkv_w)), full((1, qkv_w)),
            full((dh, C)), full((1, C)),
            full((C, hidden)), full((1, hidden)),
            full((9, hidden)), full((1, hidden)),
            full((hidden, C)), full((1, C)),
        ],
        out_specs=per_b((1, N, C)),
        compiler_params=pltpu.CompilerParams(dimension_semantics=("parallel",)),
    )(xr, wqkv, bqkv, wp, p["pb"], w1, p["b1"], p["wd"], p["bd"], w2, p["b2"])
    return out.reshape(B, H, W, C)


# --------------------------------------------------------------------------- pure-JAX reference
def trans_block_reference(x, p, *, num_heads, key_dim, attn_ratio=2.0, mlp_ratio=4.0):
    B, H, W, C = x.shape
    N = H * W
    d = int(attn_ratio * key_dim)
    hidden = int(C * mlp_ratio)
    with jax.default_matmul_precision("highest"):       # true f32 reference
        xf = x.reshape(B, N, C)

        q = xf @ p["wq"] * p["qs"] + p["qb"]
        k = xf @ p["wk"] * p["ks"] + p["kb"]
        v = xf @ p["wv"] * p["vs"] + p["vb"]
        q = q.reshape(B, N, num_heads, key_dim).transpose(0, 2, 1, 3)
        k = k.reshape(B, N, num_heads, key_dim).transpose(0, 2, 1, 3)
        v = v.reshape(B, N, num_heads, d).transpose(0, 2, 1, 3)
        attn = jax.nn.softmax(jnp.einsum("bhnk,bhmk->bhnm", q, k), axis=-1)
        xx = jnp.einsum("bhnm,bhmd->bhnd", attn, v).transpose(0, 2, 1, 3)
        xx = xx.reshape(B, N, num_heads * d)
        xx = jnp.maximum(xx, 0.0)
        attn_out = xx @ p["wp"] * p["ps"] + p["pb"]

        x1 = xf + attn_out
        y = (x1 @ p["w1"] * p["s1"] + p["b1"]).reshape(B, H, W, hidden)
        dwker = p["wd"].reshape(3, 3, hidden)[:, :, None, :]
        dwy = jax.lax.conv_general_dilated(
            y, dwker, window_strides=(1, 1), padding="SAME",
            dimension_numbers=("NHWC", "HWIO", "NHWC"),
            feature_group_count=hidden) + p["bd"].reshape(1, 1, 1, hidden)
        act = jnp.maximum(dwy, 0.0).reshape(B, N, hidden)
        z = act @ p["w2"] * p["s2"] + p["b2"]
        return (x1 + z).reshape(B, H, W, C)


# --------------------------------------------------------------------------- params
def _make_params(key, dim, key_dim, num_heads, attn_ratio, mlp_ratio):
    nh_kd = key_dim * num_heads
    d = int(attn_ratio * key_dim)
    dh = d * num_heads
    hidden = int(dim * mlp_ratio)

    def mat(k, i, o):
        return (jax.random.normal(k, (i, o), jnp.float32) / np.sqrt(i)).astype(jnp.float32)

    def aff(k, n):
        k1, k2 = jax.random.split(k)
        return (1.0 + 0.1 * jax.random.normal(k1, (1, n), jnp.float32),
                0.05 * jax.random.normal(k2, (1, n), jnp.float32))

    ks = jax.random.split(key, 16)
    p = {}
    p["wq"] = mat(ks[0], dim, nh_kd);  p["qs"], p["qb"] = aff(ks[1], nh_kd)
    p["wk"] = mat(ks[2], dim, nh_kd);  p["ks"], p["kb"] = aff(ks[3], nh_kd)
    p["wv"] = mat(ks[4], dim, dh);     p["vs"], p["vb"] = aff(ks[5], dh)
    p["wp"] = mat(ks[6], dh, dim);     p["ps"], p["pb"] = aff(ks[7], dim)
    p["w1"] = mat(ks[8], dim, hidden); p["s1"], p["b1"] = aff(ks[9], hidden)
    # depthwise 3x3 weight flattened: wd[dy*3+dx, c] == torch_weight[c, 0, dy, dx]
    p["wd"] = 0.2 * jax.random.normal(ks[10], (9, hidden), jnp.float32)
    p["bd"] = 0.05 * jax.random.normal(ks[11], (1, hidden), jnp.float32)
    p["w2"] = mat(ks[12], hidden, dim); p["s2"], p["b2"] = aff(ks[13], dim)
    return p


# --------------------------------------------------------------------------- main
if __name__ == "__main__":
    B, H, W = 2, 8, 8
    dim, key_dim, num_heads = 32, 8, 4
    attn_ratio, mlp_ratio = 2.0, 4.0

    key = jax.random.PRNGKey(0)
    kx, kp = jax.random.split(key)
    x = jax.random.normal(kx, (B, H, W, dim), jnp.float32)   # NHWC (torch NCHW: [2,32,8,8])
    params = _make_params(kp, dim, key_dim, num_heads, attn_ratio, mlp_ratio)

    out = trans_block_forward(x, params, num_heads=num_heads, key_dim=key_dim,
                              attn_ratio=attn_ratio, mlp_ratio=mlp_ratio)
    out = jax.block_until_ready(out)

    ref = trans_block_reference(x, params, num_heads=num_heads, key_dim=key_dim,
                                attn_ratio=attn_ratio, mlp_ratio=mlp_ratio)
    # Kernel runs all matmuls with bf16 operands (f32 accumulate) and an approx-reciprocal
    # softmax, so it is compared against the f32 reference with bf16-level tolerance.
    np.testing.assert_allclose(np.asarray(out), np.asarray(ref), rtol=5e-2, atol=1e-1)
    print("KERNEL_OK")
</pallas_src>

<mosaic_0001>
module attributes {stable_mosaic.version = 11 : i64} {
  func.func @_trans_block_kernel(%arg0: i32, %arg1: memref<1x64x32xf32, #tpu.memory_space<vmem>>, %arg2: memref<32x128xbf16, #tpu.memory_space<vmem>>, %arg3: memref<1x128xf32, #tpu.memory_space<vmem>>, %arg4: memref<64x32xbf16, #tpu.memory_space<vmem>>, %arg5: memref<1x32xf32, #tpu.memory_space<vmem>>, %arg6: memref<32x128xbf16, #tpu.memory_space<vmem>>, %arg7: memref<1x128xf32, #tpu.memory_space<vmem>>, %arg8: memref<9x128xf32, #tpu.memory_space<vmem>>, %arg9: memref<1x128xf32, #tpu.memory_space<vmem>>, %arg10: memref<128x32xbf16, #tpu.memory_space<vmem>>, %arg11: memref<1x32xf32, #tpu.memory_space<vmem>>, %arg12: memref<1x64x32xf32, #tpu.memory_space<vmem>>) attributes {dimension_semantics = [#tpu.dimension_semantics<parallel>], iteration_bounds = array<i64: 2>, scalar_prefetch = 0 : i64, scratch_operands = 0 : i64, tpu.core_type = #tpu.core_type<tc>, window_params = [{transform_indices = @transform_0, window_bounds = array<i64: 1, 64, 32>}, {pipeline_mode = #tpu.pipeline_mode<synchronous>, transform_indices = @transform_1, window_bounds = array<i64: 32, 128>}, {pipeline_mode = #tpu.pipeline_mode<synchronous>, transform_indices = @transform_2, window_bounds = array<i64: 1, 128>}, {pipeline_mode = #tpu.pipeline_mode<synchronous>, transform_indices = @transform_3, window_bounds = array<i64: 64, 32>}, {pipeline_mode = #tpu.pipeline_mode<synchronous>, transform_indices = @transform_4, window_bounds = array<i64: 1, 32>}, {pipeline_mode = #tpu.pipeline_mode<synchronous>, transform_indices = @transform_5, window_bounds = array<i64: 32, 128>}, {pipeline_mode = #tpu.pipeline_mode<synchronous>, transform_indices = @transform_6, window_bounds = array<i64: 1, 128>}, {pipeline_mode = #tpu.pipeline_mode<synchronous>, transform_indices = @transform_7, window_bounds = array<i64: 9, 128>}, {pipeline_mode = #tpu.pipeline_mode<synchronous>, transform_indices = @transform_8, window_bounds = array<i64: 1, 128>}, {pipeline_mode = #tpu.pipeline_mode<synchronous>, transform_indices = @transform_9, window_bounds = array<i64: 128, 32>}, {pipeline_mode = #tpu.pipeline_mode<synchronous>, transform_indices = @transform_10, window_bounds = array<i64: 1, 32>}, {transform_indices = @transform_11, window_bounds = array<i64: 1, 64, 32>}]} {
    %c0 = arith.constant 0 : index
    %c0_0 = arith.constant 0 : index
    %c0_1 = arith.constant 0 : index
    %0 = vector.load %arg1[%c0, %c0_0, %c0_1] : memref<1x64x32xf32, #tpu.memory_space<vmem>>, vector<1x64x32xf32>
    %1 = vector.shape_cast %0 : vector<1x64x32xf32> to vector<64x32xf32>
    %2 = arith.truncf %1 : vector<64x32xf32> to vector<64x32xbf16>
    %c0_2 = arith.constant 0 : index
    %c0_3 = arith.constant 0 : index
    %3 = vector.load %arg2[%c0_2, %c0_3] : memref<32x128xbf16, #tpu.memory_space<vmem>>, vector<32x128xbf16>
    %cst = arith.constant dense<0.000000e+00> : vector<64x128xf32>
    %4 = tpu.matmul %2, %3, %cst {dimension_numbers = #tpu.dot_dimension_numbers<[1], [0], [0], [1], [0, 0, 1, 1], [], []>} : vector<64x32xbf16>, vector<32x128xbf16>, vector<64x128xf32> -> vector<64x128xf32>
    %c0_4 = arith.constant 0 : index
    %c0_5 = arith.constant 0 : index
    %5 = vector.load %arg3[%c0_4, %c0_5] : memref<1x128xf32, #tpu.memory_space<vmem>>, vector<1x128xf32>
    %6 = vector.broadcast %5 : vector<1x128xf32> to vector<64x128xf32>
    %7 = arith.addf %4, %6 : vector<64x128xf32>
    %8 = arith.truncf %7 : vector<64x128xf32> to vector<64x128xbf16>
    %9 = vector.extract_strided_slice %8 {offsets = [0, 0], sizes = [64, 8], strides = [1, 1]} : vector<64x128xbf16> to vector<64x8xbf16>
    %10 = vector.extract_strided_slice %8 {offsets = [0, 32], sizes = [64, 8], strides = [1, 1]} : vector<64x128xbf16> to vector<64x8xbf16>
    %11 = vector.extract_strided_slice %8 {offsets = [0, 64], sizes = [64, 16], strides = [1, 1]} : vector<64x128xbf16> to vector<64x16xbf16>
    %cst_6 = arith.constant dense<0.000000e+00> : vector<64x64xf32>
    %12 = tpu.matmul %9, %10, %cst_6 {dimension_numbers = #tpu.dot_dimension_numbers<[1], [1], [0], [0], [0, 0, 1, 0], [], []>} : vector<64x8xbf16>, vector<64x8xbf16>, vector<64x64xf32> -> vector<64x64xf32>
    %cst_7 = arith.constant dense<0xFF800000> : vector<64xf32>
    %13 = vector.multi_reduction <maximumf>, %12, %cst_7 [1] : vector<64x64xf32> to vector<64xf32>
    %14 = vector.shape_cast %13 : vector<64xf32> to vector<64x1xf32>
    %15 = vector.broadcast %14 : vector<64x1xf32> to vector<64x64xf32>
    %16 = arith.subf %12, %15 : vector<64x64xf32>
    %17 = math.exp %16 : vector<64x64xf32>
    %cst_8 = arith.constant dense<0.000000e+00> : vector<64xf32>
    %18 = vector.multi_reduction <add>, %17, %cst_8 [1] : vector<64x64xf32> to vector<64xf32>
    %19 = vector.shape_cast %18 : vector<64xf32> to vector<64x1xf32>
    %20 = tpu.reciprocal %19 {approx = true} : vector<64x1xf32> -> vector<64x1xf32>
    %21 = vector.broadcast %20 : vector<64x1xf32> to vector<64x64xf32>
    %22 = arith.mulf %17, %21 : vector<64x64xf32>
    %23 = arith.truncf %22 : vector<64x64xf32> to vector<64x64xbf16>
    %cst_9 = arith.constant dense<0.000000e+00> : vector<64x16xf32>
    %24 = tpu.matmul %23, %11, %cst_9 {dimension_numbers = #tpu.dot_dimension_numbers<[1], [0], [0], [1], [0, 0, 1, 1], [], []>} : vector<64x64xbf16>, vector<64x16xbf16>, vector<64x16xf32> -> vector<64x16xf32>
    %cst_10 = arith.constant 0.000000e+00 : f32
    %25 = vector.broadcast %cst_10 : f32 to vector<64x16xf32>
    %26 = arith.maximumf %24, %25 : vector<64x16xf32>
    %27 = vector.extract_strided_slice %8 {offsets = [0, 8], sizes = [64, 8], strides = [1, 1]} : vector<64x128xbf16> to vector<64x8xbf16>
    %28 = vector.extract_strided_slice %8 {offsets = [0, 40], sizes = [64, 8], strides = [1, 1]} : vector<64x128xbf16> to vector<64x8xbf16>
    %29 = vector.extract_strided_slice %8 {offsets = [0, 80], sizes = [64, 16], strides = [1, 1]} : vector<64x128xbf16> to vector<64x16xbf16>
    %cst_11 = arith.constant dense<0.000000e+00> : vector<64x64xf32>
    %30 = tpu.matmul %27, %28, %cst_11 {dimension_numbers = #tpu.dot_dimension_numbers<[1], [1], [0], [0], [0, 0, 1, 0], [], []>} : vector<64x8xbf16>, vector<64x8xbf16>, vector<64x64xf32> -> vector<64x64xf32>
    %cst_12 = arith.constant dense<0xFF800000> : vector<64xf32>
    %31 = vector.multi_reduction <maximumf>, %30, %cst_12 [1] : vector<64x64xf32> to vector<64xf32>
    %32 = vector.shape_cast %31 : vector<64xf32> to vector<64x1xf32>
    %33 = vector.broadcast %32 : vector<64x1xf32> to vector<64x64xf32>
    %34 = arith.subf %30, %33 : vector<64x64xf32>
    %35 = math.exp %34 : vector<64x64xf32>
    %cst_13 = arith.constant dense<0.000000e+00> : vector<64xf32>
    %36 = vector.multi_reduction <add>, %35, %cst_13 [1] : vector<64x64xf32> to vector<64xf32>
    %37 = vector.shape_cast %36 : vector<64xf32> to vector<64x1xf32>
    %38 = tpu.reciprocal %37 {approx = true} : vector<64x1xf32> -> vector<64x1xf32>
    %39 = vector.broadcast %38 : vector<64x1xf32> to vector<64x64xf32>
    %40 = arith.mulf %35, %39 : vector<64x64xf32>
    %41 = arith.truncf %40 : vector<64x64xf32> to vector<64x64xbf16>
    %cst_14 = arith.constant dense<0.000000e+00> : vector<64x16xf32>
    %42 = tpu.matmul %41, %29, %cst_14 {dimension_numbers = #tpu.dot_dimension_numbers<[1], [0], [0], [1], [0, 0, 1, 1], [], []>} : vector<64x64xbf16>, vector<64x16xbf16>, vector<64x16xf32> -> vector<64x16xf32>
    %cst_15 = arith.constant 0.000000e+00 : f32
    %43 = vector.broadcast %cst_15 : f32 to vector<64x16xf32>
    %44 = arith.maximumf %42, %43 : vector<64x16xf32>
    %45 = vector.extract_strided_slice %8 {offsets = [0, 16], sizes = [64, 8], strides = [1, 1]} : vector<64x128xbf16> to vector<64x8xbf16>
    %46 = vector.extract_strided_slice %8 {offsets = [0, 48], sizes = [64, 8], strides = [1, 1]} : vector<64x128xbf16> to vector<64x8xbf16>
    %47 = vector.extract_strided_slice %8 {offsets = [0, 96], sizes = [64, 16], strides = [1, 1]} : vector<64x128xbf16> to vector<64x16xbf16>
    %cst_16 = arith.constant dense<0.000000e+00> : vector<64x64xf32>
    %48 = tpu.matmul %45, %46, %cst_16 {dimension_numbers = #tpu.dot_dimension_numbers<[1], [1], [0], [0], [0, 0, 1, 0], [], []>} : vector<64x8xbf16>, vector<64x8xbf16>, vector<64x64xf32> -> vector<64x64xf32>
    %cst_17 = arith.constant dense<0xFF800000> : vector<64xf32>
    %49 = vector.multi_reduction <maximumf>, %48, %cst_17 [1] : vector<64x64xf32> to vector<64xf32>
    %50 = vector.shape_cast %49 : vector<64xf32> to vector<64x1xf32>
    %51 = vector.broadcast %50 : vector<64x1xf32> to vector<64x64xf32>
    %52 = arith.subf %48, %51 : vector<64x64xf32>
    %53 = math.exp %52 : vector<64x64xf32>
    %cst_18 = arith.constant dense<0.000000e+00> : vector<64xf32>
    %54 = vector.multi_reduction <add>, %53, %cst_18 [1] : vector<64x64xf32> to vector<64xf32>
    %55 = vector.shape_cast %54 : vector<64xf32> to vector<64x1xf32>
    %56 = tpu.reciprocal %55 {approx = true} : vector<64x1xf32> -> vector<64x1xf32>
    %57 = vector.broadcast %56 : vector<64x1xf32> to vector<64x64xf32>
    %58 = arith.mulf %53, %57 : vector<64x64xf32>
    %59 = arith.truncf %58 : vector<64x64xf32> to vector<64x64xbf16>
    %cst_19 = arith.constant dense<0.000000e+00> : vector<64x16xf32>
    %60 = tpu.matmul %59, %47, %cst_19 {dimension_numbers = #tpu.dot_dimension_numbers<[1], [0], [0], [1], [0, 0, 1, 1], [], []>} : vector<64x64xbf16>, vector<64x16xbf16>, vector<64x16xf32> -> vector<64x16xf32>
    %cst_20 = arith.constant 0.000000e+00 : f32
    %61 = vector.broadcast %cst_20 : f32 to vector<64x16xf32>
    %62 = arith.maximumf %60, %61 : vector<64x16xf32>
    %63 = vector.extract_strided_slice %8 {offsets = [0, 24], sizes = [64, 8], strides = [1, 1]} : vector<64x128xbf16> to vector<64x8xbf16>
    %64 = vector.extract_strided_slice %8 {offsets = [0, 56], sizes = [64, 8], strides = [1, 1]} : vector<64x128xbf16> to vector<64x8xbf16>
    %65 = vector.extract_strided_slice %8 {offsets = [0, 112], sizes = [64, 16], strides = [1, 1]} : vector<64x128xbf16> to vector<64x16xbf16>
    %cst_21 = arith.constant dense<0.000000e+00> : vector<64x64xf32>
    %66 = tpu.matmul %63, %64, %cst_21 {dimension_numbers = #tpu.dot_dimension_numbers<[1], [1], [0], [0], [0, 0, 1, 0], [], []>} : vector<64x8xbf16>, vector<64x8xbf16>, vector<64x64xf32> -> vector<64x64xf32>
    %cst_22 = arith.constant dense<0xFF800000> : vector<64xf32>
    %67 = vector.multi_reduction <maximumf>, %66, %cst_22 [1] : vector<64x64xf32> to vector<64xf32>
    %68 = vector.shape_cast %67 : vector<64xf32> to vector<64x1xf32>
    %69 = vector.broadcast %68 : vector<64x1xf32> to vector<64x64xf32>
    %70 = arith.subf %66, %69 : vector<64x64xf32>
    %71 = math.exp %70 : vector<64x64xf32>
    %cst_23 = arith.constant dense<0.000000e+00> : vector<64xf32>
    %72 = vector.multi_reduction <add>, %71, %cst_23 [1] : vector<64x64xf32> to vector<64xf32>
    %73 = vector.shape_cast %72 : vector<64xf32> to vector<64x1xf32>
    %74 = tpu.reciprocal %73 {approx = true} : vector<64x1xf32> -> vector<64x1xf32>
    %75 = vector.broadcast %74 : vector<64x1xf32> to vector<64x64xf32>
    %76 = arith.mulf %71, %75 : vector<64x64xf32>
    %77 = arith.truncf %76 : vector<64x64xf32> to vector<64x64xbf16>
    %cst_24 = arith.constant dense<0.000000e+00> : vector<64x16xf32>
    %78 = tpu.matmul %77, %65, %cst_24 {dimension_numbers = #tpu.dot_dimension_numbers<[1], [0], [0], [1], [0, 0, 1, 1], [], []>} : vector<64x64xbf16>, vector<64x16xbf16>, vector<64x16xf32> -> vector<64x16xf32>
    %cst_25 = arith.constant 0.000000e+00 : f32
    %79 = vector.broadcast %cst_25 : f32 to vector<64x16xf32>
    %80 = arith.maximumf %78, %79 : vector<64x16xf32>
    %81 = tpu.concatenate %26, %44, %62, %80 in 1 : vector<64x16xf32>, vector<64x16xf32>, vector<64x16xf32>, vector<64x16xf32> -> vector<64x64xf32>
    %82 = arith.truncf %81 : vector<64x64xf32> to vector<64x64xbf16>
    %c0_26 = arith.constant 0 : index
    %c0_27 = arith.constant 0 : index
    %83 = vector.load %arg4[%c0_26, %c0_27] : memref<64x32xbf16, #tpu.memory_space<vmem>>, vector<64x32xbf16>
    %cst_28 = arith.constant dense<0.000000e+00> : vector<64x32xf32>
    %84 = tpu.matmul %82, %83, %cst_28 {dimension_numbers = #tpu.dot_dimension_numbers<[1], [0], [0], [1], [0, 0, 1, 1], [], []>} : vector<64x64xbf16>, vector<64x32xbf16>, vector<64x32xf32> -> vector<64x32xf32>
    %c0_29 = arith.constant 0 : index
    %c0_30 = arith.constant 0 : index
    %85 = vector.load %arg5[%c0_29, %c0_30] : memref<1x32xf32, #tpu.memory_space<vmem>>, vector<1x32xf32>
    %86 = vector.broadcast %85 : vector<1x32xf32> to vector<64x32xf32>
    %87 = arith.addf %84, %86 : vector<64x32xf32>
    %88 = arith.addf %1, %87 : vector<64x32xf32>
    %89 = arith.truncf %88 : vector<64x32xf32> to vector<64x32xbf16>
    %c0_31 = arith.constant 0 : index
    %c0_32 = arith.constant 0 : index
    %90 = vector.load %arg6[%c0_31, %c0_32] : memref<32x128xbf16, #tpu.memory_space<vmem>>, vector<32x128xbf16>
    %cst_33 = arith.constant dense<0.000000e+00> : vector<64x128xf32>
    %91 = tpu.matmul %89, %90, %cst_33 {dimension_numbers = #tpu.dot_dimension_numbers<[1], [0], [0], [1], [0, 0, 1, 1], [], []>} : vector<64x32xbf16>, vector<32x128xbf16>, vector<64x128xf32> -> vector<64x128xf32>
    %c0_34 = arith.constant 0 : index
    %c0_35 = arith.constant 0 : index
    %92 = vector.load %arg7[%c0_34, %c0_35] : memref<1x128xf32, #tpu.memory_space<vmem>>, vector<1x128xf32>
    %93 = vector.broadcast %92 : vector<1x128xf32> to vector<64x128xf32>
    %94 = arith.addf %91, %93 : vector<64x128xf32>
    %95 = tpu.iota {dimensions = array<i32: 0>} : vector<64x1xi32>
    %c8_i32 = arith.constant 8 : i32
    %c0_i32 = arith.constant 0 : i32
    %96 = arith.cmpi eq, %c8_i32, %c0_i32 : i32
    %c1_i32 = arith.constant 1 : i32
    %97 = arith.select %96, %c1_i32, %c8_i32 : i32
    %98 = vector.broadcast %97 : i32 to vector<64x1xi32>
    %99 = arith.remsi %95, %98 : vector<64x1xi32>
    %c0_i32_36 = arith.constant 0 : i32
    %100 = vector.broadcast %c0_i32_36 : i32 to vector<64x1xi32>
    %101 = arith.cmpi ne, %99, %100 : vector<64x1xi32>
    %c0_i32_37 = arith.constant 0 : i32
    %102 = vector.broadcast %c0_i32_37 : i32 to vector<64x1xi32>
    %103 = arith.cmpi slt, %99, %102 : vector<64x1xi32>
    %c0_i32_38 = arith.constant 0 : i32
    %104 = arith.cmpi slt, %97, %c0_i32_38 : i32
    %105 = vector.broadcast %104 : i1 to vector<64x1xi1>
    %106 = vector.broadcast %105 : vector<64x1xi1> to vector<64x1xi1>
    %107 = arith.xori %103, %106 : vector<64x1xi1>
    %108 = arith.andi %107, %101 : vector<64x1xi1>
    %109 = vector.broadcast %97 : i32 to vector<64x1xi32>
    %110 = arith.addi %99, %109 : vector<64x1xi32>
    %111 = arith.select %108, %110, %99 : vector<64x1xi1>, vector<64x1xi32>
    %c1_i32_39 = arith.constant 1 : i32
    %112 = vector.broadcast %c1_i32_39 : i32 to vector<64x1xi32>
    %113 = arith.cmpi sge, %111, %112 : vector<64x1xi32>
    %cst_40 = arith.constant 1.000000e+00 : f32
    %cst_41 = arith.constant 0.000000e+00 : f32
    %114 = vector.broadcast %cst_40 : f32 to vector<64x1xf32>
    %115 = vector.broadcast %cst_41 : f32 to vector<64x1xf32>
    %116 = arith.select %113, %114, %115 : vector<64x1xi1>, vector<64x1xf32>
    %c6_i32 = arith.constant 6 : i32
    %117 = vector.broadcast %c6_i32 : i32 to vector<64x1xi32>
    %118 = arith.cmpi sle, %111, %117 : vector<64x1xi32>
    %cst_42 = arith.constant 1.000000e+00 : f32
    %cst_43 = arith.constant 0.000000e+00 : f32
    %119 = vector.broadcast %cst_42 : f32 to vector<64x1xf32>
    %120 = vector.broadcast %cst_43 : f32 to vector<64x1xf32>
    %121 = arith.select %118, %119, %120 : vector<64x1xi1>, vector<64x1xf32>
    %c8_i32_44 = arith.constant 8 : i32
    %122 = vector.broadcast %c8_i32_44 : i32 to vector<64x1xi32>
    %123 = arith.cmpi sge, %95, %122 : vector<64x1xi32>
    %cst_45 = arith.constant 1.000000e+00 : f32
    %cst_46 = arith.constant 0.000000e+00 : f32
    %124 = vector.broadcast %cst_45 : f32 to vector<64x1xf32>
    %125 = vector.broadcast %cst_46 : f32 to vector<64x1xf32>
    %126 = arith.select %123, %124, %125 : vector<64x1xi1>, vector<64x1xf32>
    %c56_i32 = arith.constant 56 : i32
    %127 = vector.broadcast %c56_i32 : i32 to vector<64x1xi32>
    %128 = arith.cmpi slt, %95, %127 : vector<64x1xi32>
    %cst_47 = arith.constant 1.000000e+00 : f32
    %cst_48 = arith.constant 0.000000e+00 : f32
    %129 = vector.broadcast %cst_47 : f32 to vector<64x1xf32>
    %130 = vector.broadcast %cst_48 : f32 to vector<64x1xf32>
    %131 = arith.select %128, %129, %130 : vector<64x1xi1>, vector<64x1xf32>
    %c0_49 = arith.constant 0 : index
    %c0_50 = arith.constant 0 : index
    %132 = vector.load %arg8[%c0_49, %c0_50] : memref<9x128xf32, #tpu.memory_space<vmem>>, vector<9x128xf32>
    %cst_51 = arith.constant 0.000000e+00 : f32
    %133 = vector.broadcast %cst_51 : f32 to vector<64x128xf32>
    %134 = vector.extract_strided_slice %94 {offsets = [56, 0], sizes = [8, 128], strides = [1, 1]} : vector<64x128xf32> to vector<8x128xf32>
    %135 = vector.extract_strided_slice %94 {offsets = [0, 0], sizes = [56, 128], strides = [1, 1]} : vector<64x128xf32> to vector<56x128xf32>
    %136 = tpu.concatenate %134, %135 in 0 : vector<8x128xf32>, vector<56x128xf32> -> vector<64x128xf32>
    %137 = vector.broadcast %126 : vector<64x1xf32> to vector<64x128xf32>
    %138 = arith.mulf %136, %137 : vector<64x128xf32>
    %139 = vector.extract_strided_slice %132 {offsets = [1, 0], sizes = [1, 128], strides = [1, 1]} : vector<9x128xf32> to vector<1x128xf32>
    %140 = vector.broadcast %139 : vector<1x128xf32> to vector<64x128xf32>
    %141 = arith.mulf %138, %140 : vector<64x128xf32>
    %142 = arith.addf %133, %141 : vector<64x128xf32>
    %143 = vector.extract_strided_slice %138 {offsets = [63, 0], sizes = [1, 128], strides = [1, 1]} : vector<64x128xf32> to vector<1x128xf32>
    %144 = vector.extract_strided_slice %138 {offsets = [0, 0], sizes = [63, 128], strides = [1, 1]} : vector<64x128xf32> to vector<63x128xf32>
    %145 = tpu.concatenate %143, %144 in 0 : vector<1x128xf32>, vector<63x128xf32> -> vector<64x128xf32>
    %146 = vector.broadcast %116 : vector<64x1xf32> to vector<64x128xf32>
    %147 = arith.mulf %145, %146 : vector<64x128xf32>
    %148 = vector.extract_strided_slice %132 {offsets = [0, 0], sizes = [1, 128], strides = [1, 1]} : vector<9x128xf32> to vector<1x128xf32>
    %149 = vector.broadcast %148 : vector<1x128xf32> to vector<64x128xf32>
    %150 = arith.mulf %147, %149 : vector<64x128xf32>
    %151 = arith.addf %142, %150 : vector<64x128xf32>
    %152 = vector.extract_strided_slice %138 {offsets = [1, 0], sizes = [63, 128], strides = [1, 1]} : vector<64x128xf32> to vector<63x128xf32>
    %153 = vector.extract_strided_slice %138 {offsets = [0, 0], sizes = [1, 128], strides = [1, 1]} : vector<64x128xf32> to vector<1x128xf32>
    %154 = tpu.concatenate %152, %153 in 0 : vector<63x128xf32>, vector<1x128xf32> -> vector<64x128xf32>
    %155 = vector.broadcast %121 : vector<64x1xf32> to vector<64x128xf32>
    %156 = arith.mulf %154, %155 : vector<64x128xf32>
    %157 = vector.extract_strided_slice %132 {offsets = [2, 0], sizes = [1, 128], strides = [1, 1]} : vector<9x128xf32> to vector<1x128xf32>
    %158 = vector.broadcast %157 : vector<1x128xf32> to vector<64x128xf32>
    %159 = arith.mulf %156, %158 : vector<64x128xf32>
    %160 = arith.addf %151, %159 : vector<64x128xf32>
    %161 = vector.extract_strided_slice %132 {offsets = [4, 0], sizes = [1, 128], strides = [1, 1]} : vector<9x128xf32> to vector<1x128xf32>
    %162 = vector.broadcast %161 : vector<1x128xf32> to vector<64x128xf32>
    %163 = arith.mulf %94, %162 : vector<64x128xf32>
    %164 = arith.addf %160, %163 : vector<64x128xf32>
    %165 = vector.extract_strided_slice %94 {offsets = [63, 0], sizes = [1, 128], strides = [1, 1]} : vector<64x128xf32> to vector<1x128xf32>
    %166 = vector.extract_strided_slice %94 {offsets = [0, 0], sizes = [63, 128], strides = [1, 1]} : vector<64x128xf32> to vector<63x128xf32>
    %167 = tpu.concatenate %165, %166 in 0 : vector<1x128xf32>, vector<63x128xf32> -> vector<64x128xf32>
    %168 = vector.broadcast %116 : vector<64x1xf32> to vector<64x128xf32>
    %169 = arith.mulf %167, %168 : vector<64x128xf32>
    %170 = vector.extract_strided_slice %132 {offsets = [3, 0], sizes = [1, 128], strides = [1, 1]} : vector<9x128xf32> to vector<1x128xf32>
    %171 = vector.broadcast %170 : vector<1x128xf32> to vector<64x128xf32>
    %172 = arith.mulf %169, %171 : vector<64x128xf32>
    %173 = arith.addf %164, %172 : vector<64x128xf32>
    %174 = vector.extract_strided_slice %94 {offsets = [1, 0], sizes = [63, 128], strides = [1, 1]} : vector<64x128xf32> to vector<63x128xf32>
    %175 = vector.extract_strided_slice %94 {offsets = [0, 0], sizes = [1, 128], strides = [1, 1]} : vector<64x128xf32> to vector<1x128xf32>
    %176 = tpu.concatenate %174, %175 in 0 : vector<63x128xf32>, vector<1x128xf32> -> vector<64x128xf32>
    %177 = vector.broadcast %121 : vector<64x1xf32> to vector<64x128xf32>
    %178 = arith.mulf %176, %177 : vector<64x128xf32>
    %179 = vector.extract_strided_slice %132 {offsets = [5, 0], sizes = [1, 128], strides = [1, 1]} : vector<9x128xf32> to vector<1x128xf32>
    %180 = vector.broadcast %179 : vector<1x128xf32> to vector<64x128xf32>
    %181 = arith.mulf %178, %180 : vector<64x128xf32>
    %182 = arith.addf %173, %181 : vector<64x128xf32>
    %183 = vector.extract_strided_slice %94 {offsets = [8, 0], sizes = [56, 128], strides = [1, 1]} : vector<64x128xf32> to vector<56x128xf32>
    %184 = vector.extract_strided_slice %94 {offsets = [0, 0], sizes = [8, 128], strides = [1, 1]} : vector<64x128xf32> to vector<8x128xf32>
    %185 = tpu.concatenate %183, %184 in 0 : vector<56x128xf32>, vector<8x128xf32> -> vector<64x128xf32>
    %186 = vector.broadcast %131 : vector<64x1xf32> to vector<64x128xf32>
    %187 = arith.mulf %185, %186 : vector<64x128xf32>
    %188 = vector.extract_strided_slice %132 {offsets = [7, 0], sizes = [1, 128], strides = [1, 1]} : vector<9x128xf32> to vector<1x128xf32>
    %189 = vector.broadcast %188 : vector<1x128xf32> to vector<64x128xf32>
    %190 = arith.mulf %187, %189 : vector<64x128xf32>
    %191 = arith.addf %182, %190 : vector<64x128xf32>
    %192 = vector.extract_strided_slice %187 {offsets = [63, 0], sizes = [1, 128], strides = [1, 1]} : vector<64x128xf32> to vector<1x128xf32>
    %193 = vector.extract_strided_slice %187 {offsets = [0, 0], sizes = [63, 128], strides = [1, 1]} : vector<64x128xf32> to vector<63x128xf32>
    %194 = tpu.concatenate %192, %193 in 0 : vector<1x128xf32>, vector<63x128xf32> -> vector<64x128xf32>
    %195 = vector.broadcast %116 : vector<64x1xf32> to vector<64x128xf32>
    %196 = arith.mulf %194, %195 : vector<64x128xf32>
    %197 = vector.extract_strided_slice %132 {offsets = [6, 0], sizes = [1, 128], strides = [1, 1]} : vector<9x128xf32> to vector<1x128xf32>
    %198 = vector.broadcast %197 : vector<1x128xf32> to vector<64x128xf32>
    %199 = arith.mulf %196, %198 : vector<64x128xf32>
    %200 = arith.addf %191, %199 : vector<64x128xf32>
    %201 = vector.extract_strided_slice %187 {offsets = [1, 0], sizes = [63, 128], strides = [1, 1]} : vector<64x128xf32> to vector<63x128xf32>
    %202 = vector.extract_strided_slice %187 {offsets = [0, 0], sizes = [1, 128], strides = [1, 1]} : vector<64x128xf32> to vector<1x128xf32>
    %203 = tpu.concatenate %201, %202 in 0 : vector<63x128xf32>, vector<1x128xf32> -> vector<64x128xf32>
    %204 = vector.broadcast %121 : vector<64x1xf32> to vector<64x128xf32>
    %205 = arith.mulf %203, %204 : vector<64x128xf32>
    %206 = vector.extract_strided_slice %132 {offsets = [8, 0], sizes = [1, 128], strides = [1, 1]} : vector<9x128xf32> to vector<1x128xf32>
    %207 = vector.broadcast %206 : vector<1x128xf32> to vector<64x128xf32>
    %208 = arith.mulf %205, %207 : vector<64x128xf32>
    %209 = arith.addf %200, %208 : vector<64x128xf32>
    %c0_52 = arith.constant 0 : index
    %c0_53 = arith.constant 0 : index
    %210 = vector.load %arg9[%c0_52, %c0_53] : memref<1x128xf32, #tpu.memory_space<vmem>>, vector<1x128xf32>
    %211 = vector.broadcast %210 : vector<1x128xf32> to vector<64x128xf32>
    %212 = arith.addf %209, %211 : vector<64x128xf32>
    %cst_54 = arith.constant 0.000000e+00 : f32
    %213 = vector.broadcast %cst_54 : f32 to vector<64x128xf32>
    %214 = arith.maximumf %212, %213 : vector<64x128xf32>
    %215 = arith.truncf %214 : vector<64x128xf32> to vector<64x128xbf16>
    %c0_55 = arith.constant 0 : index
    %c0_56 = arith.constant 0 : index
    %216 = vector.load %arg10[%c0_55, %c0_56] : memref<128x32xbf16, #tpu.memory_space<vmem>>, vector<128x32xbf16>
    %cst_57 = arith.constant dense<0.000000e+00> : vector<64x32xf32>
    %217 = tpu.matmul %215, %216, %cst_57 {dimension_numbers = #tpu.dot_dimension_numbers<[1], [0], [0], [1], [0, 0, 1, 1], [], []>} : vector<64x128xbf16>, vector<128x32xbf16>, vector<64x32xf32> -> vector<64x32xf32>
    %c0_58 = arith.constant 0 : index
    %c0_59 = arith.constant 0 : index
    %218 = vector.load %arg11[%c0_58, %c0_59] : memref<1x32xf32, #tpu.memory_space<vmem>>, vector<1x32xf32>
    %219 = vector.broadcast %218 : vector<1x32xf32> to vector<64x32xf32>
    %220 = arith.addf %217, %219 : vector<64x32xf32>
    %221 = arith.addf %88, %220 : vector<64x32xf32>
    %c0_60 = arith.constant 0 : index
    %c0_61 = arith.constant 0 : index
    %c0_62 = arith.constant 0 : index
    %222 = vector.load %arg12[%c0_60, %c0_61, %c0_62] : memref<1x64x32xf32, #tpu.memory_space<vmem>>, vector<1x64x32xf32>
    %223 = vector.shape_cast %222 : vector<1x64x32xf32> to vector<64x32xf32>
    %224 = vector.shape_cast %221 : vector<64x32xf32> to vector<1x64x32xf32>
    tpu.vector_store %arg12[%c0_60, %c0_61, %c0_62], %224 {strides = array<i32>} : memref<1x64x32xf32, #tpu.memory_space<vmem>>, vector<1x64x32xf32>,
    return
  }
  func.func @transform_0(%arg0: i32) -> (i32, i32, i32) {
    %c0_i32 = arith.constant 0 : i32
    %c0_i32_0 = arith.constant 0 : i32
    %c0_i32_1 = arith.constant 0 : i32
    return %arg0, %c0_i32, %c0_i32_0 : i32, i32, i32
  }
  func.func @transform_1(%arg0: i32) -> (i32, i32) {
    %c0_i32 = arith.constant 0 : i32
    %c0_i32_0 = arith.constant 0 : i32
    %c0_i32_1 = arith.constant 0 : i32
    return %c0_i32, %c0_i32_0 : i32, i32
  }
  func.func @transform_2(%arg0: i32) -> (i32, i32) {
    %c0_i32 = arith.constant 0 : i32
    %c0_i32_0 = arith.constant 0 : i32
    %c0_i32_1 = arith.constant 0 : i32
    return %c0_i32, %c0_i32_0 : i32, i32
  }
  func.func @transform_3(%arg0: i32) -> (i32, i32) {
    %c0_i32 = arith.constant 0 : i32
    %c0_i32_0 = arith.constant 0 : i32
    %c0_i32_1 = arith.constant 0 : i32
    return %c0_i32, %c0_i32_0 : i32, i32
  }
  func.func @transform_4(%arg0: i32) -> (i32, i32) {
    %c0_i32 = arith.constant 0 : i32
    %c0_i32_0 = arith.constant 0 : i32
    %c0_i32_1 = arith.constant 0 : i32
    return %c0_i32, %c0_i32_0 : i32, i32
  }
  func.func @transform_5(%arg0: i32) -> (i32, i32) {
    %c0_i32 = arith.constant 0 : i32
    %c0_i32_0 = arith.constant 0 : i32
    %c0_i32_1 = arith.constant 0 : i32
    return %c0_i32, %c0_i32_0 : i32, i32
  }
  func.func @transform_6(%arg0: i32) -> (i32, i32) {
    %c0_i32 = arith.constant 0 : i32
    %c0_i32_0 = arith.constant 0 : i32
    %c0_i32_1 = arith.constant 0 : i32
    return %c0_i32, %c0_i32_0 : i32, i32
  }
  func.func @transform_7(%arg0: i32) -> (i32, i32) {
    %c0_i32 = arith.constant 0 : i32
    %c0_i32_0 = arith.constant 0 : i32
    %c0_i32_1 = arith.constant 0 : i32
    return %c0_i32, %c0_i32_0 : i32, i32
  }
  func.func @transform_8(%arg0: i32) -> (i32, i32) {
    %c0_i32 = arith.constant 0 : i32
    %c0_i32_0 = arith.constant 0 : i32
    %c0_i32_1 = arith.constant 0 : i32
    return %c0_i32, %c0_i32_0 : i32, i32
  }
  func.func @transform_9(%arg0: i32) -> (i32, i32) {
    %c0_i32 = arith.constant 0 : i32
    %c0_i32_0 = arith.constant 0 : i32
    %c0_i32_1 = arith.constant 0 : i32
    return %c0_i32, %c0_i32_0 : i32, i32
  }
  func.func @transform_10(%arg0: i32) -> (i32, i32) {
    %c0_i32 = arith.constant 0 : i32
    %c0_i32_0 = arith.constant 0 : i32
    %c0_i32_1 = arith.constant 0 : i32
    return %c0_i32, %c0_i32_0 : i32, i32
  }
  func.func @transform_11(%arg0: i32) -> (i32, i32, i32) {
    %c0_i32 = arith.constant 0 : i32
    %c0_i32_0 = arith.constant 0 : i32
    %c0_i32_1 = arith.constant 0 : i32
    return %arg0, %c0_i32, %c0_i32_0 : i32, i32, i32
  }
}

</mosaic_0001>

<llo_original>
// kernel: tpu_custom_call.1
$region0: #{tpu_custom_call.1}
  #allocation0 [shape = 'u32[]', space=smem, size = 0x4, offset = 0x4, fixed_abs, tag = 'smem constant byte address 0x4 - core index']
  #allocation1 [shape = 'u32[144,128]{1,0:T(1,128)}', space=vmem, size = 0x12000, scoped, tag = 'internal scratch']
  %s0 = inlined_call_operand.vmem [shape: f32[2,64,32], index: 0, kind: input, shape index: {}]
  %s1 = inlined_call_operand.vmem [shape: bf16[32,128], index: 1, kind: input, shape index: {}]
  %s2 = inlined_call_operand.vmem [shape: f32[1,128], index: 2, kind: input, shape index: {}]
  %s3 = inlined_call_operand.vmem [shape: bf16[64,32], index: 3, kind: input, shape index: {}]
  %s4 = inlined_call_operand.vmem [shape: f32[1,32], index: 4, kind: input, shape index: {}]
  %s5 = inlined_call_operand.vmem [shape: bf16[32,128], index: 5, kind: input, shape index: {}]
  %s6 = inlined_call_operand.vmem [shape: f32[1,128], index: 6, kind: input, shape index: {}]
  %s7 = inlined_call_operand.vmem [shape: f32[9,128], index: 7, kind: input, shape index: {}]
  %s8 = inlined_call_operand.vmem [shape: f32[1,128], index: 8, kind: input, shape index: {}]
  %s9 = inlined_call_operand.vmem [shape: bf16[128,32], index: 9, kind: input, shape index: {}]
  %s10 = inlined_call_operand.vmem [shape: f32[1,32], index: 10, kind: input, shape index: {}]
  %s11 = inlined_call_operand.vmem [shape: f32[2,64,32], index: 11, kind: output, shape index: {}]
  %s12 = sld [smem:[#allocation0]]
  $region77: #{tpu_custom_call.1} parent=0
    _
  %s14 = ssub.s32 1, %s12
  %s15 = scalar_select 0, %s14, %s12
  loop: start=0, step=1, limit=4
  $region2: #{tpu_custom_call.1} parent=0 // loop_pre_header
    _
  $region3: #{tpu_custom_call.1} parent=0 // loop_header
    %s17 = sphi 0, %s21
    %p18 = scmp.ge.s32.totalorder %s17, 4
    %s27 = sphi 0, %s29
    %s30 = sphi 0, %s27
    %s31 = sphi 0, %s30
    %s47 = sphi 0, %s31
    %s51 = sphi 0, %s51
    %s53 = sphi 0, %s51
    %s54 = sphi 0, %s53
    %s68 = sphi 0, %s54
    %s72 = sphi 0, %s72
    %s74 = sphi 0, %s72
    %s75 = sphi 0, %s74
    %s89 = sphi 0, %s75
    %s93 = sphi 0, %s93
    %s95 = sphi 0, %s93
    %s96 = sphi 0, %s95
    %s110 = sphi 0, %s96
    %s114 = sphi 0, %s114
    %s116 = sphi 0, %s114
    %s117 = sphi 0, %s116
    %s131 = sphi 0, %s117
    %s135 = sphi 0, %s135
    %s137 = sphi 0, %s135
    %s138 = sphi 0, %s137
    %s152 = sphi 0, %s138
    %s156 = sphi 0, %s156
    %s158 = sphi 0, %s156
    %s159 = sphi 0, %s158
    %s173 = sphi 0, %s159
    %s177 = sphi 0, %s177
    %s179 = sphi 0, %s177
    %s180 = sphi 0, %s179
    %s194 = sphi 0, %s180
    %s198 = sphi 0, %s198
    %s200 = sphi 0, %s198
    %s201 = sphi 0, %s200
    %s215 = sphi 0, %s201
    %s219 = sphi 0, %s219
    %s221 = sphi 0, %s219
    %s222 = sphi 0, %s221
    %s236 = sphi 0, %s222
    %s240 = sphi 0, %s240
    %s242 = sphi 0, %s240
    %s243 = sphi 0, %s242
    %s257 = sphi 0, %s243
    %s263 = sphi 0, %s265
    %s266 = sphi 0, %s263
    %s267 = sphi 0, %s266
    %s283 = sphi 0, %s267
  $region4: #{tpu_custom_call.1} parent=0 // loop_header_branch
    %20 = sbr.rel (%p18) target = $region8
  $region5: #{tpu_custom_call.1} parent=0 // loop_body
    %s22 = ssub.s32 %s17, 1
    %s23 = ssub.s32 %s17, 2
    %s24 = sadd.s32 %s17, 1
    %s25 = ssub.s32 %s17, %s24
    %p26 = scmp.eq.s32.totalorder %s25, 0
    %s28 = sadd.s32 %s27, 1
    %s29 = scalar_select %p26, %s27, %s28
    %p32 = pneg %p26
    %p33 = scmp.eq.s32.totalorder %s17, 1
    %p34 = por %p32, %p33
    %p35 = scmp.ne.s32.totalorder %s27, %s30
    %p36 = scmp.eq.s32.totalorder %s17, 0
    %p37 = por %p35, %p36
    %p38 = scmp.ne.s32.totalorder %s27, %s30
    %p39 = scmp.eq.s32.totalorder %s22, 1
    %p40 = por %p38, %p39
    %p41 = scmp.ne.s32.totalorder %s30, %s31
    %p42 = scmp.eq.s32.totalorder %s22, 0
    %p43 = por %p41, %p42
    %p44 = scmp.ne.s32.totalorder %s30, %s31
    %p45 = scmp.eq.s32.totalorder %s23, 1
    %p46 = por %p44, %p45
    %p48 = scmp.ne.s32.totalorder %s31, %s47
    %p49 = scmp.eq.s32.totalorder %s23, 0
    %p50 = por %p48, %p49
    %s52 = sadd.s32 %s51, 1
    %p55 = scmp.eq.s32.totalorder %s17, 1
    %p56 = scmp.ne.s32.totalorder %s51, %s53
    %p57 = scmp.eq.s32.totalorder %s17, 0
    %p58 = por %p56, %p57
    %p59 = scmp.ne.s32.totalorder %s51, %s53
    %p60 = scmp.eq.s32.totalorder %s22, 1
    %p61 = por %p59, %p60
    %p62 = scmp.ne.s32.totalorder %s53, %s54
    %p63 = scmp.eq.s32.totalorder %s22, 0
    %p64 = por %p62, %p63
    %p65 = scmp.ne.s32.totalorder %s53, %s54
    %p66 = scmp.eq.s32.totalorder %s23, 1
    %p67 = por %p65, %p66
    %p69 = scmp.ne.s32.totalorder %s54, %s68
    %p70 = scmp.eq.s32.totalorder %s23, 0
    %p71 = por %p69, %p70
    %s73 = sadd.s32 %s72, 1
    %p76 = scmp.eq.s32.totalorder %s17, 1
    %p77 = scmp.ne.s32.totalorder %s72, %s74
    %p78 = scmp.eq.s32.totalorder %s17, 0
    %p79 = por %p77, %p78
    %p80 = scmp.ne.s32.totalorder %s72, %s74
    %p81 = scmp.eq.s32.totalorder %s22, 1
    %p82 = por %p80, %p81
    %p83 = scmp.ne.s32.totalorder %s74, %s75
    %p84 = scmp.eq.s32.totalorder %s22, 0
    %p85 = por %p83, %p84
    %p86 = scmp.ne.s32.totalorder %s74, %s75
    %p87 = scmp.eq.s32.totalorder %s23, 1
    %p88 = por %p86, %p87
    %p90 = scmp.ne.s32.totalorder %s75, %s89
    %p91 = scmp.eq.s32.totalorder %s23, 0
    %p92 = por %p90, %p91
    %s94 = sadd.s32 %s93, 1
    %p97 = scmp.eq.s32.totalorder %s17, 1
    %p98 = scmp.ne.s32.totalorder %s93, %s95
    %p99 = scmp.eq.s32.totalorder %s17, 0
    %p100 = por %p98, %p99
    %p101 = scmp.ne.s32.totalorder %s93, %s95
    %p102 = scmp.eq.s32.totalorder %s22, 1
    %p103 = por %p101, %p102
    %p104 = scmp.ne.s32.totalorder %s95, %s96
    %p105 = scmp.eq.s32.totalorder %s22, 0
    %p106 = por %p104, %p105
    %p107 = scmp.ne.s32.totalorder %s95, %s96
    %p108 = scmp.eq.s32.totalorder %s23, 1
    %p109 = por %p107, %p108
    %p111 = scmp.ne.s32.totalorder %s96, %s110
    %p112 = scmp.eq.s32.totalorder %s23, 0
    %p113 = por %p111, %p112
    %s115 = sadd.s32 %s114, 1
    %p118 = scmp.eq.s32.totalorder %s17, 1
    %p119 = scmp.ne.s32.totalorder %s114, %s116
    %p120 = scmp.eq.s32.totalorder %s17, 0
    %p121 = por %p119, %p120
    %p122 = scmp.ne.s32.totalorder %s114, %s116
    %p123 = scmp.eq.s32.totalorder %s22, 1
    %p124 = por %p122, %p123
    %p125 = scmp.ne.s32.totalorder %s116, %s117
    %p126 = scmp.eq.s32.totalorder %s22, 0
    %p127 = por %p125, %p126
    %p128 = scmp.ne.s32.totalorder %s116, %s117
    %p129 = scmp.eq.s32.totalorder %s23, 1
    %p130 = por %p128, %p129
    %p132 = scmp.ne.s32.totalorder %s117, %s131
    %p133 = scmp.eq.s32.totalorder %s23, 0
    %p134 = por %p132, %p133
    %s136 = sadd.s32 %s135, 1
    %p139 = scmp.eq.s32.totalorder %s17, 1
    %p140 = scmp.ne.s32.totalorder %s135, %s137
    %p141 = scmp.eq.s32.totalorder %s17, 0
    %p142 = por %p140, %p141
    %p143 = scmp.ne.s32.totalorder %s135, %s137
    %p144 = scmp.eq.s32.totalorder %s22, 1
    %p145 = por %p143, %p144
    %p146 = scmp.ne.s32.totalorder %s137, %s138
    %p147 = scmp.eq.s32.totalorder %s22, 0
    %p148 = por %p146, %p147
    %p149 = scmp.ne.s32.totalorder %s137, %s138
    %p150 = scmp.eq.s32.totalorder %s23, 1
    %p151 = por %p149, %p150
    %p153 = scmp.ne.s32.totalorder %s138, %s152
    %p154 = scmp.eq.s32.totalorder %s23, 0
    %p155 = por %p153, %p154
    %s157 = sadd.s32 %s156, 1
    %p160 = scmp.eq.s32.totalorder %s17, 1
    %p161 = scmp.ne.s32.totalorder %s156, %s158
    %p162 = scmp.eq.s32.totalorder %s17, 0
    %p163 = por %p161, %p162
    %p164 = scmp.ne.s32.totalorder %s156, %s158
    %p165 = scmp.eq.s32.totalorder %s22, 1
    %p166 = por %p164, %p165
    %p167 = scmp.ne.s32.totalorder %s158, %s159
    %p168 = scmp.eq.s32.totalorder %s22, 0
    %p169 = por %p167, %p168
    %p170 = scmp.ne.s32.totalorder %s158, %s159
    %p171 = scmp.eq.s32.totalorder %s23, 1
    %p172 = por %p170, %p171
    %p174 = scmp.ne.s32.totalorder %s159, %s173
    %p175 = scmp.eq.s32.totalorder %s23, 0
    %p176 = por %p174, %p175
    %s178 = sadd.s32 %s177, 1
    %p181 = scmp.eq.s32.totalorder %s17, 1
    %p182 = scmp.ne.s32.totalorder %s177, %s179
    %p183 = scmp.eq.s32.totalorder %s17, 0
    %p184 = por %p182, %p183
    %p185 = scmp.ne.s32.totalorder %s177, %s179
    %p186 = scmp.eq.s32.totalorder %s22, 1
    %p187 = por %p185, %p186
    %p188 = scmp.ne.s32.totalorder %s179, %s180
    %p189 = scmp.eq.s32.totalorder %s22, 0
    %p190 = por %p188, %p189
    %p191 = scmp.ne.s32.totalorder %s179, %s180
    %p192 = scmp.eq.s32.totalorder %s23, 1
    %p193 = por %p191, %p192
    %p195 = scmp.ne.s32.totalorder %s180, %s194
    %p196 = scmp.eq.s32.totalorder %s23, 0
    %p197 = por %p195, %p196
    %s199 = sadd.s32 %s198, 1
    %p202 = scmp.eq.s32.totalorder %s17, 1
    %p203 = scmp.ne.s32.totalorder %s198, %s200
    %p204 = scmp.eq.s32.totalorder %s17, 0
    %p205 = por %p203, %p204
    %p206 = scmp.ne.s32.totalorder %s198, %s200
    %p207 = scmp.eq.s32.totalorder %s22, 1
    %p208 = por %p206, %p207
    %p209 = scmp.ne.s32.totalorder %s200, %s201
    %p210 = scmp.eq.s32.totalorder %s22, 0
    %p211 = por %p209, %p210
    %p212 = scmp.ne.s32.totalorder %s200, %s201
    %p213 = scmp.eq.s32.totalorder %s23, 1
    %p214 = por %p212, %p213
    %p216 = scmp.ne.s32.totalorder %s201, %s215
    %p217 = scmp.eq.s32.totalorder %s23, 0
    %p218 = por %p216, %p217
    %s220 = sadd.s32 %s219, 1
    %p223 = scmp.eq.s32.totalorder %s17, 1
    %p224 = scmp.ne.s32.totalorder %s219, %s221
    %p225 = scmp.eq.s32.totalorder %s17, 0
    %p226 = por %p224, %p225
    %p227 = scmp.ne.s32.totalorder %s219, %s221
    %p228 = scmp.eq.s32.totalorder %s22, 1
    %p229 = por %p227, %p228
    %p230 = scmp.ne.s32.totalorder %s221, %s222
    %p231 = scmp.eq.s32.totalorder %s22, 0
    %p232 = por %p230, %p231
    %p233 = scmp.ne.s32.totalorder %s221, %s222
    %p234 = scmp.eq.s32.totalorder %s23, 1
    %p235 = por %p233, %p234
    %p237 = scmp.ne.s32.totalorder %s222, %s236
    %p238 = scmp.eq.s32.totalorder %s23, 0
    %p239 = por %p237, %p238
    %s241 = sadd.s32 %s240, 1
    %p244 = scmp.eq.s32.totalorder %s17, 1
    %p245 = scmp.ne.s32.totalorder %s240, %s242
    %p246 = scmp.eq.s32.totalorder %s17, 0
    %p247 = por %p245, %p246
    %p248 = scmp.ne.s32.totalorder %s240, %s242
    %p249 = scmp.eq.s32.totalorder %s22, 1
    %p250 = por %p248, %p249
    %p251 = scmp.ne.s32.totalorder %s242, %s243
    %p252 = scmp.eq.s32.totalorder %s22, 0
    %p253 = por %p251, %p252
    %p254 = scmp.ne.s32.totalorder %s242, %s243
    %p255 = scmp.eq.s32.totalorder %s23, 1
    %p256 = por %p254, %p255
    %p258 = scmp.ne.s32.totalorder %s243, %s257
    %p259 = scmp.eq.s32.totalorder %s23, 0
    %p260 = por %p258, %p259
    %s261 = ssub.s32 %s17, %s24
    %p262 = scmp.eq.s32.totalorder %s261, 0
    %s264 = sadd.s32 %s263, 1
    %s265 = scalar_select %p262, %s263, %s264
    %p268 = pneg %p262
    %p269 = scmp.eq.s32.totalorder %s17, 1
    %p270 = por %p268, %p269
    %p271 = scmp.ne.s32.totalorder %s263, %s266
    %p272 = scmp.eq.s32.totalorder %s17, 0
    %p273 = por %p271, %p272
    %p274 = scmp.ne.s32.totalorder %s263, %s266
    %p275 = scmp.eq.s32.totalorder %s22, 1
    %p276 = por %p274, %p275
    %p277 = scmp.ne.s32.totalorder %s266, %s267
    %p278 = scmp.eq.s32.totalorder %s22, 0
    %p279 = por %p277, %p278
    %p280 = scmp.ne.s32.totalorder %s266, %s267
    %p281 = scmp.eq.s32.totalorder %s23, 1
    %p282 = por %p280, %p281
    %p284 = scmp.ne.s32.totalorder %s267, %s283
    %p285 = scmp.eq.s32.totalorder %s23, 0
    %p286 = por %p284, %p285
    %p287 = scmp.le.s32.totalorder 1, %s17
    %p288 = scmp.lt.s32.totalorder %s17, 3
    %p289 = pnand %p287, %p288
    %p290 = pneg %p289
    // Predicated region
    $region9: #{tpu_custom_call.1} parent=5 // pred_check
      _
    $region10: #{tpu_custom_call.1} parent=5 // pred_check_branch
      %292 = sbr.rel (%p289) target = $region12
    $region11: #{tpu_custom_call.1} parent=5 // pred_region
      %s293 = ssub.s32 %s17, 1
      // Predicated region
      $region13: #{tpu_custom_call.1} parent=11 // pred_check
        %p294 = pneg %p64
      $region14: #{tpu_custom_call.1} parent=11 // pred_check_branch
        %296 = sbr.rel (%p294) target = $region16
      $region15: #{tpu_custom_call.1} parent=11 // pred_region
        _
      $region16: #{tpu_custom_call.1} parent=11 // pred_fallthru
        _
      // Predicated region
      $region17: #{tpu_custom_call.1} parent=11 // pred_check
        %p297 = pneg %p85
      $region18: #{tpu_custom_call.1} parent=11 // pred_check_branch
        %299 = sbr.rel (%p297) target = $region20
      $region19: #{tpu_custom_call.1} parent=11 // pred_region
        _
      $region20: #{tpu_custom_call.1} parent=11 // pred_fallthru
        _
      // Predicated region
      $region21: #{tpu_custom_call.1} parent=11 // pred_check
        %p300 = pneg %p106
      $region22: #{tpu_custom_call.1} parent=11 // pred_check_branch
        %302 = sbr.rel (%p300) target = $region24
      $region23: #{tpu_custom_call.1} parent=11 // pred_region
        _
      $region24: #{tpu_custom_call.1} parent=11 // pred_fallthru
        _
      // Predicated region
      $region25: #{tpu_custom_call.1} parent=11 // pred_check
        %p303 = pneg %p127
      $region26: #{tpu_custom_call.1} parent=11 // pred_check_branch
        %305 = sbr.rel (%p303) target = $region28
      $region27: #{tpu_custom_call.1} parent=11 // pred_region
        _
      $region28: #{tpu_custom_call.1} parent=11 // pred_fallthru
        _
      // Predicated region
      $region29: #{tpu_custom_call.1} parent=11 // pred_check
        %p306 = pneg %p148
      $region30: #{tpu_custom_call.1} parent=11 // pred_check_branch
        %308 = sbr.rel (%p306) target = $region32
      $region31: #{tpu_custom_call.1} parent=11 // pred_region
        _
      $region32: #{tpu_custom_call.1} parent=11 // pred_fallthru
        _
      // Predicated region
      $region33: #{tpu_custom_call.1} parent=11 // pred_check
        %p309 = pneg %p169
      $region34: #{tpu_custom_call.1} parent=11 // pred_check_branch
        %311 = sbr.rel (%p309) target = $region36
      $region35: #{tpu_custom_call.1} parent=11 // pred_region
        _
      $region36: #{tpu_custom_call.1} parent=11 // pred_fallthru
        _
      // Predicated region
      $region37: #{tpu_custom_call.1} parent=11 // pred_check
        %p312 = pneg %p190
      $region38: #{tpu_custom_call.1} parent=11 // pred_check_branch
        %314 = sbr.rel (%p312) target = $region40
      $region39: #{tpu_custom_call.1} parent=11 // pred_region
        _
      $region40: #{tpu_custom_call.1} parent=11 // pred_fallthru
        _
      // Predicated region
      $region41: #{tpu_custom_call.1} parent=11 // pred_check
        %p315 = pneg %p211
      $region42: #{tpu_custom_call.1} parent=11 // pred_check_branch
        %317 = sbr.rel (%p315) target = $region44
      $region43: #{tpu_custom_call.1} parent=11 // pred_region
        _
      $region44: #{tpu_custom_call.1} parent=11 // pred_fallthru
        _
      // Predicated region
      $region45: #{tpu_custom_call.1} parent=11 // pred_check
        %p318 = pneg %p232
      $region46: #{tpu_custom_call.1} parent=11 // pred_check_branch
        %320 = sbr.rel (%p318) target = $region48
      $region47: #{tpu_custom_call.1} parent=11 // pred_region
        _
      $region48: #{tpu_custom_call.1} parent=11 // pred_fallthru
        _
      // Predicated region
      $region49: #{tpu_custom_call.1} parent=11 // pred_check
        %p321 = pneg %p253
      $region50: #{tpu_custom_call.1} parent=11 // pred_check_branch
        %323 = sbr.rel (%p321) target = $region52
      $region51: #{tpu_custom_call.1} parent=11 // pred_region
        _
      $region52: #{tpu_custom_call.1} parent=11 // pred_fallthru
        _
    $region12: #{tpu_custom_call.1} parent=5 // pred_fallthru
      _
    %p324 = scmp.lt.s32.totalorder %s17, 2
    // Predicated region
    $region53: #{tpu_custom_call.1} parent=5 // pred_check
      %p325 = pneg %p324
    $region54: #{tpu_custom_call.1} parent=5 // pred_check_branch
      %327 = sbr.rel (%p325) target = $region56
    $region55: #{tpu_custom_call.1} parent=5 // pred_region
      // Predicated region
      $region57: #{tpu_custom_call.1} parent=55 // pred_check
        %p328 = pneg %p37
      $region58: #{tpu_custom_call.1} parent=55 // pred_check_branch
        %330 = sbr.rel (%p328) target = $region60
      $region59: #{tpu_custom_call.1} parent=55 // pred_region
        %p331 = scmp.lt.s32.totalorder %s17, 1
        %s332 = scalar_select %p331, %s17, 1
        %s333 = smul.addr %s332, 8
        %s334 = smul.addr %s333, 8
        %s335 = scalar_lea.vmem %s0, %s334
      $region60: #{tpu_custom_call.1} parent=55 // pred_fallthru
        _
    $region56: #{tpu_custom_call.1} parent=5 // pred_fallthru
      _
    %p336 = scmp.le.s32.totalorder 1, %s17
    %p337 = scmp.lt.s32.totalorder %s17, 3
    %p338 = pnand %p336, %p337
    %p339 = pneg %p338
    // Predicated region
    $region61: #{tpu_custom_call.1} parent=5 // pred_check
      _
    $region62: #{tpu_custom_call.1} parent=5 // pred_check_branch
      %341 = sbr.rel (%p338) target = $region64
    $region63: #{tpu_custom_call.1} parent=5 // pred_region
      %s342 = ssub.s32 %s17, 1
      %p343 = scmp.lt.s32.totalorder %s22, 1
      %s344 = scalar_select %p343, %s22, 1
      %s345 = smul.addr %s344, 8
      %s346 = smul.addr %s345, 8
      %s347 = scalar_lea.vmem %s0, %s346
      %p348 = pneg %p43
      %p349 = pneg %p40
      %p350 = pneg %p64
      %p351 = pneg %p61
      %p352 = pneg %p85
      %p353 = pneg %p82
      %p354 = pneg %p106
      %p355 = pneg %p103
      %p356 = pneg %p127
      %p357 = pneg %p124
      %p358 = pneg %p148
      %p359 = pneg %p145
      %p360 = pneg %p169
      %p361 = pneg %p166
      %p362 = pneg %p190
      %p363 = pneg %p187
      %p364 = pneg %p211
      %p365 = pneg %p208
      %p366 = pneg %p232
      %p367 = pneg %p229
      %p368 = pneg %p253
      %p369 = pneg %p250
      %p370 = pneg %p279
      %p371 = pneg %p276
      %p372 = scmp.lt.s32.totalorder %s22, 1
      %s373 = scalar_select %p372, %s22, 1
      %s374 = smul.addr %s373, 8
      %s375 = smul.addr %s374, 8
      %s376 = scalar_lea.vmem %s11, %s375
      %p377 = scmp.lt.s32.totalorder %s22, 1
      %s378 = scalar_select %p377, %s22, 1
      %s379 = smul.addr %s378, 8
      %s380 = smul.addr %s379, 8
      %s381 = scalar_lea.vmem %s0, %s380
      %p382 = scmp.lt.s32.totalorder %s22, 1
      %s383 = scalar_select %p382, %s22, 1
      %s384 = smul.addr %s383, 8
      %s385 = smul.addr %s384, 8
      %s386 = scalar_lea.vmem %s11, %s385
      %v388 = vld [vmem:[%s381] sm:$0xff]
      %v389 = vld [vmem:[%s381 + $0x8] sm:$0xff]
      %v390 = vld [vmem:[%s381 + $0x10] sm:$0xff]
      %v391 = vld [vmem:[%s381 + $0x18] sm:$0xff]
      %v392 = vld [vmem:[%s381 + $0x20] sm:$0xff]
      %v393 = vld [vmem:[%s381 + $0x28] sm:$0xff]
      %v394 = vld [vmem:[%s381 + $0x30] sm:$0xff]
      %v395 = vld [vmem:[%s381 + $0x38] sm:$0xff]
      %v396 = vpack.c.bf16 %v389, %v388
      %v397 = vpack.c.bf16 %v391, %v390
      %v398 = vpack.c.bf16 %v393, %v392
      %v399 = vpack.c.bf16 %v395, %v394
      %v400 = vld [vmem:[%s1] sm:$0xf]
      %v401 = vld [vmem:[%s1 + $0x4] sm:$0xf]
      %v402 = vld [vmem:[%s1 + $0x8] sm:$0xf]
      %v403 = vld [vmem:[%s1 + $0xc] sm:$0xf]
      %v404 = vld [vmem:[%s2] sm:$0x1]
      %v406 = vlaneseq
      %v407 = vshrl.u32 %v406, 7
      %v408 = vsub.s32 0, %v407
      %v409 = vrot.slane %v404, %v408
      %v415 = vunpack.c.l.b16 %v400
      %v416 = vunpack.c.l.b16 %v401
      %v417 = vunpack.c.l.b16 %v402
      %v418 = vunpack.c.l.b16 %v403
      %v419 = vpack.c.b16 %v416, %v415
      %v420 = vpack.c.b16 %v418, %v417
      %vm423 = vcmask 261120
      %v425 = vsel %vm423, %v396, 0
      %v428 = vsel %vm423, %v397, 0
      %v431 = vsel %vm423, %v398, 0
      %v434 = vsel %vm423, %v399, 0
      %436 = vmatprep.subr.bf16.mxu0 0
      %437 = vmatpush1.bf16.msra.mxu0 %v419
      %438 = vmatprep.subr.bf16.mxu0 0
      %439 = vmatpush1.bf16.msra.mxu0 %v420
      %440 = vmatprep.subr.bf16.mxu0 0
      %441 = vmatpush1.bf16.msra.mxu0 0
      %442 = vmatprep.subr.bf16.mxu0 0
      %443 = vmatpush1.bf16.msra.mxu0 0
      %444 = vmatprep.subr.bf16.mxu0 0
      %445 = vmatpush1.bf16.msra.mxu0 0
      %446 = vmatprep.subr.bf16.mxu0 0
      %447 = vmatpush1.bf16.msra.mxu0 0
      %448 = vmatprep.subr.bf16.mxu0 0
      %449 = vmatpush1.bf16.msra.mxu0 0
      %450 = vmatprep.subr.bf16.mxu0 0
      %451 = vmatpush1.bf16.msra.mxu0 0
      %452 = vmatprep.subr.bf16.mxu0 0
      %453 = vmatpush1.bf16.msra.mxu0 0
      %454 = vmatprep.subr.bf16.mxu0 0
      %455 = vmatpush1.bf16.msra.mxu0 0
      %456 = vmatprep.subr.bf16.mxu0 0
      %457 = vmatpush1.bf16.msra.mxu0 0
      %458 = vmatprep.subr.bf16.mxu0 0
      %459 = vmatpush1.bf16.msra.mxu0 0
      %460 = vmatprep.subr.bf16.mxu0 0
      %461 = vmatpush1.bf16.msra.mxu0 0
      %462 = vmatprep.subr.bf16.mxu0 0
      %463 = vmatpush1.bf16.msra.mxu0 0
      %464 = vmatprep.subr.bf16.mxu0 0
      %465 = vmatpush1.bf16.msra.mxu0 0
      %466 = vmatprep.subr.bf16.mxu0 0
      %467 = vmatpush1.bf16.msra.mxu0 0
      %468 = vmatprep.mubr.bf16.mxu0 0
      %469 = vmatmul.mubr.bf16.gmra.mrb[0].mxu0 %v425
      %v470 = vpop.f32.mrb[0].mxu0
      %v471 = vadd.f32 %v409, %v470
      %v472 = vpop.f32.mrb[0].mxu0
      %v473 = vpop.f32.mrb[0].mxu0
      %v474 = vadd.f32 %v409, %v473
      %v475 = vpop.f32.mrb[0].mxu0
      %476 = vmatprep.mubr.bf16.mxu0 0
      %477 = vmatmul.mubr.bf16.gmra.mrb[0].mxu0 %v428
      %v478 = vpop.f32.mrb[0].mxu0
      %v479 = vadd.f32 %v409, %v478
      %v480 = vpop.f32.mrb[0].mxu0
      %v481 = vpop.f32.mrb[0].mxu0
      %v482 = vadd.f32 %v409, %v481
      %v483 = vpop.f32.mrb[0].mxu0
      %484 = vmatprep.mubr.bf16.mxu0 0
      %485 = vmatmul.mubr.bf16.gmra.mrb[0].mxu0 %v431
      %v486 = vpop.f32.mrb[0].mxu0
      %v487 = vadd.f32 %v409, %v486
      %v488 = vpop.f32.mrb[0].mxu0
      %v489 = vpop.f32.mrb[0].mxu0
      %v490 = vadd.f32 %v409, %v489
      %v491 = vpop.f32.mrb[0].mxu0
      %492 = vmatprep.mubr.bf16.mxu0 0
      %493 = vmatmul.mubr.bf16.gmra.mrb[0].mxu0 %v434
      %v494 = vpop.f32.mrb[0].mxu0
      %v495 = vadd.f32 %v409, %v494
      %v496 = vpop.f32.mrb[0].mxu0
      %v497 = vpop.f32.mrb[0].mxu0
      %v498 = vadd.f32 %v409, %v497
      %v499 = vpop.f32.mrb[0].mxu0
      %500 = vdwg.mxu0
      %v501 = vpack.c.bf16 %v474, %v471
      %v502 = vpack.c.bf16 %v482, %v479
      %v503 = vpack.c.bf16 %v490, %v487
      %v504 = vpack.c.bf16 %v498, %v495
      %509 = vrot.lane.b32.xlu0 %v501, 96
      %v510 = vpop.permute.xlu0 %509
      %511 = vrot.lane.b32.xlu0 %v502, 96
      %v512 = vpop.permute.xlu0 %511
      %513 = vrot.lane.b32.xlu0 %v503, 96
      %v514 = vpop.permute.xlu0 %513
      %515 = vrot.lane.b32.xlu0 %v504, 96
      %v516 = vpop.permute.xlu0 %515
      %vm517 = vcmask 64512
      %v519 = vsel %vm517, %v501, 0
      %v522 = vsel %vm517, %v502, 0
      %v525 = vsel %vm517, %v503, 0
      %v528 = vsel %vm517, %v504, 0
      %v531 = vsel %vm517, %v510, 0
      %v534 = vsel %vm517, %v512, 0
      %v537 = vsel %vm517, %v514, 0
      %v540 = vsel %vm517, %v516, 0
      %542 = vmatprep.subr.bf16.mxu0 0
      %543 = vmatpush1.bf16.xpose.msra.mxu0 %v531
      %544 = vmatprep.subr.bf16.mxu0 0
      %545 = vmatpush1.bf16.xpose.msra.mxu0 %v534
      %546 = vmatprep.subr.bf16.mxu0 0
      %547 = vmatpush1.bf16.xpose.msra.mxu0 %v537
      %548 = vmatprep.subr.bf16.mxu0 0
      %549 = vmatpush1.bf16.xpose.msra.mxu0 %v540
      %550 = vmatprep.subr.bf16.mxu0 0
      %551 = vmatpush1.bf16.xpose.msra.mxu0 0
      %552 = vmatprep.subr.bf16.mxu0 0
      %553 = vmatpush1.bf16.xpose.msra.mxu0 0
      %554 = vmatprep.subr.bf16.mxu0 0
      %555 = vmatpush1.bf16.xpose.msra.mxu0 0
      %556 = vmatprep.subr.bf16.mxu0 0
      %557 = vmatpush1.bf16.xpose.msra.mxu0 0
      %558 = vmatprep.subr.bf16.mxu0 0
      %559 = vmatpush1.bf16.xpose.msra.mxu0 0
      %560 = vmatprep.subr.bf16.mxu0 0
      %561 = vmatpush1.bf16.xpose.msra.mxu0 0
      %562 = vmatprep.subr.bf16.mxu0 0
      %563 = vmatpush1.bf16.xpose.msra.mxu0 0
      %564 = vmatprep.subr.bf16.mxu0 0
      %565 = vmatpush1.bf16.xpose.msra.mxu0 0
      %566 = vmatprep.subr.bf16.mxu0 0
      %567 = vmatpush1.bf16.xpose.msra.mxu0 0
      %568 = vmatprep.subr.bf16.mxu0 0
      %569 = vmatpush1.bf16.xpose.msra.mxu0 0
      %570 = vmatprep.subr.bf16.mxu0 0
      %571 = vmatpush1.bf16.xpose.msra.mxu0 0
      %572 = vmatprep.subr.bf16.mxu0 0
      %573 = vmatpush1.bf16.xpose.msra.mxu0 0
      %574 = vmatprep.mubr.bf16.mxu0 0
      %575 = vmatmul.mubr.bf16.gmra.mrb[0].mxu0 %v519
      %v576 = vpop.f32.mrb[0].mxu0
      %v577 = vadd.f32 0.0, %v576
      %v578 = vpop.f32.mrb[0].mxu0
      %v579 = vpop.f32.mrb[0].mxu0
      %v580 = vadd.f32 0.0, %v579
      %v581 = vpop.f32.mrb[0].mxu0
      %582 = vmatprep.mubr.bf16.mxu0 0
      %583 = vmatmul.mubr.bf16.gmra.mrb[0].mxu0 %v522
      %v584 = vpop.f32.mrb[0].mxu0
      %v585 = vadd.f32 0.0, %v584
      %v586 = vpop.f32.mrb[0].mxu0
      %v587 = vpop.f32.mrb[0].mxu0
      %v588 = vadd.f32 0.0, %v587
      %v589 = vpop.f32.mrb[0].mxu0
      %590 = vmatprep.mubr.bf16.mxu0 0
      %591 = vmatmul.mubr.bf16.gmra.mrb[0].mxu0 %v525
      %v592 = vpop.f32.mrb[0].mxu0
      %v593 = vadd.f32 0.0, %v592
      %v594 = vpop.f32.mrb[0].mxu0
      %v595 = vpop.f32.mrb[0].mxu0
      %v596 = vadd.f32 0.0, %v595
      %v597 = vpop.f32.mrb[0].mxu0
      %598 = vmatprep.mubr.bf16.mxu0 0
      %599 = vmatmul.mubr.bf16.gmra.mrb[0].mxu0 %v528
      %v600 = vpop.f32.mrb[0].mxu0
      %v601 = vadd.f32 0.0, %v600
      %v602 = vpop.f32.mrb[0].mxu0
      %v603 = vpop.f32.mrb[0].mxu0
      %v604 = vadd.f32 0.0, %v603
      %v605 = vpop.f32.mrb[0].mxu0
      %606 = vdwg.mxu0
      %vm607 = vcmask 523264
      %v608 = vsel %vm607, %v577, -inf
      %609 = vmax.xlane.f32.xlu0 %v608
      %v610 = vpop.xlane.xlu0 %609
      %v611 = vsel %vm607, %v580, -inf
      %612 = vmax.xlane.f32.xlu0 %v611
      %v613 = vpop.xlane.xlu0 %612
      %v614 = vsel %vm607, %v585, -inf
      %615 = vmax.xlane.f32.xlu0 %v614
      %v616 = vpop.xlane.xlu0 %615
      %v617 = vsel %vm607, %v588, -inf
      %618 = vmax.xlane.f32.xlu0 %v617
      %v619 = vpop.xlane.xlu0 %618
      %v620 = vsel %vm607, %v593, -inf
      %621 = vmax.xlane.f32.xlu0 %v620
      %v622 = vpop.xlane.xlu0 %621
      %v623 = vsel %vm607, %v596, -inf
      %624 = vmax.xlane.f32.xlu0 %v623
      %v625 = vpop.xlane.xlu0 %624
      %v626 = vsel %vm607, %v601, -inf
      %627 = vmax.xlane.f32.xlu0 %v626
      %v628 = vpop.xlane.xlu0 %627
      %v629 = vsel %vm607, %v604, -inf
      %630 = vmax.xlane.f32.xlu0 %v629
      %v631 = vpop.xlane.xlu0 %630
      %v632 = vsub.f32 %v577, %v610
      %v633 = vsub.f32 %v580, %v613
      %v634 = vsub.f32 %v585, %v616
      %v635 = vsub.f32 %v588, %v619
      %v636 = vsub.f32 %v593, %v622
      %v637 = vsub.f32 %v596, %v625
      %v638 = vsub.f32 %v601, %v628
      %v639 = vsub.f32 %v604, %v631
      %v640 = vmul.f32 %v632, 1.442695
      %v641 = vpow.pop %v640
      %v642 = vmul.f32 %v633, 1.442695
      %v643 = vpow.pop %v642
      %v644 = vmul.f32 %v634, 1.442695
      %v645 = vpow.pop %v644
      %v646 = vmul.f32 %v635, 1.442695
      %v647 = vpow.pop %v646
      %v648 = vmul.f32 %v636, 1.442695
      %v649 = vpow.pop %v648
      %v650 = vmul.f32 %v637, 1.442695
      %v651 = vpow.pop %v650
      %v652 = vmul.f32 %v638, 1.442695
      %v653 = vpow.pop %v652
      %v654 = vmul.f32 %v639, 1.442695
      %v655 = vpow.pop %v654
      %v656 = vsel %vm607, %v641, 0.0
      %657 = vadd.xlane.f32.xlu0 %v656
      %v658 = vpop.xlane.xlu0 %657
      %v659 = vsel %vm607, %v643, 0.0
      %660 = vadd.xlane.f32.xlu0 %v659
      %v661 = vpop.xlane.xlu0 %660
      %v662 = vsel %vm607, %v645, 0.0
      %663 = vadd.xlane.f32.xlu0 %v662
      %v664 = vpop.xlane.xlu0 %663
      %v665 = vsel %vm607, %v647, 0.0
      %666 = vadd.xlane.f32.xlu0 %v665
      %v667 = vpop.xlane.xlu0 %666
      %v668 = vsel %vm607, %v649, 0.0
      %669 = vadd.xlane.f32.xlu0 %v668
      %v670 = vpop.xlane.xlu0 %669
      %v671 = vsel %vm607, %v651, 0.0
      %672 = vadd.xlane.f32.xlu0 %v671
      %v673 = vpop.xlane.xlu0 %672
      %v674 = vsel %vm607, %v653, 0.0
      %675 = vadd.xlane.f32.xlu0 %v674
      %v676 = vpop.xlane.xlu0 %675
      %v677 = vsel %vm607, %v655, 0.0
      %678 = vadd.xlane.f32.xlu0 %v677
      %v679 = vpop.xlane.xlu0 %678
      %v680 = vrcp.pop %v658
      %v681 = vrcp.pop %v661
      %v682 = vrcp.pop %v664
      %v683 = vrcp.pop %v667
      %v684 = vrcp.pop %v670
      %v685 = vrcp.pop %v673
      %v686 = vrcp.pop %v676
      %v687 = vrcp.pop %v679
      %v688 = vmul.f32 %v641, %v680
      %v689 = vmul.f32 %v643, %v681
      %v690 = vmul.f32 %v645, %v682
      %v691 = vmul.f32 %v647, %v683
      %v692 = vmul.f32 %v649, %v684
      %v693 = vmul.f32 %v651, %v685
      %v694 = vmul.f32 %v653, %v686
      %v695 = vmul.f32 %v655, %v687
      %v696 = vpack.c.bf16 %v689, %v688
      %v697 = vpack.c.bf16 %v691, %v690
      %v698 = vpack.c.bf16 %v693, %v692
      %v699 = vpack.c.bf16 %v695, %v694
      %700 = vrot.lane.b32.xlu0 %v501, 64
      %v701 = vpop.permute.xlu0 %700
      %702 = vrot.lane.b32.xlu0 %v502, 64
      %v703 = vpop.permute.xlu0 %702
      %704 = vrot.lane.b32.xlu0 %v503, 64
      %v705 = vpop.permute.xlu0 %704
      %706 = vrot.lane.b32.xlu0 %v504, 64
      %v707 = vpop.permute.xlu0 %706
      %v713 = vsel %vm607, %v696, 0
      %v716 = vsel %vm607, %v697, 0
      %v719 = vsel %vm607, %v698, 0
      %v722 = vsel %vm607, %v699, 0
      %724 = vmatprep.subr.bf16.mxu0 0
      %725 = vmatpush1.bf16.msra.mxu0 %v701
      %726 = vmatprep.subr.bf16.mxu0 0
      %727 = vmatpush1.bf16.msra.mxu0 %v703
      %728 = vmatprep.subr.bf16.mxu0 0
      %729 = vmatpush1.bf16.msra.mxu0 %v705
      %730 = vmatprep.subr.bf16.mxu0 0
      %731 = vmatpush1.bf16.msra.mxu0 %v707
      %732 = vmatprep.subr.bf16.mxu0 0
      %733 = vmatpush1.bf16.msra.mxu0 0
      %734 = vmatprep.subr.bf16.mxu0 0
      %735 = vmatpush1.bf16.msra.mxu0 0
      %736 = vmatprep.subr.bf16.mxu0 0
      %737 = vmatpush1.bf16.msra.mxu0 0
      %738 = vmatprep.subr.bf16.mxu0 0
      %739 = vmatpush1.bf16.msra.mxu0 0
      %740 = vmatprep.subr.bf16.mxu0 0
      %741 = vmatpush1.bf16.msra.mxu0 0
      %742 = vmatprep.subr.bf16.mxu0 0
      %743 = vmatpush1.bf16.msra.mxu0 0
      %744 = vmatprep.subr.bf16.mxu0 0
      %745 = vmatpush1.bf16.msra.mxu0 0
      %746 = vmatprep.subr.bf16.mxu0 0
      %747 = vmatpush1.bf16.msra.mxu0 0
      %748 = vmatprep.subr.bf16.mxu0 0
      %749 = vmatpush1.bf16.msra.mxu0 0
      %750 = vmatprep.subr.bf16.mxu0 0
      %751 = vmatpush1.bf16.msra.mxu0 0
      %752 = vmatprep.subr.bf16.mxu0 0
      %753 = vmatpush1.bf16.msra.mxu0 0
      %754 = vmatprep.subr.bf16.mxu0 0
      %755 = vmatpush1.bf16.msra.mxu0 0
      %756 = vmatprep.mubr.bf16.mxu0 0
      %757 = vmatmul.mubr.bf16.gmra.mrb[0].mxu0 %v713
      %v758 = vpop.f32.mrb[0].mxu0
      %v759 = vadd.f32 0.0, %v758
      %v760 = vpop.f32.mrb[0].mxu0
      %v761 = vpop.f32.mrb[0].mxu0
      %v762 = vadd.f32 0.0, %v761
      %v763 = vpop.f32.mrb[0].mxu0
      %764 = vmatprep.mubr.bf16.mxu0 0
      %765 = vmatmul.mubr.bf16.gmra.mrb[0].mxu0 %v716
      %v766 = vpop.f32.mrb[0].mxu0
      %v767 = vadd.f32 0.0, %v766
      %v768 = vpop.f32.mrb[0].mxu0
      %v769 = vpop.f32.mrb[0].mxu0
      %v770 = vadd.f32 0.0, %v769
      %v771 = vpop.f32.mrb[0].mxu0
      %772 = vmatprep.mubr.bf16.mxu0 0
      %773 = vmatmul.mubr.bf16.gmra.mrb[0].mxu0 %v719
      %v774 = vpop.f32.mrb[0].mxu0
      %v775 = vadd.f32 0.0, %v774
      %v776 = vpop.f32.mrb[0].mxu0
      %v777 = vpop.f32.mrb[0].mxu0
      %v778 = vadd.f32 0.0, %v777
      %v779 = vpop.f32.mrb[0].mxu0
      %780 = vmatprep.mubr.bf16.mxu0 0
      %781 = vmatmul.mubr.bf16.gmra.mrb[0].mxu0 %v722
      %v782 = vpop.f32.mrb[0].mxu0
      %v783 = vadd.f32 0.0, %v782
      %v784 = vpop.f32.mrb[0].mxu0
      %v785 = vpop.f32.mrb[0].mxu0
      %v786 = vadd.f32 0.0, %v785
      %v787 = vpop.f32.mrb[0].mxu0
      %788 = vdwg.mxu0
      %v789 = vmax.f32 %v759, 0.0
      %v790 = vmax.f32 %v762, 0.0
      %v791 = vmax.f32 %v767, 0.0
      %v792 = vmax.f32 %v770, 0.0
      %v793 = vmax.f32 %v775, 0.0
      %v794 = vmax.f32 %v778, 0.0
      %v795 = vmax.f32 %v783, 0.0
      %v796 = vmax.f32 %v786, 0.0
      %797 = vrot.lane.b32.xlu0 %v501, 120
      %v798 = vpop.permute.xlu0 %797
      %799 = vrot.lane.b32.xlu0 %v502, 120
      %v800 = vpop.permute.xlu0 %799
      %801 = vrot.lane.b32.xlu0 %v503, 120
      %v802 = vpop.permute.xlu0 %801
      %803 = vrot.lane.b32.xlu0 %v504, 120
      %v804 = vpop.permute.xlu0 %803
      %805 = vrot.lane.b32.xlu0 %v501, 88
      %v806 = vpop.permute.xlu0 %805
      %807 = vrot.lane.b32.xlu0 %v502, 88
      %v808 = vpop.permute.xlu0 %807
      %809 = vrot.lane.b32.xlu0 %v503, 88
      %v810 = vpop.permute.xlu0 %809
      %811 = vrot.lane.b32.xlu0 %v504, 88
      %v812 = vpop.permute.xlu0 %811
      %v814 = vsel %vm517, %v798, 0
      %v817 = vsel %vm517, %v800, 0
      %v820 = vsel %vm517, %v802, 0
      %v823 = vsel %vm517, %v804, 0
      %v826 = vsel %vm517, %v806, 0
      %v829 = vsel %vm517, %v808, 0
      %v832 = vsel %vm517, %v810, 0
      %v835 = vsel %vm517, %v812, 0
      %837 = vmatprep.subr.bf16.mxu0 0
      %838 = vmatpush1.bf16.xpose.msra.mxu0 %v826
      %839 = vmatprep.subr.bf16.mxu0 0
      %840 = vmatpush1.bf16.xpose.msra.mxu0 %v829
      %841 = vmatprep.subr.bf16.mxu0 0
      %842 = vmatpush1.bf16.xpose.msra.mxu0 %v832
      %843 = vmatprep.subr.bf16.mxu0 0
      %844 = vmatpush1.bf16.xpose.msra.mxu0 %v835
      %845 = vmatprep.subr.bf16.mxu0 0
      %846 = vmatpush1.bf16.xpose.msra.mxu0 0
      %847 = vmatprep.subr.bf16.mxu0 0
      %848 = vmatpush1.bf16.xpose.msra.mxu0 0
      %849 = vmatprep.subr.bf16.mxu0 0
      %850 = vmatpush1.bf16.xpose.msra.mxu0 0
      %851 = vmatprep.subr.bf16.mxu0 0
      %852 = vmatpush1.bf16.xpose.msra.mxu0 0
      %853 = vmatprep.subr.bf16.mxu0 0
      %854 = vmatpush1.bf16.xpose.msra.mxu0 0
      %855 = vmatprep.subr.bf16.mxu0 0
      %856 = vmatpush1.bf16.xpose.msra.mxu0 0
      %857 = vmatprep.subr.bf16.mxu0 0
      %858 = vmatpush1.bf16.xpose.msra.mxu0 0
      %859 = vmatprep.subr.bf16.mxu0 0
      %860 = vmatpush1.bf16.xpose.msra.mxu0 0
      %861 = vmatprep.subr.bf16.mxu0 0
      %862 = vmatpush1.bf16.xpose.msra.mxu0 0
      %863 = vmatprep.subr.bf16.mxu0 0
      %864 = vmatpush1.bf16.xpose.msra.mxu0 0
      %865 = vmatprep.subr.bf16.mxu0 0
      %866 = vmatpush1.bf16.xpose.msra.mxu0 0
      %867 = vmatprep.subr.bf16.mxu0 0
      %868 = vmatpush1.bf16.xpose.msra.mxu0 0
      %869 = vmatprep.mubr.bf16.mxu0 0
      %870 = vmatmul.mubr.bf16.gmra.mrb[0].mxu0 %v814
      %v871 = vpop.f32.mrb[0].mxu0
      %v872 = vadd.f32 0.0, %v871
      %v873 = vpop.f32.mrb[0].mxu0
      %v874 = vpop.f32.mrb[0].mxu0
      %v875 = vadd.f32 0.0, %v874
      %v876 = vpop.f32.mrb[0].mxu0
      %877 = vmatprep.mubr.bf16.mxu0 0
      %878 = vmatmul.mubr.bf16.gmra.mrb[0].mxu0 %v817
      %v879 = vpop.f32.mrb[0].mxu0
      %v880 = vadd.f32 0.0, %v879
      %v881 = vpop.f32.mrb[0].mxu0
      %v882 = vpop.f32.mrb[0].mxu0
      %v883 = vadd.f32 0.0, %v882
      %v884 = vpop.f32.mrb[0].mxu0
      %885 = vmatprep.mubr.bf16.mxu0 0
      %886 = vmatmul.mubr.bf16.gmra.mrb[0].mxu0 %v820
      %v887 = vpop.f32.mrb[0].mxu0
      %v888 = vadd.f32 0.0, %v887
      %v889 = vpop.f32.mrb[0].mxu0
      %v890 = vpop.f32.mrb[0].mxu0
      %v891 = vadd.f32 0.0, %v890
      %v892 = vpop.f32.mrb[0].mxu0
      %893 = vmatprep.mubr.bf16.mxu0 0
      %894 = vmatmul.mubr.bf16.gmra.mrb[0].mxu0 %v823
      %v895 = vpop.f32.mrb[0].mxu0
      %v896 = vadd.f32 0.0, %v895
      %v897 = vpop.f32.mrb[0].mxu0
      %v898 = vpop.f32.mrb[0].mxu0
      %v899 = vadd.f32 0.0, %v898
      %v900 = vpop.f32.mrb[0].mxu0
      %901 = vdwg.mxu0
      %v902 = vsel %vm607, %v872, -inf
      %903 = vmax.xlane.f32.xlu0 %v902
      %v904 = vpop.xlane.xlu0 %903
      %v905 = vsel %vm607, %v875, -inf
      %906 = vmax.xlane.f32.xlu0 %v905
      %v907 = vpop.xlane.xlu0 %906
      %v908 = vsel %vm607, %v880, -inf
      %909 = vmax.xlane.f32.xlu0 %v908
      %v910 = vpop.xlane.xlu0 %909
      %v911 = vsel %vm607, %v883, -inf
      %912 = vmax.xlane.f32.xlu0 %v911
      %v913 = vpop.xlane.xlu0 %912
      %v914 = vsel %vm607, %v888, -inf
      %915 = vmax.xlane.f32.xlu0 %v914
      %v916 = vpop.xlane.xlu0 %915
      %v917 = vsel %vm607, %v891, -inf
      %918 = vmax.xlane.f32.xlu0 %v917
      %v919 = vpop.xlane.xlu0 %918
      %v920 = vsel %vm607, %v896, -inf
      %921 = vmax.xlane.f32.xlu0 %v920
      %v922 = vpop.xlane.xlu0 %921
      %v923 = vsel %vm607, %v899, -inf
      %924 = vmax.xlane.f32.xlu0 %v923
      %v925 = vpop.xlane.xlu0 %924
      %v926 = vsub.f32 %v872, %v904
      %v927 = vsub.f32 %v875, %v907
      %v928 = vsub.f32 %v880, %v910
      %v929 = vsub.f32 %v883, %v913
      %v930 = vsub.f32 %v888, %v916
      %v931 = vsub.f32 %v891, %v919
      %v932 = vsub.f32 %v896, %v922
      %v933 = vsub.f32 %v899, %v925
      %v934 = vmul.f32 %v926, 1.442695
      %v935 = vpow.pop %v934
      %v936 = vmul.f32 %v927, 1.442695
      %v937 = vpow.pop %v936
      %v938 = vmul.f32 %v928, 1.442695
      %v939 = vpow.pop %v938
      %v940 = vmul.f32 %v929, 1.442695
      %v941 = vpow.pop %v940
      %v942 = vmul.f32 %v930, 1.442695
      %v943 = vpow.pop %v942
      %v944 = vmul.f32 %v931, 1.442695
      %v945 = vpow.pop %v944
      %v946 = vmul.f32 %v932, 1.442695
      %v947 = vpow.pop %v946
      %v948 = vmul.f32 %v933, 1.442695
      %v949 = vpow.pop %v948
      %v950 = vsel %vm607, %v935, 0.0
      %951 = vadd.xlane.f32.xlu0 %v950
      %v952 = vpop.xlane.xlu0 %951
      %v953 = vsel %vm607, %v937, 0.0
      %954 = vadd.xlane.f32.xlu0 %v953
      %v955 = vpop.xlane.xlu0 %954
      %v956 = vsel %vm607, %v939, 0.0
      %957 = vadd.xlane.f32.xlu0 %v956
      %v958 = vpop.xlane.xlu0 %957
      %v959 = vsel %vm607, %v941, 0.0
      %960 = vadd.xlane.f32.xlu0 %v959
      %v961 = vpop.xlane.xlu0 %960
      %v962 = vsel %vm607, %v943, 0.0
      %963 = vadd.xlane.f32.xlu0 %v962
      %v964 = vpop.xlane.xlu0 %963
      %v965 = vsel %vm607, %v945, 0.0
      %966 = vadd.xlane.f32.xlu0 %v965
      %v967 = vpop.xlane.xlu0 %966
      %v968 = vsel %vm607, %v947, 0.0
      %969 = vadd.xlane.f32.xlu0 %v968
      %v970 = vpop.xlane.xlu0 %969
      %v971 = vsel %vm607, %v949, 0.0
      %972 = vadd.xlane.f32.xlu0 %v971
      %v973 = vpop.xlane.xlu0 %972
      %v974 = vrcp.pop %v952
      %v975 = vrcp.pop %v955
      %v976 = vrcp.pop %v958
      %v977 = vrcp.pop %v961
      %v978 = vrcp.pop %v964
      %v979 = vrcp.pop %v967
      %v980 = vrcp.pop %v970
      %v981 = vrcp.pop %v973
      %v982 = vmul.f32 %v935, %v974
      %v983 = vmul.f32 %v937, %v975
      %v984 = vmul.f32 %v939, %v976
      %v985 = vmul.f32 %v941, %v977
      %v986 = vmul.f32 %v943, %v978
      %v987 = vmul.f32 %v945, %v979
      %v988 = vmul.f32 %v947, %v980
      %v989 = vmul.f32 %v949, %v981
      %v990 = vpack.c.bf16 %v983, %v982
      %v991 = vpack.c.bf16 %v985, %v984
      %v992 = vpack.c.bf16 %v987, %v986
      %v993 = vpack.c.bf16 %v989, %v988
      %994 = vrot.lane.b32.xlu0 %v501, 48
      %v995 = vpop.permute.xlu0 %994
      %996 = vrot.lane.b32.xlu0 %v502, 48
      %v997 = vpop.permute.xlu0 %996
      %998 = vrot.lane.b32.xlu0 %v503, 48
      %v999 = vpop.permute.xlu0 %998
      %1000 = vrot.lane.b32.xlu0 %v504, 48
      %v1001 = vpop.permute.xlu0 %1000
      %v1007 = vsel %vm607, %v990, 0
      %v1010 = vsel %vm607, %v991, 0
      %v1013 = vsel %vm607, %v992, 0
      %v1016 = vsel %vm607, %v993, 0
      %1018 = vmatprep.subr.bf16.mxu0 0
      %1019 = vmatpush1.bf16.msra.mxu0 %v995
      %1020 = vmatprep.subr.bf16.mxu0 0
      %1021 = vmatpush1.bf16.msra.mxu0 %v997
      %1022 = vmatprep.subr.bf16.mxu0 0
      %1023 = vmatpush1.bf16.msra.mxu0 %v999
      %1024 = vmatprep.subr.bf16.mxu0 0
      %1025 = vmatpush1.bf16.msra.mxu0 %v1001
      %1026 = vmatprep.subr.bf16.mxu0 0
      %1027 = vmatpush1.bf16.msra.mxu0 0
      %1028 = vmatprep.subr.bf16.mxu0 0
      %1029 = vmatpush1.bf16.msra.mxu0 0
      %1030 = vmatprep.subr.bf16.mxu0 0
      %1031 = vmatpush1.bf16.msra.mxu0 0
      %1032 = vmatprep.subr.bf16.mxu0 0
      %1033 = vmatpush1.bf16.msra.mxu0 0
      %1034 = vmatprep.subr.bf16.mxu0 0
      %1035 = vmatpush1.bf16.msra.mxu0 0
      %1036 = vmatprep.subr.bf16.mxu0 0
      %1037 = vmatpush1.bf16.msra.mxu0 0
      %1038 = vmatprep.subr.bf16.mxu0 0
      %1039 = vmatpush1.bf16.msra.mxu0 0
      %1040 = vmatprep.subr.bf16.mxu0 0
      %1041 = vmatpush1.bf16.msra.mxu0 0
      %1042 = vmatprep.subr.bf16.mxu0 0
      %1043 = vmatpush1.bf16.msra.mxu0 0
      %1044 = vmatprep.subr.bf16.mxu0 0
      %1045 = vmatpush1.bf16.msra.mxu0 0
      %1046 = vmatprep.subr.bf16.mxu0 0
      %1047 = vmatpush1.bf16.msra.mxu0 0
      %1048 = vmatprep.subr.bf16.mxu0 0
      %1049 = vmatpush1.bf16.msra.mxu0 0
      %1050 = vmatprep.mubr.bf16.mxu0 0
      %1051 = vmatmul.mubr.bf16.gmra.mrb[0].mxu0 %v1007
      %v1052 = vpop.f32.mrb[0].mxu0
      %v1053 = vadd.f32 0.0, %v1052
      %v1054 = vpop.f32.mrb[0].mxu0
      %v1055 = vpop.f32.mrb[0].mxu0
      %v1056 = vadd.f32 0.0, %v1055
      %v1057 = vpop.f32.mrb[0].mxu0
      %1058 = vmatprep.mubr.bf16.mxu0 0
      %1059 = vmatmul.mubr.bf16.gmra.mrb[0].mxu0 %v1010
      %v1060 = vpop.f32.mrb[0].mxu0
      %v1061 = vadd.f32 0.0, %v1060
      %v1062 = vpop.f32.mrb[0].mxu0
      %v1063 = vpop.f32.mrb[0].mxu0
      %v1064 = vadd.f32 0.0, %v1063
      %v1065 = vpop.f32.mrb[0].mxu0
      %1066 = vmatprep.mubr.bf16.mxu0 0
      %1067 = vmatmul.mubr.bf16.gmra.mrb[0].mxu0 %v1013
      %v1068 = vpop.f32.mrb[0].mxu0
      %v1069 = vadd.f32 0.0, %v1068
      %v1070 = vpop.f32.mrb[0].mxu0
      %v1071 = vpop.f32.mrb[0].mxu0
      %v1072 = vadd.f32 0.0, %v1071
      %v1073 = vpop.f32.mrb[0].mxu0
      %1074 = vmatprep.mubr.bf16.mxu0 0
      %1075 = vmatmul.mubr.bf16.gmra.mrb[0].mxu0 %v1016
      %v1076 = vpop.f32.mrb[0].mxu0
      %v1077 = vadd.f32 0.0, %v1076
      %v1078 = vpop.f32.mrb[0].mxu0
      %v1079 = vpop.f32.mrb[0].mxu0
      %v1080 = vadd.f32 0.0, %v1079
      %v1081 = vpop.f32.mrb[0].mxu0
      %1082 = vdwg.mxu0
      %v1083 = vmax.f32 %v1053, 0.0
      %v1084 = vmax.f32 %v1056, 0.0
      %v1085 = vmax.f32 %v1061, 0.0
      %v1086 = vmax.f32 %v1064, 0.0
      %v1087 = vmax.f32 %v1069, 0.0
      %v1088 = vmax.f32 %v1072, 0.0
      %v1089 = vmax.f32 %v1077, 0.0
      %v1090 = vmax.f32 %v1080, 0.0
      %1091 = vrot.lane.b32.xlu0 %v501, 112
      %v1092 = vpop.permute.xlu0 %1091
      %1093 = vrot.lane.b32.xlu0 %v502, 112
      %v1094 = vpop.permute.xlu0 %1093
      %1095 = vrot.lane.b32.xlu0 %v503, 112
      %v1096 = vpop.permute.xlu0 %1095
      %1097 = vrot.lane.b32.xlu0 %v504, 112
      %v1098 = vpop.permute.xlu0 %1097
      %1099 = vrot.lane.b32.xlu0 %v501, 80
      %v1100 = vpop.permute.xlu0 %1099
      %1101 = vrot.lane.b32.xlu0 %v502, 80
      %v1102 = vpop.permute.xlu0 %1101
      %1103 = vrot.lane.b32.xlu0 %v503, 80
      %v1104 = vpop.permute.xlu0 %1103
      %1105 = vrot.lane.b32.xlu0 %v504, 80
      %v1106 = vpop.permute.xlu0 %1105
      %v1108 = vsel %vm517, %v1092, 0
      %v1111 = vsel %vm517, %v1094, 0
      %v1114 = vsel %vm517, %v1096, 0
      %v1117 = vsel %vm517, %v1098, 0
      %v1120 = vsel %vm517, %v1100, 0
      %v1123 = vsel %vm517, %v1102, 0
      %v1126 = vsel %vm517, %v1104, 0
      %v1129 = vsel %vm517, %v1106, 0
      %1131 = vmatprep.subr.bf16.mxu0 0
      %1132 = vmatpush1.bf16.xpose.msra.mxu0 %v1120
      %1133 = vmatprep.subr.bf16.mxu0 0
      %1134 = vmatpush1.bf16.xpose.msra.mxu0 %v1123
      %1135 = vmatprep.subr.bf16.mxu0 0
      %1136 = vmatpush1.bf16.xpose.msra.mxu0 %v1126
      %1137 = vmatprep.subr.bf16.mxu0 0
      %1138 = vmatpush1.bf16.xpose.msra.mxu0 %v1129
      %1139 = vmatprep.subr.bf16.mxu0 0
      %1140 = vmatpush1.bf16.xpose.msra.mxu0 0
      %1141 = vmatprep.subr.bf16.mxu0 0
      %1142 = vmatpush1.bf16.xpose.msra.mxu0 0
      %1143 = vmatprep.subr.bf16.mxu0 0
      %1144 = vmatpush1.bf16.xpose.msra.mxu0 0
      %1145 = vmatprep.subr.bf16.mxu0 0
      %1146 = vmatpush1.bf16.xpose.msra.mxu0 0
      %1147 = vmatprep.subr.bf16.mxu0 0
      %1148 = vmatpush1.bf16.xpose.msra.mxu0 0
      %1149 = vmatprep.subr.bf16.mxu0 0
      %1150 = vmatpush1.bf16.xpose.msra.mxu0 0
      %1151 = vmatprep.subr.bf16.mxu0 0
      %1152 = vmatpush1.bf16.xpose.msra.mxu0 0
      %1153 = vmatprep.subr.bf16.mxu0 0
      %1154 = vmatpush1.bf16.xpose.msra.mxu0 0
      %1155 = vmatprep.subr.bf16.mxu0 0
      %1156 = vmatpush1.bf16.xpose.msra.mxu0 0
      %1157 = vmatprep.subr.bf16.mxu0 0
      %1158 = vmatpush1.bf16.xpose.msra.mxu0 0
      %1159 = vmatprep.subr.bf16.mxu0 0
      %1160 = vmatpush1.bf16.xpose.msra.mxu0 0
      %1161 = vmatprep.subr.bf16.mxu0 0
      %1162 = vmatpush1.bf16.xpose.msra.mxu0 0
      %1163 = vmatprep.mubr.bf16.mxu0 0
      %1164 = vmatmul.mubr.bf16.gmra.mrb[0].mxu0 %v1108
      %v1165 = vpop.f32.mrb[0].mxu0
      %v1166 = vadd.f32 0.0, %v1165
      %v1167 = vpop.f32.mrb[0].mxu0
      %v1168 = vpop.f32.mrb[0].mxu0
      %v1169 = vadd.f32 0.0, %v1168
      %v1170 = vpop.f32.mrb[0].mxu0
      %1171 = vmatprep.mubr.bf16.mxu0 0
      %1172 = vmatmul.mubr.bf16.gmra.mrb[0].mxu0 %v1111
      %v1173 = vpop.f32.mrb[0].mxu0
      %v1174 = vadd.f32 0.0, %v1173
      %v1175 = vpop.f32.mrb[0].mxu0
      %v1176 = vpop.f32.mrb[0].mxu0
      %v1177 = vadd.f32 0.0, %v1176
      %v1178 = vpop.f32.mrb[0].mxu0
      %1179 = vmatprep.mubr.bf16.mxu0 0
      %1180 = vmatmul.mubr.bf16.gmra.mrb[0].mxu0 %v1114
      %v1181 = vpop.f32.mrb[0].mxu0
      %v1182 = vadd.f32 0.0, %v1181
      %v1183 = vpop.f32.mrb[0].mxu0
      %v1184 = vpop.f32.mrb[0].mxu0
      %v1185 = vadd.f32 0.0, %v1184
      %v1186 = vpop.f32.mrb[0].mxu0
      %1187 = vmatprep.mubr.bf16.mxu0 0
      %1188 = vmatmul.mubr.bf16.gmra.mrb[0].mxu0 %v1117
      %v1189 = vpop.f32.mrb[0].mxu0
      %v1190 = vadd.f32 0.0, %v1189
      %v1191 = vpop.f32.mrb[0].mxu0
      %v1192 = vpop.f32.mrb[0].mxu0
      %v1193 = vadd.f32 0.0, %v1192
      %v1194 = vpop.f32.mrb[0].mxu0
      %1195 = vdwg.mxu0
      %v1196 = vsel %vm607, %v1166, -inf
      %1197 = vmax.xlane.f32.xlu0 %v1196
      %v1198 = vpop.xlane.xlu0 %1197
      %v1199 = vsel %vm607, %v1169, -inf
      %1200 = vmax.xlane.f32.xlu0 %v1199
      %v1201 = vpop.xlane.xlu0 %1200
      %v1202 = vsel %vm607, %v1174, -inf
      %1203 = vmax.xlane.f32.xlu0 %v1202
      %v1204 = vpop.xlane.xlu0 %1203
      %v1205 = vsel %vm607, %v1177, -inf
      %1206 = vmax.xlane.f32.xlu0 %v1205
      %v1207 = vpop.xlane.xlu0 %1206
      %v1208 = vsel %vm607, %v1182, -inf
      %1209 = vmax.xlane.f32.xlu0 %v1208
      %v1210 = vpop.xlane.xlu0 %1209
      %v1211 = vsel %vm607, %v1185, -inf
      %1212 = vmax.xlane.f32.xlu0 %v1211
      %v1213 = vpop.xlane.xlu0 %1212
      %v1214 = vsel %vm607, %v1190, -inf
      %1215 = vmax.xlane.f32.xlu0 %v1214
      %v1216 = vpop.xlane.xlu0 %1215
      %v1217 = vsel %vm607, %v1193, -inf
      %1218 = vmax.xlane.f32.xlu0 %v1217
      %v1219 = vpop.xlane.xlu0 %1218
      %v1220 = vsub.f32 %v1166, %v1198
      %v1221 = vsub.f32 %v1169, %v1201
      %v1222 = vsub.f32 %v1174, %v1204
      %v1223 = vsub.f32 %v1177, %v1207
      %v1224 = vsub.f32 %v1182, %v1210
      %v1225 = vsub.f32 %v1185, %v1213
      %v1226 = vsub.f32 %v1190, %v1216
      %v1227 = vsub.f32 %v1193, %v1219
      %v1228 = vmul.f32 %v1220, 1.442695
      %v1229 = vpow.pop %v1228
      %v1230 = vmul.f32 %v1221, 1.442695
      %v1231 = vpow.pop %v1230
      %v1232 = vmul.f32 %v1222, 1.442695
      %v1233 = vpow.pop %v1232
      %v1234 = vmul.f32 %v1223, 1.442695
      %v1235 = vpow.pop %v1234
      %v1236 = vmul.f32 %v1224, 1.442695
      %v1237 = vpow.pop %v1236
      %v1238 = vmul.f32 %v1225, 1.442695
      %v1239 = vpow.pop %v1238
      %v1240 = vmul.f32 %v1226, 1.442695
      %v1241 = vpow.pop %v1240
      %v1242 = vmul.f32 %v1227, 1.442695
      %v1243 = vpow.pop %v1242
      %v1244 = vsel %vm607, %v1229, 0.0
      %1245 = vadd.xlane.f32.xlu0 %v1244
      %v1246 = vpop.xlane.xlu0 %1245
      %v1247 = vsel %vm607, %v1231, 0.0
      %1248 = vadd.xlane.f32.xlu0 %v1247
      %v1249 = vpop.xlane.xlu0 %1248
      %v1250 = vsel %vm607, %v1233, 0.0
      %1251 = vadd.xlane.f32.xlu0 %v1250
      %v1252 = vpop.xlane.xlu0 %1251
      %v1253 = vsel %vm607, %v1235, 0.0
      %1254 = vadd.xlane.f32.xlu0 %v1253
      %v1255 = vpop.xlane.xlu0 %1254
      %v1256 = vsel %vm607, %v1237, 0.0
      %1257 = vadd.xlane.f32.xlu0 %v1256
      %v1258 = vpop.xlane.xlu0 %1257
      %v1259 = vsel %vm607, %v1239, 0.0
      %1260 = vadd.xlane.f32.xlu0 %v1259
      %v1261 = vpop.xlane.xlu0 %1260
      %v1262 = vsel %vm607, %v1241, 0.0
      %1263 = vadd.xlane.f32.xlu0 %v1262
      %v1264 = vpop.xlane.xlu0 %1263
      %v1265 = vsel %vm607, %v1243, 0.0
      %1266 = vadd.xlane.f32.xlu0 %v1265
      %v1267 = vpop.xlane.xlu0 %1266
      %v1268 = vrcp.pop %v1246
      %v1269 = vrcp.pop %v1249
      %v1270 = vrcp.pop %v1252
      %v1271 = vrcp.pop %v1255
      %v1272 = vrcp.pop %v1258
      %v1273 = vrcp.pop %v1261
      %v1274 = vrcp.pop %v1264
      %v1275 = vrcp.pop %v1267
      %v1276 = vmul.f32 %v1229, %v1268
      %v1277 = vmul.f32 %v1231, %v1269
      %v1278 = vmul.f32 %v1233, %v1270
      %v1279 = vmul.f32 %v1235, %v1271
      %v1280 = vmul.f32 %v1237, %v1272
      %v1281 = vmul.f32 %v1239, %v1273
      %v1282 = vmul.f32 %v1241, %v1274
      %v1283 = vmul.f32 %v1243, %v1275
      %v1284 = vpack.c.bf16 %v1277, %v1276
      %v1285 = vpack.c.bf16 %v1279, %v1278
      %v1286 = vpack.c.bf16 %v1281, %v1280
      %v1287 = vpack.c.bf16 %v1283, %v1282
      %1288 = vrot.lane.b32.xlu0 %v501, 32
      %v1289 = vpop.permute.xlu0 %1288
      %1290 = vrot.lane.b32.xlu0 %v502, 32
      %v1291 = vpop.permute.xlu0 %1290
      %1292 = vrot.lane.b32.xlu0 %v503, 32
      %v1293 = vpop.permute.xlu0 %1292
      %1294 = vrot.lane.b32.xlu0 %v504, 32
      %v1295 = vpop.permute.xlu0 %1294
      %v1301 = vsel %vm607, %v1284, 0
      %v1304 = vsel %vm607, %v1285, 0
      %v1307 = vsel %vm607, %v1286, 0
      %v1310 = vsel %vm607, %v1287, 0
      %1312 = vmatprep.subr.bf16.mxu0 0
      %1313 = vmatpush1.bf16.msra.mxu0 %v1289
      %1314 = vmatprep.subr.bf16.mxu0 0
      %1315 = vmatpush1.bf16.msra.mxu0 %v1291
      %1316 = vmatprep.subr.bf16.mxu0 0
      %1317 = vmatpush1.bf16.msra.mxu0 %v1293
      %1318 = vmatprep.subr.bf16.mxu0 0
      %1319 = vmatpush1.bf16.msra.mxu0 %v1295
      %1320 = vmatprep.subr.bf16.mxu0 0
      %1321 = vmatpush1.bf16.msra.mxu0 0
      %1322 = vmatprep.subr.bf16.mxu0 0
      %1323 = vmatpush1.bf16.msra.mxu0 0
      %1324 = vmatprep.subr.bf16.mxu0 0
      %1325 = vmatpush1.bf16.msra.mxu0 0
      %1326 = vmatprep.subr.bf16.mxu0 0
      %1327 = vmatpush1.bf16.msra.mxu0 0
      %1328 = vmatprep.subr.bf16.mxu0 0
      %1329 = vmatpush1.bf16.msra.mxu0 0
      %1330 = vmatprep.subr.bf16.mxu0 0
      %1331 = vmatpush1.bf16.msra.mxu0 0
      %1332 = vmatprep.subr.bf16.mxu0 0
      %1333 = vmatpush1.bf16.msra.mxu0 0
      %1334 = vmatprep.subr.bf16.mxu0 0
      %1335 = vmatpush1.bf16.msra.mxu0 0
      %1336 = vmatprep.subr.bf16.mxu0 0
      %1337 = vmatpush1.bf16.msra.mxu0 0
      %1338 = vmatprep.subr.bf16.mxu0 0
      %1339 = vmatpush1.bf16.msra.mxu0 0
      %1340 = vmatprep.subr.bf16.mxu0 0
      %1341 = vmatpush1.bf16.msra.mxu0 0
      %1342 = vmatprep.subr.bf16.mxu0 0
      %1343 = vmatpush1.bf16.msra.mxu0 0
      %1344 = vmatprep.mubr.bf16.mxu0 0
      %1345 = vmatmul.mubr.bf16.gmra.mrb[0].mxu0 %v1301
      %v1346 = vpop.f32.mrb[0].mxu0
      %v1347 = vadd.f32 0.0, %v1346
      %v1348 = vpop.f32.mrb[0].mxu0
      %v1349 = vpop.f32.mrb[0].mxu0
      %v1350 = vadd.f32 0.0, %v1349
      %v1351 = vpop.f32.mrb[0].mxu0
      %1352 = vmatprep.mubr.bf16.mxu0 0
      %1353 = vmatmul.mubr.bf16.gmra.mrb[0].mxu0 %v1304
      %v1354 = vpop.f32.mrb[0].mxu0
      %v1355 = vadd.f32 0.0, %v1354
      %v1356 = vpop.f32.mrb[0].mxu0
      %v1357 = vpop.f32.mrb[0].mxu0
      %v1358 = vadd.f32 0.0, %v1357
      %v1359 = vpop.f32.mrb[0].mxu0
      %1360 = vmatprep.mubr.bf16.mxu0 0
      %1361 = vmatmul.mubr.bf16.gmra.mrb[0].mxu0 %v1307
      %v1362 = vpop.f32.mrb[0].mxu0
      %v1363 = vadd.f32 0.0, %v1362
      %v1364 = vpop.f32.mrb[0].mxu0
      %v1365 = vpop.f32.mrb[0].mxu0
      %v1366 = vadd.f32 0.0, %v1365
      %v1367 = vpop.f32.mrb[0].mxu0
      %1368 = vmatprep.mubr.bf16.mxu0 0
      %1369 = vmatmul.mubr.bf16.gmra.mrb[0].mxu0 %v1310
      %v1370 = vpop.f32.mrb[0].mxu0
      %v1371 = vadd.f32 0.0, %v1370
      %v1372 = vpop.f32.mrb[0].mxu0
      %v1373 = vpop.f32.mrb[0].mxu0
      %v1374 = vadd.f32 0.0, %v1373
      %v1375 = vpop.f32.mrb[0].mxu0
      %1376 = vdwg.mxu0
      %v1377 = vmax.f32 %v1347, 0.0
      %v1378 = vmax.f32 %v1350, 0.0
      %v1379 = vmax.f32 %v1355, 0.0
      %v1380 = vmax.f32 %v1358, 0.0
      %v1381 = vmax.f32 %v1363, 0.0
      %v1382 = vmax.f32 %v1366, 0.0
      %v1383 = vmax.f32 %v1371, 0.0
      %v1384 = vmax.f32 %v1374, 0.0
      %1385 = vrot.lane.b32.xlu0 %v501, 104
      %v1386 = vpop.permute.xlu0 %1385
      %1387 = vrot.lane.b32.xlu0 %v502, 104
      %v1388 = vpop.permute.xlu0 %1387
      %1389 = vrot.lane.b32.xlu0 %v503, 104
      %v1390 = vpop.permute.xlu0 %1389
      %1391 = vrot.lane.b32.xlu0 %v504, 104
      %v1392 = vpop.permute.xlu0 %1391
      %1393 = vrot.lane.b32.xlu0 %v501, 72
      %v1394 = vpop.permute.xlu0 %1393
      %1395 = vrot.lane.b32.xlu0 %v502, 72
      %v1396 = vpop.permute.xlu0 %1395
      %1397 = vrot.lane.b32.xlu0 %v503, 72
      %v1398 = vpop.permute.xlu0 %1397
      %1399 = vrot.lane.b32.xlu0 %v504, 72
      %v1400 = vpop.permute.xlu0 %1399
      %v1402 = vsel %vm517, %v1386, 0
      %v1405 = vsel %vm517, %v1388, 0
      %v1408 = vsel %vm517, %v1390, 0
      %v1411 = vsel %vm517, %v1392, 0
      %v1414 = vsel %vm517, %v1394, 0
      %v1417 = vsel %vm517, %v1396, 0
      %v1420 = vsel %vm517, %v1398, 0
      %v1423 = vsel %vm517, %v1400, 0
      %1425 = vmatprep.subr.bf16.mxu0 0
      %1426 = vmatpush1.bf16.xpose.msra.mxu0 %v1414
      %1427 = vmatprep.subr.bf16.mxu0 0
      %1428 = vmatpush1.bf16.xpose.msra.mxu0 %v1417
      %1429 = vmatprep.subr.bf16.mxu0 0
      %1430 = vmatpush1.bf16.xpose.msra.mxu0 %v1420
      %1431 = vmatprep.subr.bf16.mxu0 0
      %1432 = vmatpush1.bf16.xpose.msra.mxu0 %v1423
      %1433 = vmatprep.subr.bf16.mxu0 0
      %1434 = vmatpush1.bf16.xpose.msra.mxu0 0
      %1435 = vmatprep.subr.bf16.mxu0 0
      %1436 = vmatpush1.bf16.xpose.msra.mxu0 0
      %1437 = vmatprep.subr.bf16.mxu0 0
      %1438 = vmatpush1.bf16.xpose.msra.mxu0 0
      %1439 = vmatprep.subr.bf16.mxu0 0
      %1440 = vmatpush1.bf16.xpose.msra.mxu0 0
      %1441 = vmatprep.subr.bf16.mxu0 0
      %1442 = vmatpush1.bf16.xpose.msra.mxu0 0
      %1443 = vmatprep.subr.bf16.mxu0 0
      %1444 = vmatpush1.bf16.xpose.msra.mxu0 0
      %1445 = vmatprep.subr.bf16.mxu0 0
      %1446 = vmatpush1.bf16.xpose.msra.mxu0 0
      %1447 = vmatprep.subr.bf16.mxu0 0
      %1448 = vmatpush1.bf16.xpose.msra.mxu0 0
      %1449 = vmatprep.subr.bf16.mxu0 0
      %1450 = vmatpush1.bf16.xpose.msra.mxu0 0
      %1451 = vmatprep.subr.bf16.mxu0 0
      %1452 = vmatpush1.bf16.xpose.msra.mxu0 0
      %1453 = vmatprep.subr.bf16.mxu0 0
      %1454 = vmatpush1.bf16.xpose.msra.mxu0 0
      %1455 = vmatprep.subr.bf16.mxu0 0
      %1456 = vmatpush1.bf16.xpose.msra.mxu0 0
      %1457 = vmatprep.mubr.bf16.mxu0 0
      %1458 = vmatmul.mubr.bf16.gmra.mrb[0].mxu0 %v1402
      %v1459 = vpop.f32.mrb[0].mxu0
      %v1460 = vadd.f32 0.0, %v1459
      %v1461 = vpop.f32.mrb[0].mxu0
      %v1462 = vpop.f32.mrb[0].mxu0
      %v1463 = vadd.f32 0.0, %v1462
      %v1464 = vpop.f32.mrb[0].mxu0
      %1465 = vmatprep.mubr.bf16.mxu0 0
      %1466 = vmatmul.mubr.bf16.gmra.mrb[0].mxu0 %v1405
      %v1467 = vpop.f32.mrb[0].mxu0
      %v1468 = vadd.f32 0.0, %v1467
      %v1469 = vpop.f32.mrb[0].mxu0
      %v1470 = vpop.f32.mrb[0].mxu0
      %v1471 = vadd.f32 0.0, %v1470
      %v1472 = vpop.f32.mrb[0].mxu0
      %1473 = vmatprep.mubr.bf16.mxu0 0
      %1474 = vmatmul.mubr.bf16.gmra.mrb[0].mxu0 %v1408
      %v1475 = vpop.f32.mrb[0].mxu0
      %v1476 = vadd.f32 0.0, %v1475
      %v1477 = vpop.f32.mrb[0].mxu0
      %v1478 = vpop.f32.mrb[0].mxu0
      %v1479 = vadd.f32 0.0, %v1478
      %v1480 = vpop.f32.mrb[0].mxu0
      %1481 = vmatprep.mubr.bf16.mxu0 0
      %1482 = vmatmul.mubr.bf16.gmra.mrb[0].mxu0 %v1411
      %v1483 = vpop.f32.mrb[0].mxu0
      %v1484 = vadd.f32 0.0, %v1483
      %v1485 = vpop.f32.mrb[0].mxu0
      %v1486 = vpop.f32.mrb[0].mxu0
      %v1487 = vadd.f32 0.0, %v1486
      %v1488 = vpop.f32.mrb[0].mxu0
      %1489 = vdwg.mxu0
      %v1490 = vsel %vm607, %v1460, -inf
      %1491 = vmax.xlane.f32.xlu0 %v1490
      %v1492 = vpop.xlane.xlu0 %1491
      %v1493 = vsel %vm607, %v1463, -inf
      %1494 = vmax.xlane.f32.xlu0 %v1493
      %v1495 = vpop.xlane.xlu0 %1494
      %v1496 = vsel %vm607, %v1468, -inf
      %1497 = vmax.xlane.f32.xlu0 %v1496
      %v1498 = vpop.xlane.xlu0 %1497
      %v1499 = vsel %vm607, %v1471, -inf
      %1500 = vmax.xlane.f32.xlu0 %v1499
      %v1501 = vpop.xlane.xlu0 %1500
      %v1502 = vsel %vm607, %v1476, -inf
      %1503 = vmax.xlane.f32.xlu0 %v1502
      %v1504 = vpop.xlane.xlu0 %1503
      %v1505 = vsel %vm607, %v1479, -inf
      %1506 = vmax.xlane.f32.xlu0 %v1505
      %v1507 = vpop.xlane.xlu0 %1506
      %v1508 = vsel %vm607, %v1484, -inf
      %1509 = vmax.xlane.f32.xlu0 %v1508
      %v1510 = vpop.xlane.xlu0 %1509
      %v1511 = vsel %vm607, %v1487, -inf
      %1512 = vmax.xlane.f32.xlu0 %v1511
      %v1513 = vpop.xlane.xlu0 %1512
      %v1514 = vsub.f32 %v1460, %v1492
      %v1515 = vsub.f32 %v1463, %v1495
      %v1516 = vsub.f32 %v1468, %v1498
      %v1517 = vsub.f32 %v1471, %v1501
      %v1518 = vsub.f32 %v1476, %v1504
      %v1519 = vsub.f32 %v1479, %v1507
      %v1520 = vsub.f32 %v1484, %v1510
      %v1521 = vsub.f32 %v1487, %v1513
      %v1522 = vmul.f32 %v1514, 1.442695
      %v1523 = vpow.pop %v1522
      %v1524 = vmul.f32 %v1515, 1.442695
      %v1525 = vpow.pop %v1524
      %v1526 = vmul.f32 %v1516, 1.442695
      %v1527 = vpow.pop %v1526
      %v1528 = vmul.f32 %v1517, 1.442695
      %v1529 = vpow.pop %v1528
      %v1530 = vmul.f32 %v1518, 1.442695
      %v1531 = vpow.pop %v1530
      %v1532 = vmul.f32 %v1519, 1.442695
      %v1533 = vpow.pop %v1532
      %v1534 = vmul.f32 %v1520, 1.442695
      %v1535 = vpow.pop %v1534
      %v1536 = vmul.f32 %v1521, 1.442695
      %v1537 = vpow.pop %v1536
      %v1538 = vsel %vm607, %v1523, 0.0
      %1539 = vadd.xlane.f32.xlu0 %v1538
      %v1540 = vpop.xlane.xlu0 %1539
      %v1541 = vsel %vm607, %v1525, 0.0
      %1542 = vadd.xlane.f32.xlu0 %v1541
      %v1543 = vpop.xlane.xlu0 %1542
      %v1544 = vsel %vm607, %v1527, 0.0
      %1545 = vadd.xlane.f32.xlu0 %v1544
      %v1546 = vpop.xlane.xlu0 %1545
      %v1547 = vsel %vm607, %v1529, 0.0
      %1548 = vadd.xlane.f32.xlu0 %v1547
      %v1549 = vpop.xlane.xlu0 %1548
      %v1550 = vsel %vm607, %v1531, 0.0
      %1551 = vadd.xlane.f32.xlu0 %v1550
      %v1552 = vpop.xlane.xlu0 %1551
      %v1553 = vsel %vm607, %v1533, 0.0
      %1554 = vadd.xlane.f32.xlu0 %v1553
      %v1555 = vpop.xlane.xlu0 %1554
      %v1556 = vsel %vm607, %v1535, 0.0
      %1557 = vadd.xlane.f32.xlu0 %v1556
      %v1558 = vpop.xlane.xlu0 %1557
      %v1559 = vsel %vm607, %v1537, 0.0
      %1560 = vadd.xlane.f32.xlu0 %v1559
      %v1561 = vpop.xlane.xlu0 %1560
      %v1562 = vrcp.pop %v1540
      %v1563 = vrcp.pop %v1543
      %v1564 = vrcp.pop %v1546
      %v1565 = vrcp.pop %v1549
      %v1566 = vrcp.pop %v1552
      %v1567 = vrcp.pop %v1555
      %v1568 = vrcp.pop %v1558
      %v1569 = vrcp.pop %v1561
      %v1570 = vmul.f32 %v1523, %v1562
      %v1571 = vmul.f32 %v1525, %v1563
      %v1572 = vmul.f32 %v1527, %v1564
      %v1573 = vmul.f32 %v1529, %v1565
      %v1574 = vmul.f32 %v1531, %v1566
      %v1575 = vmul.f32 %v1533, %v1567
      %v1576 = vmul.f32 %v1535, %v1568
      %v1577 = vmul.f32 %v1537, %v1569
      %v1578 = vpack.c.bf16 %v1571, %v1570
      %v1579 = vpack.c.bf16 %v1573, %v1572
      %v1580 = vpack.c.bf16 %v1575, %v1574
      %v1581 = vpack.c.bf16 %v1577, %v1576
      %1582 = vrot.lane.b32.xlu0 %v501, 16
      %v1583 = vpop.permute.xlu0 %1582
      %1584 = vrot.lane.b32.xlu0 %v502, 16
      %v1585 = vpop.permute.xlu0 %1584
      %1586 = vrot.lane.b32.xlu0 %v503, 16
      %v1587 = vpop.permute.xlu0 %1586
      %1588 = vrot.lane.b32.xlu0 %v504, 16
      %v1589 = vpop.permute.xlu0 %1588
      %v1595 = vsel %vm607, %v1578, 0
      %v1598 = vsel %vm607, %v1579, 0
      %v1601 = vsel %vm607, %v1580, 0
      %v1604 = vsel %vm607, %v1581, 0
      %1606 = vmatprep.subr.bf16.mxu0 0
      %1607 = vmatpush1.bf16.msra.mxu0 %v1583
      %1608 = vmatprep.subr.bf16.mxu0 0
      %1609 = vmatpush1.bf16.msra.mxu0 %v1585
      %1610 = vmatprep.subr.bf16.mxu0 0
      %1611 = vmatpush1.bf16.msra.mxu0 %v1587
      %1612 = vmatprep.subr.bf16.mxu0 0
      %1613 = vmatpush1.bf16.msra.mxu0 %v1589
      %1614 = vmatprep.subr.bf16.mxu0 0
      %1615 = vmatpush1.bf16.msra.mxu0 0
      %1616 = vmatprep.subr.bf16.mxu0 0
      %1617 = vmatpush1.bf16.msra.mxu0 0
      %1618 = vmatprep.subr.bf16.mxu0 0
      %1619 = vmatpush1.bf16.msra.mxu0 0
      %1620 = vmatprep.subr.bf16.mxu0 0
      %1621 = vmatpush1.bf16.msra.mxu0 0
      %1622 = vmatprep.subr.bf16.mxu0 0
      %1623 = vmatpush1.bf16.msra.mxu0 0
      %1624 = vmatprep.subr.bf16.mxu0 0
      %1625 = vmatpush1.bf16.msra.mxu0 0
      %1626 = vmatprep.subr.bf16.mxu0 0
      %1627 = vmatpush1.bf16.msra.mxu0 0
      %1628 = vmatprep.subr.bf16.mxu0 0
      %1629 = vmatpush1.bf16.msra.mxu0 0
      %1630 = vmatprep.subr.bf16.mxu0 0
      %1631 = vmatpush1.bf16.msra.mxu0 0
      %1632 = vmatprep.subr.bf16.mxu0 0
      %1633 = vmatpush1.bf16.msra.mxu0 0
      %1634 = vmatprep.subr.bf16.mxu0 0
      %1635 = vmatpush1.bf16.msra.mxu0 0
      %1636 = vmatprep.subr.bf16.mxu0 0
      %1637 = vmatpush1.bf16.msra.mxu0 0
      %1638 = vmatprep.mubr.bf16.mxu0 0
      %1639 = vmatmul.mubr.bf16.gmra.mrb[0].mxu0 %v1595
      %v1640 = vpop.f32.mrb[0].mxu0
      %v1641 = vadd.f32 0.0, %v1640
      %v1642 = vpop.f32.mrb[0].mxu0
      %v1643 = vpop.f32.mrb[0].mxu0
      %v1644 = vadd.f32 0.0, %v1643
      %v1645 = vpop.f32.mrb[0].mxu0
      %1646 = vmatprep.mubr.bf16.mxu0 0
      %1647 = vmatmul.mubr.bf16.gmra.mrb[0].mxu0 %v1598
      %v1648 = vpop.f32.mrb[0].mxu0
      %v1649 = vadd.f32 0.0, %v1648
      %v1650 = vpop.f32.mrb[0].mxu0
      %v1651 = vpop.f32.mrb[0].mxu0
      %v1652 = vadd.f32 0.0, %v1651
      %v1653 = vpop.f32.mrb[0].mxu0
      %1654 = vmatprep.mubr.bf16.mxu0 0
      %1655 = vmatmul.mubr.bf16.gmra.mrb[0].mxu0 %v1601
      %v1656 = vpop.f32.mrb[0].mxu0
      %v1657 = vadd.f32 0.0, %v1656
      %v1658 = vpop.f32.mrb[0].mxu0
      %v1659 = vpop.f32.mrb[0].mxu0
      %v1660 = vadd.f32 0.0, %v1659
      %v1661 = vpop.f32.mrb[0].mxu0
      %1662 = vmatprep.mubr.bf16.mxu0 0
      %1663 = vmatmul.mubr.bf16.gmra.mrb[0].mxu0 %v1604
      %v1664 = vpop.f32.mrb[0].mxu0
      %v1665 = vadd.f32 0.0, %v1664
      %v1666 = vpop.f32.mrb[0].mxu0
      %v1667 = vpop.f32.mrb[0].mxu0
      %v1668 = vadd.f32 0.0, %v1667
      %v1669 = vpop.f32.mrb[0].mxu0
      %1670 = vdwg.mxu0
      %v1671 = vmax.f32 %v1641, 0.0
      %v1672 = vmax.f32 %v1644, 0.0
      %v1673 = vmax.f32 %v1649, 0.0
      %v1674 = vmax.f32 %v1652, 0.0
      %v1675 = vmax.f32 %v1657, 0.0
      %v1676 = vmax.f32 %v1660, 0.0
      %v1677 = vmax.f32 %v1665, 0.0
      %v1678 = vmax.f32 %v1668, 0.0
      %1687 = vrot.lane.b32.xlu0 %v1083, 16
      %v1688 = vpop.permute.xlu0 %1687
      %1689 = vrot.lane.b32.xlu0 %v1084, 16
      %v1690 = vpop.permute.xlu0 %1689
      %1691 = vrot.lane.b32.xlu0 %v1085, 16
      %v1692 = vpop.permute.xlu0 %1691
      %1693 = vrot.lane.b32.xlu0 %v1086, 16
      %v1694 = vpop.permute.xlu0 %1693
      %1695 = vrot.lane.b32.xlu0 %v1087, 16
      %v1696 = vpop.permute.xlu0 %1695
      %1697 = vrot.lane.b32.xlu0 %v1088, 16
      %v1698 = vpop.permute.xlu0 %1697
      %1699 = vrot.lane.b32.xlu0 %v1089, 16
      %v1700 = vpop.permute.xlu0 %1699
      %1701 = vrot.lane.b32.xlu0 %v1090, 16
      %v1702 = vpop.permute.xlu0 %1701
      %1719 = vrot.lane.b32.xlu0 %v1377, 32
      %v1720 = vpop.permute.xlu0 %1719
      %1721 = vrot.lane.b32.xlu0 %v1378, 32
      %v1722 = vpop.permute.xlu0 %1721
      %1723 = vrot.lane.b32.xlu0 %v1379, 32
      %v1724 = vpop.permute.xlu0 %1723
      %1725 = vrot.lane.b32.xlu0 %v1380, 32
      %v1726 = vpop.permute.xlu0 %1725
      %1727 = vrot.lane.b32.xlu0 %v1381, 32
      %v1728 = vpop.permute.xlu0 %1727
      %1729 = vrot.lane.b32.xlu0 %v1382, 32
      %v1730 = vpop.permute.xlu0 %1729
      %1731 = vrot.lane.b32.xlu0 %v1383, 32
      %v1732 = vpop.permute.xlu0 %1731
      %1733 = vrot.lane.b32.xlu0 %v1384, 32
      %v1734 = vpop.permute.xlu0 %1733
      %1751 = vrot.lane.b32.xlu0 %v1671, 48
      %v1752 = vpop.permute.xlu0 %1751
      %1753 = vrot.lane.b32.xlu0 %v1672, 48
      %v1754 = vpop.permute.xlu0 %1753
      %1755 = vrot.lane.b32.xlu0 %v1673, 48
      %v1756 = vpop.permute.xlu0 %1755
      %1757 = vrot.lane.b32.xlu0 %v1674, 48
      %v1758 = vpop.permute.xlu0 %1757
      %1759 = vrot.lane.b32.xlu0 %v1675, 48
      %v1760 = vpop.permute.xlu0 %1759
      %1761 = vrot.lane.b32.xlu0 %v1676, 48
      %v1762 = vpop.permute.xlu0 %1761
      %1763 = vrot.lane.b32.xlu0 %v1677, 48
      %v1764 = vpop.permute.xlu0 %1763
      %1765 = vrot.lane.b32.xlu0 %v1678, 48
      %v1766 = vpop.permute.xlu0 %1765
      %vm1775 = vcmask 130048
      %v1776 = vsel %vm1775, %v789, %v1688
      %v1777 = vsel %vm1775, %v790, %v1690
      %v1778 = vsel %vm1775, %v791, %v1692
      %v1779 = vsel %vm1775, %v792, %v1694
      %v1780 = vsel %vm1775, %v793, %v1696
      %v1781 = vsel %vm1775, %v794, %v1698
      %v1782 = vsel %vm1775, %v795, %v1700
      %v1783 = vsel %vm1775, %v796, %v1702
      %v1784 = vsel %vm423, %v1776, %v1720
      %v1785 = vsel %vm423, %v1777, %v1722
      %v1786 = vsel %vm423, %v1778, %v1724
      %v1787 = vsel %vm423, %v1779, %v1726
      %v1788 = vsel %vm423, %v1780, %v1728
      %v1789 = vsel %vm423, %v1781, %v1730
      %v1790 = vsel %vm423, %v1782, %v1732
      %v1791 = vsel %vm423, %v1783, %v1734
      %vm1792 = vcmask 392192
      %v1793 = vsel %vm1792, %v1784, %v1752
      %v1794 = vsel %vm1792, %v1785, %v1754
      %v1795 = vsel %vm1792, %v1786, %v1756
      %v1796 = vsel %vm1792, %v1787, %v1758
      %v1797 = vsel %vm1792, %v1788, %v1760
      %v1798 = vsel %vm1792, %v1789, %v1762
      %v1799 = vsel %vm1792, %v1790, %v1764
      %v1800 = vsel %vm1792, %v1791, %v1766
      %v1801 = vpack.c.bf16 %v1794, %v1793
      %v1802 = vpack.c.bf16 %v1796, %v1795
      %v1803 = vpack.c.bf16 %v1798, %v1797
      %v1804 = vpack.c.bf16 %v1800, %v1799
      %v1805 = vld [vmem:[%s3] sm:$0xf]
      %v1806 = vld [vmem:[%s3 + $0x4] sm:$0xf]
      %v1807 = vld [vmem:[%s3 + $0x8] sm:$0xf]
      %v1808 = vld [vmem:[%s3 + $0xc] sm:$0xf]
      %v1809 = vld [vmem:[%s3 + $0x10] sm:$0xf]
      %v1810 = vld [vmem:[%s3 + $0x14] sm:$0xf]
      %v1811 = vld [vmem:[%s3 + $0x18] sm:$0xf]
      %v1812 = vld [vmem:[%s3 + $0x1c] sm:$0xf]
      %v1813 = vld [vmem:[%s4] sm:$0x1]
      %v1815 = vlaneseq
      %v1816 = vshrl.u32 %v1815, 7
      %v1817 = vsub.s32 0, %v1816
      %v1818 = vrot.slane %v1813, %v1817
      %v1828 = vunpack.c.l.b16 %v1805
      %v1829 = vunpack.c.l.b16 %v1806
      %v1830 = vunpack.c.l.b16 %v1807
      %v1831 = vunpack.c.l.b16 %v1808
      %v1832 = vunpack.c.l.b16 %v1809
      %v1833 = vunpack.c.l.b16 %v1810
      %v1834 = vunpack.c.l.b16 %v1811
      %v1835 = vunpack.c.l.b16 %v1812
      %v1836 = vpack.c.b16 %v1829, %v1828
      %v1837 = vpack.c.b16 %v1831, %v1830
      %v1838 = vpack.c.b16 %v1833, %v1832
      %v1839 = vpack.c.b16 %v1835, %v1834
      %v1845 = vsel %vm607, %v1801, 0
      %v1848 = vsel %vm607, %v1802, 0
      %v1851 = vsel %vm607, %v1803, 0
      %v1854 = vsel %vm607, %v1804, 0
      %1856 = vmatprep.subr.bf16.mxu0 0
      %1857 = vmatpush1.bf16.msra.mxu0 %v1836
      %1858 = vmatprep.subr.bf16.mxu0 0
      %1859 = vmatpush1.bf16.msra.mxu0 %v1837
      %1860 = vmatprep.subr.bf16.mxu0 0
      %1861 = vmatpush1.bf16.msra.mxu0 %v1838
      %1862 = vmatprep.subr.bf16.mxu0 0
      %1863 = vmatpush1.bf16.msra.mxu0 %v1839
      %1864 = vmatprep.subr.bf16.mxu0 0
      %1865 = vmatpush1.bf16.msra.mxu0 0
      %1866 = vmatprep.subr.bf16.mxu0 0
      %1867 = vmatpush1.bf16.msra.mxu0 0
      %1868 = vmatprep.subr.bf16.mxu0 0
      %1869 = vmatpush1.bf16.msra.mxu0 0
      %1870 = vmatprep.subr.bf16.mxu0 0
      %1871 = vmatpush1.bf16.msra.mxu0 0
      %1872 = vmatprep.subr.bf16.mxu0 0
      %1873 = vmatpush1.bf16.msra.mxu0 0
      %1874 = vmatprep.subr.bf16.mxu0 0
      %1875 = vmatpush1.bf16.msra.mxu0 0
      %1876 = vmatprep.subr.bf16.mxu0 0
      %1877 = vmatpush1.bf16.msra.mxu0 0
      %1878 = vmatprep.subr.bf16.mxu0 0
      %1879 = vmatpush1.bf16.msra.mxu0 0
      %1880 = vmatprep.subr.bf16.mxu0 0
      %1881 = vmatpush1.bf16.msra.mxu0 0
      %1882 = vmatprep.subr.bf16.mxu0 0
      %1883 = vmatpush1.bf16.msra.mxu0 0
      %1884 = vmatprep.subr.bf16.mxu0 0
      %1885 = vmatpush1.bf16.msra.mxu0 0
      %1886 = vmatprep.subr.bf16.mxu0 0
      %1887 = vmatpush1.bf16.msra.mxu0 0
      %1888 = vmatprep.mubr.bf16.mxu0 0
      %1889 = vmatmul.mubr.bf16.gmra.mrb[0].mxu0 %v1845
      %v1890 = vpop.f32.mrb[0].mxu0
      %v1891 = vadd.f32 %v1818, %v1890
      %v1892 = vpop.f32.mrb[0].mxu0
      %v1893 = vpop.f32.mrb[0].mxu0
      %v1894 = vadd.f32 %v1818, %v1893
      %v1895 = vpop.f32.mrb[0].mxu0
      %1896 = vmatprep.mubr.bf16.mxu0 0
      %1897 = vmatmul.mubr.bf16.gmra.mrb[0].mxu0 %v1848
      %v1898 = vpop.f32.mrb[0].mxu0
      %v1899 = vadd.f32 %v1818, %v1898
      %v1900 = vpop.f32.mrb[0].mxu0
      %v1901 = vpop.f32.mrb[0].mxu0
      %v1902 = vadd.f32 %v1818, %v1901
      %v1903 = vpop.f32.mrb[0].mxu0
      %1904 = vmatprep.mubr.bf16.mxu0 0
      %1905 = vmatmul.mubr.bf16.gmra.mrb[0].mxu0 %v1851
      %v1906 = vpop.f32.mrb[0].mxu0
      %v1907 = vadd.f32 %v1818, %v1906
      %v1908 = vpop.f32.mrb[0].mxu0
      %v1909 = vpop.f32.mrb[0].mxu0
      %v1910 = vadd.f32 %v1818, %v1909
      %v1911 = vpop.f32.mrb[0].mxu0
      %1912 = vmatprep.mubr.bf16.mxu0 0
      %1913 = vmatmul.mubr.bf16.gmra.mrb[0].mxu0 %v1854
      %v1914 = vpop.f32.mrb[0].mxu0
      %v1915 = vadd.f32 %v1818, %v1914
      %v1916 = vpop.f32.mrb[0].mxu0
      %v1917 = vpop.f32.mrb[0].mxu0
      %v1918 = vadd.f32 %v1818, %v1917
      %v1919 = vpop.f32.mrb[0].mxu0
      %1920 = vdwg.mxu0
      %v1921 = vadd.f32 %v388, %v1891
      %v1922 = vadd.f32 %v389, %v1894
      %v1923 = vadd.f32 %v390, %v1899
      %v1924 = vadd.f32 %v391, %v1902
      %v1925 = vadd.f32 %v392, %v1907
      %v1926 = vadd.f32 %v393, %v1910
      %v1927 = vadd.f32 %v394, %v1915
      %v1928 = vadd.f32 %v395, %v1918
      %v1929 = vpack.c.bf16 %v1922, %v1921
      %v1930 = vpack.c.bf16 %v1924, %v1923
      %v1931 = vpack.c.bf16 %v1926, %v1925
      %v1932 = vpack.c.bf16 %v1928, %v1927
      %v1933 = vld [vmem:[%s5] sm:$0xf]
      %v1934 = vld [vmem:[%s5 + $0x4] sm:$0xf]
      %v1935 = vld [vmem:[%s5 + $0x8] sm:$0xf]
      %v1936 = vld [vmem:[%s5 + $0xc] sm:$0xf]
      %v1937 = vld [vmem:[%s6] sm:$0x1]
      %v1939 = vlaneseq
      %v1940 = vshrl.u32 %v1939, 7
      %v1941 = vsub.s32 0, %v1940
      %v1942 = vrot.slane %v1937, %v1941
      %v1948 = vunpack.c.l.b16 %v1933
      %v1949 = vunpack.c.l.b16 %v1934
      %v1950 = vunpack.c.l.b16 %v1935
      %v1951 = vunpack.c.l.b16 %v1936
      %v1952 = vpack.c.b16 %v1949, %v1948
      %v1953 = vpack.c.b16 %v1951, %v1950
      %v1957 = vsel %vm423, %v1929, 0
      %v1960 = vsel %vm423, %v1930, 0
      %v1963 = vsel %vm423, %v1931, 0
      %v1966 = vsel %vm423, %v1932, 0
      %1968 = vmatprep.subr.bf16.mxu0 0
      %1969 = vmatpush1.bf16.msra.mxu0 %v1952
      %1970 = vmatprep.subr.bf16.mxu0 0
      %1971 = vmatpush1.bf16.msra.mxu0 %v1953
      %1972 = vmatprep.subr.bf16.mxu0 0
      %1973 = vmatpush1.bf16.msra.mxu0 0
      %1974 = vmatprep.subr.bf16.mxu0 0
      %1975 = vmatpush1.bf16.msra.mxu0 0
      %1976 = vmatprep.subr.bf16.mxu0 0
      %1977 = vmatpush1.bf16.msra.mxu0 0
      %1978 = vmatprep.subr.bf16.mxu0 0
      %1979 = vmatpush1.bf16.msra.mxu0 0
      %1980 = vmatprep.subr.bf16.mxu0 0
      %1981 = vmatpush1.bf16.msra.mxu0 0
      %1982 = vmatprep.subr.bf16.mxu0 0
      %1983 = vmatpush1.bf16.msra.mxu0 0
      %1984 = vmatprep.subr.bf16.mxu0 0
      %1985 = vmatpush1.bf16.msra.mxu0 0
      %1986 = vmatprep.subr.bf16.mxu0 0
      %1987 = vmatpush1.bf16.msra.mxu0 0
      %1988 = vmatprep.subr.bf16.mxu0 0
      %1989 = vmatpush1.bf16.msra.mxu0 0
      %1990 = vmatprep.subr.bf16.mxu0 0
      %1991 = vmatpush1.bf16.msra.mxu0 0
      %1992 = vmatprep.subr.bf16.mxu0 0
      %1993 = vmatpush1.bf16.msra.mxu0 0
      %1994 = vmatprep.subr.bf16.mxu0 0
      %1995 = vmatpush1.bf16.msra.mxu0 0
      %1996 = vmatprep.subr.bf16.mxu0 0
      %1997 = vmatpush1.bf16.msra.mxu0 0
      %1998 = vmatprep.subr.bf16.mxu0 0
      %1999 = vmatpush1.bf16.msra.mxu0 0
      %2000 = vmatprep.mubr.bf16.mxu0 0
      %2001 = vmatmul.mubr.bf16.gmra.mrb[0].mxu0 %v1957
      %v2002 = vpop.f32.mrb[0].mxu0
      %v2003 = vadd.f32 %v1942, %v2002
      %v2004 = vpop.f32.mrb[0].mxu0
      %v2005 = vpop.f32.mrb[0].mxu0
      %v2006 = vadd.f32 %v1942, %v2005
      %v2007 = vpop.f32.mrb[0].mxu0
      %2008 = vmatprep.mubr.bf16.mxu0 0
      %2009 = vmatmul.mubr.bf16.gmra.mrb[0].mxu0 %v1960
      %v2010 = vpop.f32.mrb[0].mxu0
      %v2011 = vadd.f32 %v1942, %v2010
      %v2012 = vpop.f32.mrb[0].mxu0
      %v2013 = vpop.f32.mrb[0].mxu0
      %v2014 = vadd.f32 %v1942, %v2013
      %v2015 = vpop.f32.mrb[0].mxu0
      %2016 = vmatprep.mubr.bf16.mxu0 0
      %2017 = vmatmul.mubr.bf16.gmra.mrb[0].mxu0 %v1963
      %v2018 = vpop.f32.mrb[0].mxu0
      %v2019 = vadd.f32 %v1942, %v2018
      %v2020 = vpop.f32.mrb[0].mxu0
      %v2021 = vpop.f32.mrb[0].mxu0
      %v2022 = vadd.f32 %v1942, %v2021
      %v2023 = vpop.f32.mrb[0].mxu0
      %2024 = vmatprep.mubr.bf16.mxu0 0
      %2025 = vmatmul.mubr.bf16.gmra.mrb[0].mxu0 %v1966
      %v2026 = vpop.f32.mrb[0].mxu0
      %v2027 = vadd.f32 %v1942, %v2026
      %v2028 = vpop.f32.mrb[0].mxu0
      %v2029 = vpop.f32.mrb[0].mxu0
      %v2030 = vadd.f32 %v1942, %v2029
      %v2031 = vpop.f32.mrb[0].mxu0
      %2032 = vdwg.mxu0
      %v2033 = vlaneseq
      %v2034 = vshrl.u32 %v2033, 7
      %v2035 = vadd.s32 %v2034, 8
      %v2036 = vadd.s32 %v2034, 16
      %v2037 = vadd.s32 %v2034, 24
      %v2038 = vadd.s32 %v2034, 32
      %v2039 = vadd.s32 %v2034, 40
      %v2040 = vadd.s32 %v2034, 48
      %v2041 = vadd.s32 %v2034, 56
      %vm2042 = vcmp.lt.s32.totalorder %v2034, 0
      %v2043 = vsub.s32 0, %v2034
      %v2044 = vsel %vm2042, %v2043, %v2034
      %v2045 = vshrl.u32 %v2044, 3
      %v2046 = vand.u32 %v2044, 7
      %v2047 = vsub.s32 0, %v2046
      %v2048 = vsel %vm2042, %v2047, %v2046
      %vm2049 = vcmp.lt.s32.totalorder %v2035, 0
      %v2050 = vsub.s32 0, %v2035
      %v2051 = vsel %vm2049, %v2050, %v2035
      %v2052 = vshrl.u32 %v2051, 3
      %v2053 = vand.u32 %v2051, 7
      %v2054 = vsub.s32 0, %v2053
      %v2055 = vsel %vm2049, %v2054, %v2053
      %vm2056 = vcmp.lt.s32.totalorder %v2036, 0
      %v2057 = vsub.s32 0, %v2036
      %v2058 = vsel %vm2056, %v2057, %v2036
      %v2059 = vshrl.u32 %v2058, 3
      %v2060 = vand.u32 %v2058, 7
      %v2061 = vsub.s32 0, %v2060
      %v2062 = vsel %vm2056, %v2061, %v2060
      %vm2063 = vcmp.lt.s32.totalorder %v2037, 0
      %v2064 = vsub.s32 0, %v2037
      %v2065 = vsel %vm2063, %v2064, %v2037
      %v2066 = vshrl.u32 %v2065, 3
      %v2067 = vand.u32 %v2065, 7
      %v2068 = vsub.s32 0, %v2067
      %v2069 = vsel %vm2063, %v2068, %v2067
      %vm2070 = vcmp.lt.s32.totalorder %v2038, 0
      %v2071 = vsub.s32 0, %v2038
      %v2072 = vsel %vm2070, %v2071, %v2038
      %v2073 = vshrl.u32 %v2072, 3
      %v2074 = vand.u32 %v2072, 7
      %v2075 = vsub.s32 0, %v2074
      %v2076 = vsel %vm2070, %v2075, %v2074
      %vm2077 = vcmp.lt.s32.totalorder %v2039, 0
      %v2078 = vsub.s32 0, %v2039
      %v2079 = vsel %vm2077, %v2078, %v2039
      %v2080 = vshrl.u32 %v2079, 3
      %v2081 = vand.u32 %v2079, 7
      %v2082 = vsub.s32 0, %v2081
      %v2083 = vsel %vm2077, %v2082, %v2081
      %vm2084 = vcmp.lt.s32.totalorder %v2040, 0
      %v2085 = vsub.s32 0, %v2040
      %v2086 = vsel %vm2084, %v2085, %v2040
      %v2087 = vshrl.u32 %v2086, 3
      %v2088 = vand.u32 %v2086, 7
      %v2089 = vsub.s32 0, %v2088
      %v2090 = vsel %vm2084, %v2089, %v2088
      %vm2091 = vcmp.lt.s32.totalorder %v2041, 0
      %v2092 = vsub.s32 0, %v2041
      %v2093 = vsel %vm2091, %v2092, %v2041
      %v2094 = vshrl.u32 %v2093, 3
      %v2095 = vand.u32 %v2093, 7
      %v2096 = vsub.s32 0, %v2095
      %v2097 = vsel %vm2091, %v2096, %v2095
      %vm2098 = vcmp.ne.s32.totalorder %v2048, 0
      %vm2099 = vcmp.ne.s32.totalorder %v2055, 0
      %vm2100 = vcmp.ne.s32.totalorder %v2062, 0
      %vm2101 = vcmp.ne.s32.totalorder %v2069, 0
      %vm2102 = vcmp.ne.s32.totalorder %v2076, 0
      %vm2103 = vcmp.ne.s32.totalorder %v2083, 0
      %vm2104 = vcmp.ne.s32.totalorder %v2090, 0
      %vm2105 = vcmp.ne.s32.totalorder %v2097, 0
      %vm2106 = vcmp.lt.s32.totalorder %v2048, 0
      %vm2107 = vcmp.lt.s32.totalorder %v2055, 0
      %vm2108 = vcmp.lt.s32.totalorder %v2062, 0
      %vm2109 = vcmp.lt.s32.totalorder %v2069, 0
      %vm2110 = vcmp.lt.s32.totalorder %v2076, 0
      %vm2111 = vcmp.lt.s32.totalorder %v2083, 0
      %vm2112 = vcmp.lt.s32.totalorder %v2090, 0
      %vm2113 = vcmp.lt.s32.totalorder %v2097, 0
      %vm2114 = vmand %vm2106, %vm2098
      %vm2115 = vmand %vm2107, %vm2099
      %vm2116 = vmand %vm2108, %vm2100
      %vm2117 = vmand %vm2109, %vm2101
      %vm2118 = vmand %vm2110, %vm2102
      %vm2119 = vmand %vm2111, %vm2103
      %vm2120 = vmand %vm2112, %vm2104
      %vm2121 = vmand %vm2113, %vm2105
      %v2122 = vadd.s32 %v2048, 8
      %v2123 = vadd.s32 %v2055, 8
      %v2124 = vadd.s32 %v2062, 8
      %v2125 = vadd.s32 %v2069, 8
      %v2126 = vadd.s32 %v2076, 8
      %v2127 = vadd.s32 %v2083, 8
      %v2128 = vadd.s32 %v2090, 8
      %v2129 = vadd.s32 %v2097, 8
      %v2130 = vsel %vm2114, %v2122, %v2048
      %v2131 = vsel %vm2115, %v2123, %v2055
      %v2132 = vsel %vm2116, %v2124, %v2062
      %v2133 = vsel %vm2117, %v2125, %v2069
      %v2134 = vsel %vm2118, %v2126, %v2076
      %v2135 = vsel %vm2119, %v2127, %v2083
      %v2136 = vsel %vm2120, %v2128, %v2090
      %v2137 = vsel %vm2121, %v2129, %v2097
      %vm2138 = vcmp.ge.s32.totalorder %v2130, 1
      %vm2139 = vcmp.ge.s32.totalorder %v2131, 1
      %vm2140 = vcmp.ge.s32.totalorder %v2132, 1
      %vm2141 = vcmp.ge.s32.totalorder %v2133, 1
      %vm2142 = vcmp.ge.s32.totalorder %v2134, 1
      %vm2143 = vcmp.ge.s32.totalorder %v2135, 1
      %vm2144 = vcmp.ge.s32.totalorder %v2136, 1
      %vm2145 = vcmp.ge.s32.totalorder %v2137, 1
      %v2146 = vsel %vm2138, 1.0, 0.0
      %v2147 = vsel %vm2139, 1.0, 0.0
      %v2148 = vsel %vm2140, 1.0, 0.0
      %v2149 = vsel %vm2141, 1.0, 0.0
      %v2150 = vsel %vm2142, 1.0, 0.0
      %v2151 = vsel %vm2143, 1.0, 0.0
      %v2152 = vsel %vm2144, 1.0, 0.0
      %v2153 = vsel %vm2145, 1.0, 0.0
      %vm2154 = vcmp.le.s32.totalorder %v2130, 6
      %vm2155 = vcmp.le.s32.totalorder %v2131, 6
      %vm2156 = vcmp.le.s32.totalorder %v2132, 6
      %vm2157 = vcmp.le.s32.totalorder %v2133, 6
      %vm2158 = vcmp.le.s32.totalorder %v2134, 6
      %vm2159 = vcmp.le.s32.totalorder %v2135, 6
      %vm2160 = vcmp.le.s32.totalorder %v2136, 6
      %vm2161 = vcmp.le.s32.totalorder %v2137, 6
      %v2162 = vsel %vm2154, 1.0, 0.0
      %v2163 = vsel %vm2155, 1.0, 0.0
      %v2164 = vsel %vm2156, 1.0, 0.0
      %v2165 = vsel %vm2157, 1.0, 0.0
      %v2166 = vsel %vm2158, 1.0, 0.0
      %v2167 = vsel %vm2159, 1.0, 0.0
      %v2168 = vsel %vm2160, 1.0, 0.0
      %v2169 = vsel %vm2161, 1.0, 0.0
      %vm2170 = vcmp.ge.s32.totalorder %v2034, 8
      %vm2171 = vcmp.ge.s32.totalorder %v2035, 8
      %vm2172 = vcmp.ge.s32.totalorder %v2036, 8
      %vm2173 = vcmp.ge.s32.totalorder %v2037, 8
      %vm2174 = vcmp.ge.s32.totalorder %v2038, 8
      %vm2175 = vcmp.ge.s32.totalorder %v2039, 8
      %vm2176 = vcmp.ge.s32.totalorder %v2040, 8
      %vm2177 = vcmp.ge.s32.totalorder %v2041, 8
      %v2178 = vsel %vm2170, 1.0, 0.0
      %v2179 = vsel %vm2171, 1.0, 0.0
      %v2180 = vsel %vm2172, 1.0, 0.0
      %v2181 = vsel %vm2173, 1.0, 0.0
      %v2182 = vsel %vm2174, 1.0, 0.0
      %v2183 = vsel %vm2175, 1.0, 0.0
      %v2184 = vsel %vm2176, 1.0, 0.0
      %v2185 = vsel %vm2177, 1.0, 0.0
      %vm2186 = vcmp.lt.s32.totalorder %v2034, 56
      %vm2187 = vcmp.lt.s32.totalorder %v2035, 56
      %vm2188 = vcmp.lt.s32.totalorder %v2036, 56
      %vm2189 = vcmp.lt.s32.totalorder %v2037, 56
      %vm2190 = vcmp.lt.s32.totalorder %v2038, 56
      %vm2191 = vcmp.lt.s32.totalorder %v2039, 56
      %vm2192 = vcmp.lt.s32.totalorder %v2040, 56
      %vm2193 = vcmp.lt.s32.totalorder %v2041, 56
      %v2194 = vsel %vm2186, 1.0, 0.0
      %v2195 = vsel %vm2187, 1.0, 0.0
      %v2196 = vsel %vm2188, 1.0, 0.0
      %v2197 = vsel %vm2189, 1.0, 0.0
      %v2198 = vsel %vm2190, 1.0, 0.0
      %v2199 = vsel %vm2191, 1.0, 0.0
      %v2200 = vsel %vm2192, 1.0, 0.0
      %v2201 = vsel %vm2193, 1.0, 0.0
      %v2202 = vld [vmem:[%s7] sm:$0xff]
      %v2203 = vld [vmem:[%s7 + $0x8] sm:$0x1]
      %v2204 = vmul.f32 %v2030, %v2178
      %v2205 = vmul.f32 %v2003, %v2179
      %v2206 = vmul.f32 %v2006, %v2180
      %v2207 = vmul.f32 %v2011, %v2181
      %v2208 = vmul.f32 %v2014, %v2182
      %v2209 = vmul.f32 %v2019, %v2183
      %v2210 = vmul.f32 %v2022, %v2184
      %v2211 = vmul.f32 %v2027, %v2185
      %v2212 = vlaneseq
      %v2213 = vshrl.u32 %v2212, 7
      %v2214 = vsub.s32 1, %v2213
      %v2215 = vrot.slane %v2202, %v2214
      %v2216 = vmul.f32 %v2204, %v2215
      %v2217 = vmul.f32 %v2205, %v2215
      %v2218 = vmul.f32 %v2206, %v2215
      %v2219 = vmul.f32 %v2207, %v2215
      %v2220 = vmul.f32 %v2208, %v2215
      %v2221 = vmul.f32 %v2209, %v2215
      %v2222 = vmul.f32 %v2210, %v2215
      %v2223 = vmul.f32 %v2211, %v2215
      %v2224 = vadd.f32 %v2216, 0.0
      %v2225 = vadd.f32 %v2217, 0.0
      %v2226 = vadd.f32 %v2218, 0.0
      %v2227 = vadd.f32 %v2219, 0.0
      %v2228 = vadd.f32 %v2220, 0.0
      %v2229 = vadd.f32 %v2221, 0.0
      %v2230 = vadd.f32 %v2222, 0.0
      %v2231 = vadd.f32 %v2223, 0.0
      %v2233 = vrot.slane %v2211, 7
      %vm2242 = vcmask 1040384
      %v2243 = vrot.slane %v2204, 7
      %v2244 = vrot.slane %v2205, 7
      %v2245 = vsel %vm2242, %v2243, %v2244
      %v2246 = vrot.slane %v2206, 7
      %v2247 = vsel %vm2242, %v2244, %v2246
      %v2248 = vrot.slane %v2207, 7
      %v2249 = vsel %vm2242, %v2246, %v2248
      %v2250 = vrot.slane %v2208, 7
      %v2251 = vsel %vm2242, %v2248, %v2250
      %v2252 = vrot.slane %v2209, 7
      %v2253 = vsel %vm2242, %v2250, %v2252
      %v2254 = vrot.slane %v2210, 7
      %v2255 = vsel %vm2242, %v2252, %v2254
      %v2256 = vsel %vm2242, %v2254, %v2233
      %v2265 = vsel %vm2242, %v2233, %v2243
      %v2266 = vmul.f32 %v2265, %v2146
      %v2267 = vmul.f32 %v2245, %v2147
      %v2268 = vmul.f32 %v2247, %v2148
      %v2269 = vmul.f32 %v2249, %v2149
      %v2270 = vmul.f32 %v2251, %v2150
      %v2271 = vmul.f32 %v2253, %v2151
      %v2272 = vmul.f32 %v2255, %v2152
      %v2273 = vmul.f32 %v2256, %v2153
      %v2274 = vlaneseq
      %v2275 = vshrl.u32 %v2274, 7
      %v2276 = vsub.s32 0, %v2275
      %v2277 = vrot.slane %v2202, %v2276
      %v2278 = vmul.f32 %v2266, %v2277
      %v2279 = vmul.f32 %v2267, %v2277
      %v2280 = vmul.f32 %v2268, %v2277
      %v2281 = vmul.f32 %v2269, %v2277
      %v2282 = vmul.f32 %v2270, %v2277
      %v2283 = vmul.f32 %v2271, %v2277
      %v2284 = vmul.f32 %v2272, %v2277
      %v2285 = vmul.f32 %v2273, %v2277
      %v2286 = vadd.f32 %v2224, %v2278
      %v2287 = vadd.f32 %v2225, %v2279
      %v2288 = vadd.f32 %v2226, %v2280
      %v2289 = vadd.f32 %v2227, %v2281
      %v2290 = vadd.f32 %v2228, %v2282
      %v2291 = vadd.f32 %v2229, %v2283
      %v2292 = vadd.f32 %v2230, %v2284
      %v2293 = vadd.f32 %v2231, %v2285
      %vm2294 = vcmask 1046528
      %v2295 = vrot.slane %v2204, 1
      %v2296 = vrot.slane %v2205, 1
      %v2297 = vsel %vm2294, %v2295, %v2296
      %v2298 = vrot.slane %v2206, 1
      %v2299 = vsel %vm2294, %v2296, %v2298
      %v2300 = vrot.slane %v2207, 1
      %v2301 = vsel %vm2294, %v2298, %v2300
      %v2302 = vrot.slane %v2208, 1
      %v2303 = vsel %vm2294, %v2300, %v2302
      %v2304 = vrot.slane %v2209, 1
      %v2305 = vsel %vm2294, %v2302, %v2304
      %v2306 = vrot.slane %v2210, 1
      %v2307 = vsel %vm2294, %v2304, %v2306
      %v2308 = vrot.slane %v2211, 1
      %v2309 = vsel %vm2294, %v2306, %v2308
      %v2319 = vsel %vm2294, %v2308, %v2295
      %v2320 = vmul.f32 %v2297, %v2162
      %v2321 = vmul.f32 %v2299, %v2163
      %v2322 = vmul.f32 %v2301, %v2164
      %v2323 = vmul.f32 %v2303, %v2165
      %v2324 = vmul.f32 %v2305, %v2166
      %v2325 = vmul.f32 %v2307, %v2167
      %v2326 = vmul.f32 %v2309, %v2168
      %v2327 = vmul.f32 %v2319, %v2169
      %v2328 = vlaneseq
      %v2329 = vshrl.u32 %v2328, 7
      %v2330 = vsub.s32 2, %v2329
      %v2331 = vrot.slane %v2202, %v2330
      %v2332 = vmul.f32 %v2320, %v2331
      %v2333 = vmul.f32 %v2321, %v2331
      %v2334 = vmul.f32 %v2322, %v2331
      %v2335 = vmul.f32 %v2323, %v2331
      %v2336 = vmul.f32 %v2324, %v2331
      %v2337 = vmul.f32 %v2325, %v2331
      %v2338 = vmul.f32 %v2326, %v2331
      %v2339 = vmul.f32 %v2327, %v2331
      %v2340 = vadd.f32 %v2286, %v2332
      %v2341 = vadd.f32 %v2287, %v2333
      %v2342 = vadd.f32 %v2288, %v2334
      %v2343 = vadd.f32 %v2289, %v2335
      %v2344 = vadd.f32 %v2290, %v2336
      %v2345 = vadd.f32 %v2291, %v2337
      %v2346 = vadd.f32 %v2292, %v2338
      %v2347 = vadd.f32 %v2293, %v2339
      %v2348 = vlaneseq
      %v2349 = vshrl.u32 %v2348, 7
      %v2350 = vsub.s32 4, %v2349
      %v2351 = vrot.slane %v2202, %v2350
      %v2352 = vmul.f32 %v2003, %v2351
      %v2353 = vmul.f32 %v2006, %v2351
      %v2354 = vmul.f32 %v2011, %v2351
      %v2355 = vmul.f32 %v2014, %v2351
      %v2356 = vmul.f32 %v2019, %v2351
      %v2357 = vmul.f32 %v2022, %v2351
      %v2358 = vmul.f32 %v2027, %v2351
      %v2359 = vmul.f32 %v2030, %v2351
      %v2360 = vadd.f32 %v2340, %v2352
      %v2361 = vadd.f32 %v2341, %v2353
      %v2362 = vadd.f32 %v2342, %v2354
      %v2363 = vadd.f32 %v2343, %v2355
      %v2364 = vadd.f32 %v2344, %v2356
      %v2365 = vadd.f32 %v2345, %v2357
      %v2366 = vadd.f32 %v2346, %v2358
      %v2367 = vadd.f32 %v2347, %v2359
      %v2369 = vrot.slane %v2030, 7
      %v2378 = vrot.slane %v2003, 7
      %v2379 = vrot.slane %v2006, 7
      %v2380 = vsel %vm2242, %v2378, %v2379
      %v2381 = vrot.slane %v2011, 7
      %v2382 = vsel %vm2242, %v2379, %v2381
      %v2383 = vrot.slane %v2014, 7
      %v2384 = vsel %vm2242, %v2381, %v2383
      %v2385 = vrot.slane %v2019, 7
      %v2386 = vsel %vm2242, %v2383, %v2385
      %v2387 = vrot.slane %v2022, 7
      %v2388 = vsel %vm2242, %v2385, %v2387
      %v2389 = vrot.slane %v2027, 7
      %v2390 = vsel %vm2242, %v2387, %v2389
      %v2391 = vsel %vm2242, %v2389, %v2369
      %v2400 = vsel %vm2242, %v2369, %v2378
      %v2401 = vmul.f32 %v2400, %v2146
      %v2402 = vmul.f32 %v2380, %v2147
      %v2403 = vmul.f32 %v2382, %v2148
      %v2404 = vmul.f32 %v2384, %v2149
      %v2405 = vmul.f32 %v2386, %v2150
      %v2406 = vmul.f32 %v2388, %v2151
      %v2407 = vmul.f32 %v2390, %v2152
      %v2408 = vmul.f32 %v2391, %v2153
      %v2409 = vlaneseq
      %v2410 = vshrl.u32 %v2409, 7
      %v2411 = vsub.s32 3, %v2410
      %v2412 = vrot.slane %v2202, %v2411
      %v2413 = vmul.f32 %v2401, %v2412
      %v2414 = vmul.f32 %v2402, %v2412
      %v2415 = vmul.f32 %v2403, %v2412
      %v2416 = vmul.f32 %v2404, %v2412
      %v2417 = vmul.f32 %v2405, %v2412
      %v2418 = vmul.f32 %v2406, %v2412
      %v2419 = vmul.f32 %v2407, %v2412
      %v2420 = vmul.f32 %v2408, %v2412
      %v2421 = vadd.f32 %v2360, %v2413
      %v2422 = vadd.f32 %v2361, %v2414
      %v2423 = vadd.f32 %v2362, %v2415
      %v2424 = vadd.f32 %v2363, %v2416
      %v2425 = vadd.f32 %v2364, %v2417
      %v2426 = vadd.f32 %v2365, %v2418
      %v2427 = vadd.f32 %v2366, %v2419
      %v2428 = vadd.f32 %v2367, %v2420
      %v2429 = vrot.slane %v2003, 1
      %v2430 = vrot.slane %v2006, 1
      %v2431 = vsel %vm2294, %v2429, %v2430
      %v2432 = vrot.slane %v2011, 1
      %v2433 = vsel %vm2294, %v2430, %v2432
      %v2434 = vrot.slane %v2014, 1
      %v2435 = vsel %vm2294, %v2432, %v2434
      %v2436 = vrot.slane %v2019, 1
      %v2437 = vsel %vm2294, %v2434, %v2436
      %v2438 = vrot.slane %v2022, 1
      %v2439 = vsel %vm2294, %v2436, %v2438
      %v2440 = vrot.slane %v2027, 1
      %v2441 = vsel %vm2294, %v2438, %v2440
      %v2442 = vrot.slane %v2030, 1
      %v2443 = vsel %vm2294, %v2440, %v2442
      %v2453 = vsel %vm2294, %v2442, %v2429
      %v2454 = vmul.f32 %v2431, %v2162
      %v2455 = vmul.f32 %v2433, %v2163
      %v2456 = vmul.f32 %v2435, %v2164
      %v2457 = vmul.f32 %v2437, %v2165
      %v2458 = vmul.f32 %v2439, %v2166
      %v2459 = vmul.f32 %v2441, %v2167
      %v2460 = vmul.f32 %v2443, %v2168
      %v2461 = vmul.f32 %v2453, %v2169
      %v2462 = vlaneseq
      %v2463 = vshrl.u32 %v2462, 7
      %v2464 = vsub.s32 5, %v2463
      %v2465 = vrot.slane %v2202, %v2464
      %v2466 = vmul.f32 %v2454, %v2465
      %v2467 = vmul.f32 %v2455, %v2465
      %v2468 = vmul.f32 %v2456, %v2465
      %v2469 = vmul.f32 %v2457, %v2465
      %v2470 = vmul.f32 %v2458, %v2465
      %v2471 = vmul.f32 %v2459, %v2465
      %v2472 = vmul.f32 %v2460, %v2465
      %v2473 = vmul.f32 %v2461, %v2465
      %v2474 = vadd.f32 %v2421, %v2466
      %v2475 = vadd.f32 %v2422, %v2467
      %v2476 = vadd.f32 %v2423, %v2468
      %v2477 = vadd.f32 %v2424, %v2469
      %v2478 = vadd.f32 %v2425, %v2470
      %v2479 = vadd.f32 %v2426, %v2471
      %v2480 = vadd.f32 %v2427, %v2472
      %v2481 = vadd.f32 %v2428, %v2473
      %v2482 = vmul.f32 %v2006, %v2194
      %v2483 = vmul.f32 %v2011, %v2195
      %v2484 = vmul.f32 %v2014, %v2196
      %v2485 = vmul.f32 %v2019, %v2197
      %v2486 = vmul.f32 %v2022, %v2198
      %v2487 = vmul.f32 %v2027, %v2199
      %v2488 = vmul.f32 %v2030, %v2200
      %v2489 = vmul.f32 %v2003, %v2201
      %v2490 = vlaneseq
      %v2491 = vshrl.u32 %v2490, 7
      %v2492 = vsub.s32 7, %v2491
      %v2493 = vrot.slane %v2202, %v2492
      %v2494 = vmul.f32 %v2482, %v2493
      %v2495 = vmul.f32 %v2483, %v2493
      %v2496 = vmul.f32 %v2484, %v2493
      %v2497 = vmul.f32 %v2485, %v2493
      %v2498 = vmul.f32 %v2486, %v2493
      %v2499 = vmul.f32 %v2487, %v2493
      %v2500 = vmul.f32 %v2488, %v2493
      %v2501 = vmul.f32 %v2489, %v2493
      %v2502 = vadd.f32 %v2474, %v2494
      %v2503 = vadd.f32 %v2475, %v2495
      %v2504 = vadd.f32 %v2476, %v2496
      %v2505 = vadd.f32 %v2477, %v2497
      %v2506 = vadd.f32 %v2478, %v2498
      %v2507 = vadd.f32 %v2479, %v2499
      %v2508 = vadd.f32 %v2480, %v2500
      %v2509 = vadd.f32 %v2481, %v2501
      %v2511 = vrot.slane %v2489, 7
      %v2520 = vrot.slane %v2482, 7
      %v2521 = vrot.slane %v2483, 7
      %v2522 = vsel %vm2242, %v2520, %v2521
      %v2523 = vrot.slane %v2484, 7
      %v2524 = vsel %vm2242, %v2521, %v2523
      %v2525 = vrot.slane %v2485, 7
      %v2526 = vsel %vm2242, %v2523, %v2525
      %v2527 = vrot.slane %v2486, 7
      %v2528 = vsel %vm2242, %v2525, %v2527
      %v2529 = vrot.slane %v2487, 7
      %v2530 = vsel %vm2242, %v2527, %v2529
      %v2531 = vrot.slane %v2488, 7
      %v2532 = vsel %vm2242, %v2529, %v2531
      %v2533 = vsel %vm2242, %v2531, %v2511
      %v2542 = vsel %vm2242, %v2511, %v2520
      %v2543 = vmul.f32 %v2542, %v2146
      %v2544 = vmul.f32 %v2522, %v2147
      %v2545 = vmul.f32 %v2524, %v2148
      %v2546 = vmul.f32 %v2526, %v2149
      %v2547 = vmul.f32 %v2528, %v2150
      %v2548 = vmul.f32 %v2530, %v2151
      %v2549 = vmul.f32 %v2532, %v2152
      %v2550 = vmul.f32 %v2533, %v2153
      %v2551 = vlaneseq
      %v2552 = vshrl.u32 %v2551, 7
      %v2553 = vsub.s32 6, %v2552
      %v2554 = vrot.slane %v2202, %v2553
      %v2555 = vmul.f32 %v2543, %v2554
      %v2556 = vmul.f32 %v2544, %v2554
      %v2557 = vmul.f32 %v2545, %v2554
      %v2558 = vmul.f32 %v2546, %v2554
      %v2559 = vmul.f32 %v2547, %v2554
      %v2560 = vmul.f32 %v2548, %v2554
      %v2561 = vmul.f32 %v2549, %v2554
      %v2562 = vmul.f32 %v2550, %v2554
      %v2563 = vadd.f32 %v2502, %v2555
      %v2564 = vadd.f32 %v2503, %v2556
      %v2565 = vadd.f32 %v2504, %v2557
      %v2566 = vadd.f32 %v2505, %v2558
      %v2567 = vadd.f32 %v2506, %v2559
      %v2568 = vadd.f32 %v2507, %v2560
      %v2569 = vadd.f32 %v2508, %v2561
      %v2570 = vadd.f32 %v2509, %v2562
      %v2571 = vrot.slane %v2482, 1
      %v2572 = vrot.slane %v2483, 1
      %v2573 = vsel %vm2294, %v2571, %v2572
      %v2574 = vrot.slane %v2484, 1
      %v2575 = vsel %vm2294, %v2572, %v2574
      %v2576 = vrot.slane %v2485, 1
      %v2577 = vsel %vm2294, %v2574, %v2576
      %v2578 = vrot.slane %v2486, 1
      %v2579 = vsel %vm2294, %v2576, %v2578
      %v2580 = vrot.slane %v2487, 1
      %v2581 = vsel %vm2294, %v2578, %v2580
      %v2582 = vrot.slane %v2488, 1
      %v2583 = vsel %vm2294, %v2580, %v2582
      %v2584 = vrot.slane %v2489, 1
      %v2585 = vsel %vm2294, %v2582, %v2584
      %v2595 = vsel %vm2294, %v2584, %v2571
      %v2596 = vmul.f32 %v2573, %v2162
      %v2597 = vmul.f32 %v2575, %v2163
      %v2598 = vmul.f32 %v2577, %v2164
      %v2599 = vmul.f32 %v2579, %v2165
      %v2600 = vmul.f32 %v2581, %v2166
      %v2601 = vmul.f32 %v2583, %v2167
      %v2602 = vmul.f32 %v2585, %v2168
      %v2603 = vmul.f32 %v2595, %v2169
      %v2604 = vlaneseq
      %v2605 = vshrl.u32 %v2604, 7
      %v2606 = vsub.s32 0, %v2605
      %v2607 = vrot.slane %v2203, %v2606
      %v2608 = vmul.f32 %v2596, %v2607
      %v2609 = vmul.f32 %v2597, %v2607
      %v2610 = vmul.f32 %v2598, %v2607
      %v2611 = vmul.f32 %v2599, %v2607
      %v2612 = vmul.f32 %v2600, %v2607
      %v2613 = vmul.f32 %v2601, %v2607
      %v2614 = vmul.f32 %v2602, %v2607
      %v2615 = vmul.f32 %v2603, %v2607
      %v2616 = vadd.f32 %v2563, %v2608
      %v2617 = vadd.f32 %v2564, %v2609
      %v2618 = vadd.f32 %v2565, %v2610
      %v2619 = vadd.f32 %v2566, %v2611
      %v2620 = vadd.f32 %v2567, %v2612
      %v2621 = vadd.f32 %v2568, %v2613
      %v2622 = vadd.f32 %v2569, %v2614
      %v2623 = vadd.f32 %v2570, %v2615
      %v2624 = vld [vmem:[%s8] sm:$0x1]
      %v2626 = vlaneseq
      %v2627 = vshrl.u32 %v2626, 7
      %v2628 = vsub.s32 0, %v2627
      %v2629 = vrot.slane %v2624, %v2628
      %v2631 = vadd.f32 %v2616, %v2629
      %v2632 = vadd.f32 %v2617, %v2629
      %v2633 = vadd.f32 %v2618, %v2629
      %v2634 = vadd.f32 %v2619, %v2629
      %v2635 = vadd.f32 %v2620, %v2629
      %v2636 = vadd.f32 %v2621, %v2629
      %v2637 = vadd.f32 %v2622, %v2629
      %v2638 = vadd.f32 %v2623, %v2629
      %v2639 = vmax.f32 %v2631, 0.0
      %v2640 = vmax.f32 %v2632, 0.0
      %v2641 = vmax.f32 %v2633, 0.0
      %v2642 = vmax.f32 %v2634, 0.0
      %v2643 = vmax.f32 %v2635, 0.0
      %v2644 = vmax.f32 %v2636, 0.0
      %v2645 = vmax.f32 %v2637, 0.0
      %v2646 = vmax.f32 %v2638, 0.0
      %v2647 = vpack.c.bf16 %v2640, %v2639
      %v2648 = vpack.c.bf16 %v2642, %v2641
      %v2649 = vpack.c.bf16 %v2644, %v2643
      %v2650 = vpack.c.bf16 %v2646, %v2645
      %v2651 = vld [vmem:[%s9] sm:$0xf]
      %v2652 = vld [vmem:[%s9 + $0x4] sm:$0xf]
      %v2653 = vld [vmem:[%s9 + $0x8] sm:$0xf]
      %v2654 = vld [vmem:[%s9 + $0xc] sm:$0xf]
      %v2655 = vld [vmem:[%s9 + $0x10] sm:$0xf]
      %v2656 = vld [vmem:[%s9 + $0x14] sm:$0xf]
      %v2657 = vld [vmem:[%s9 + $0x18] sm:$0xf]
      %v2658 = vld [vmem:[%s9 + $0x1c] sm:$0xf]
      %v2659 = vld [vmem:[%s9 + $0x20] sm:$0xf]
      %v2660 = vld [vmem:[%s9 + $0x24] sm:$0xf]
      %v2661 = vld [vmem:[%s9 + $0x28] sm:$0xf]
      %v2662 = vld [vmem:[%s9 + $0x2c] sm:$0xf]
      %v2663 = vld [vmem:[%s9 + $0x30] sm:$0xf]
      %v2664 = vld [vmem:[%s9 + $0x34] sm:$0xf]
      %v2665 = vld [vmem:[%s9 + $0x38] sm:$0xf]
      %v2666 = vld [vmem:[%s9 + $0x3c] sm:$0xf]
      %v2667 = vld [vmem:[%s10] sm:$0x1]
      %v2669 = vlaneseq
      %v2670 = vshrl.u32 %v2669, 7
      %v2671 = vsub.s32 0, %v2670
      %v2672 = vrot.slane %v2667, %v2671
      %v2690 = vunpack.c.l.b16 %v2651
      %v2691 = vunpack.c.l.b16 %v2652
      %v2692 = vunpack.c.l.b16 %v2653
      %v2693 = vunpack.c.l.b16 %v2654
      %v2694 = vunpack.c.l.b16 %v2655
      %v2695 = vunpack.c.l.b16 %v2656
      %v2696 = vunpack.c.l.b16 %v2657
      %v2697 = vunpack.c.l.b16 %v2658
      %v2698 = vunpack.c.l.b16 %v2659
      %v2699 = vunpack.c.l.b16 %v2660
      %v2700 = vunpack.c.l.b16 %v2661
      %v2701 = vunpack.c.l.b16 %v2662
      %v2702 = vunpack.c.l.b16 %v2663
      %v2703 = vunpack.c.l.b16 %v2664
      %v2704 = vunpack.c.l.b16 %v2665
      %v2705 = vunpack.c.l.b16 %v2666
      %v2706 = vpack.c.b16 %v2691, %v2690
      %v2707 = vpack.c.b16 %v2693, %v2692
      %v2708 = vpack.c.b16 %v2695, %v2694
      %v2709 = vpack.c.b16 %v2697, %v2696
      %v2710 = vpack.c.b16 %v2699, %v2698
      %v2711 = vpack.c.b16 %v2701, %v2700
      %v2712 = vpack.c.b16 %v2703, %v2702
      %v2713 = vpack.c.b16 %v2705, %v2704
      %2722 = vmatprep.subr.bf16.mxu0 0
      %2723 = vmatpush1.bf16.msra.mxu0 %v2706
      %2724 = vmatprep.subr.bf16.mxu0 0
      %2725 = vmatpush1.bf16.msra.mxu0 %v2707
      %2726 = vmatprep.subr.bf16.mxu0 0
      %2727 = vmatpush1.bf16.msra.mxu0 %v2708
      %2728 = vmatprep.subr.bf16.mxu0 0
      %2729 = vmatpush1.bf16.msra.mxu0 %v2709
      %2730 = vmatprep.subr.bf16.mxu0 0
      %2731 = vmatpush1.bf16.msra.mxu0 %v2710
      %2732 = vmatprep.subr.bf16.mxu0 0
      %2733 = vmatpush1.bf16.msra.mxu0 %v2711
      %2734 = vmatprep.subr.bf16.mxu0 0
      %2735 = vmatpush1.bf16.msra.mxu0 %v2712
      %2736 = vmatprep.subr.bf16.mxu0 0
      %2737 = vmatpush1.bf16.msra.mxu0 %v2713
      %2738 = vmatprep.subr.bf16.mxu0 0
      %2739 = vmatpush1.bf16.msra.mxu0 0
      %2740 = vmatprep.subr.bf16.mxu0 0
      %2741 = vmatpush1.bf16.msra.mxu0 0
      %2742 = vmatprep.subr.bf16.mxu0 0
      %2743 = vmatpush1.bf16.msra.mxu0 0
      %2744 = vmatprep.subr.bf16.mxu0 0
      %2745 = vmatpush1.bf16.msra.mxu0 0
      %2746 = vmatprep.subr.bf16.mxu0 0
      %2747 = vmatpush1.bf16.msra.mxu0 0
      %2748 = vmatprep.subr.bf16.mxu0 0
      %2749 = vmatpush1.bf16.msra.mxu0 0
      %2750 = vmatprep.subr.bf16.mxu0 0
      %2751 = vmatpush1.bf16.msra.mxu0 0
      %2752 = vmatprep.subr.bf16.mxu0 0
      %2753 = vmatpush1.bf16.msra.mxu0 0
      %2754 = vmatprep.mubr.bf16.mxu0 0
      %2755 = vmatmul.mubr.bf16.gmra.mrb[0].mxu0 %v2647
      %v2756 = vpop.f32.mrb[0].mxu0
      %v2757 = vadd.f32 %v2672, %v2756
      %v2758 = vpop.f32.mrb[0].mxu0
      %v2759 = vpop.f32.mrb[0].mxu0
      %v2760 = vadd.f32 %v2672, %v2759
      %v2761 = vpop.f32.mrb[0].mxu0
      %2762 = vmatprep.mubr.bf16.mxu0 0
      %2763 = vmatmul.mubr.bf16.gmra.mrb[0].mxu0 %v2648
      %v2764 = vpop.f32.mrb[0].mxu0
      %v2765 = vadd.f32 %v2672, %v2764
      %v2766 = vpop.f32.mrb[0].mxu0
      %v2767 = vpop.f32.mrb[0].mxu0
      %v2768 = vadd.f32 %v2672, %v2767
      %v2769 = vpop.f32.mrb[0].mxu0
      %2770 = vmatprep.mubr.bf16.mxu0 0
      %2771 = vmatmul.mubr.bf16.gmra.mrb[0].mxu0 %v2649
      %v2772 = vpop.f32.mrb[0].mxu0
      %v2773 = vadd.f32 %v2672, %v2772
      %v2774 = vpop.f32.mrb[0].mxu0
      %v2775 = vpop.f32.mrb[0].mxu0
      %v2776 = vadd.f32 %v2672, %v2775
      %v2777 = vpop.f32.mrb[0].mxu0
      %2778 = vmatprep.mubr.bf16.mxu0 0
      %2779 = vmatmul.mubr.bf16.gmra.mrb[0].mxu0 %v2650
      %v2780 = vpop.f32.mrb[0].mxu0
      %v2781 = vadd.f32 %v2672, %v2780
      %v2782 = vpop.f32.mrb[0].mxu0
      %v2783 = vpop.f32.mrb[0].mxu0
      %v2784 = vadd.f32 %v2672, %v2783
      %v2785 = vpop.f32.mrb[0].mxu0
      %2786 = vdwg.mxu0
      %v2787 = vadd.f32 %v1921, %v2757
      %v2788 = vadd.f32 %v1922, %v2760
      %v2789 = vadd.f32 %v1923, %v2765
      %v2790 = vadd.f32 %v1924, %v2768
      %v2791 = vadd.f32 %v1925, %v2773
      %v2792 = vadd.f32 %v1926, %v2776
      %v2793 = vadd.f32 %v1927, %v2781
      %v2794 = vadd.f32 %v1928, %v2784
      %2795 = vst.msk [vmem:[%s386] sm:$0xff] %vm423, %v2787
      %2796 = vst.msk [vmem:[%s386 + $0x8] sm:$0xff] %vm423, %v2788
      %2797 = vst.msk [vmem:[%s386 + $0x10] sm:$0xff] %vm423, %v2789
      %2798 = vst.msk [vmem:[%s386 + $0x18] sm:$0xff] %vm423, %v2790
      %2799 = vst.msk [vmem:[%s386 + $0x20] sm:$0xff] %vm423, %v2791
      %2800 = vst.msk [vmem:[%s386 + $0x28] sm:$0xff] %vm423, %v2792
      %2801 = vst.msk [vmem:[%s386 + $0x30] sm:$0xff] %vm423, %v2793
      %2802 = vst.msk [vmem:[%s386 + $0x38] sm:$0xff] %vm423, %v2794
      %p2803 = scmp.lt.s32.totalorder %s22, 1
      %s2804 = scalar_select %p2803, %s22, 1
      %s2805 = smul.addr %s2804, 8
      %s2806 = smul.addr %s2805, 8
      %s2807 = scalar_lea.vmem %s11, %s2806
      // Predicated region
      $region65: #{tpu_custom_call.1} parent=63 // pred_check
        %p2808 = pneg %p276
      $region66: #{tpu_custom_call.1} parent=63 // pred_check_branch
        %2810 = sbr.rel (%p2808) target = $region68
      $region67: #{tpu_custom_call.1} parent=63 // pred_region
        _
      $region68: #{tpu_custom_call.1} parent=63 // pred_fallthru
        _
    $region64: #{tpu_custom_call.1} parent=5 // pred_fallthru
      _
    %p2811 = scmp.le.s32.totalorder 2, %s17
    // Predicated region
    $region69: #{tpu_custom_call.1} parent=5 // pred_check
      %p2812 = pneg %p2811
    $region70: #{tpu_custom_call.1} parent=5 // pred_check_branch
      %2814 = sbr.rel (%p2812) target = $region72
    $region71: #{tpu_custom_call.1} parent=5 // pred_region
      %s2815 = ssub.s32 %s17, 2
      // Predicated region
      $region73: #{tpu_custom_call.1} parent=71 // pred_check
        %p2816 = pneg %p282
      $region74: #{tpu_custom_call.1} parent=71 // pred_check_branch
        %2818 = sbr.rel (%p2816) target = $region76
      $region75: #{tpu_custom_call.1} parent=71 // pred_region
        %p2819 = scmp.lt.s32.totalorder %s23, 1
        %s2820 = scalar_select %p2819, %s23, 1
        %s2821 = smul.addr %s2820, 8
        %s2822 = smul.addr %s2821, 8
        %s2823 = scalar_lea.vmem %s11, %s2822
      $region76: #{tpu_custom_call.1} parent=71 // pred_fallthru
        _
    $region72: #{tpu_custom_call.1} parent=5 // pred_fallthru
      _
  $region6: #{tpu_custom_call.1} parent=0 // loop_footer
    %s21 = sadd.s32 1, %s17
  $region7: #{tpu_custom_call.1} parent=0 // loop_footer_branch
    %16 = sbr.rel target = $region3
  $region8: #{tpu_custom_call.1} parent=0 // loop_exit
    _

</llo_original>
